<compile_context>
chip_gen: v7x
topology: tpu7x:2x2x1
jax: 0.10.0
libtpu: 0.0.40
codegen_flags: <defaults>
</compile_context>

<pallas_src>
import jax
import jax.numpy as jnp
from jax import lax
from jax.experimental import pallas as pl
from jax.experimental.pallas import tpu as pltpu

LANE = 128


def _round_up(x, m):
    return (x + m - 1) // m * m


# ---------------------------------------------------------------------------
# Fused SignNet kernel
# ---------------------------------------------------------------------------
def signnet_kernel(eps_ref,                      # SMEM (3,) f32 : (1 + eps) per conv layer
                   src_ref, dst_ref,             # VMEM (Ep,1) / (1,Ep) int32 edge indices
                   x_ref,                        # VMEM (Np, C) f32 : pos_enc (+ branch only)
                   ea_ref,                       # VMEM (Ep, C) bf16 : padded edge_attr
                   we_ref, be_ref,               # (3,C,C) bf16 / (3,1,C) f32 : GINE edge Linear
                   w1_ref, b1_ref, bns_ref, bnb_ref, w2_ref, b2_ref,   # conv MLP (stacked over 3 layers)
                   wih_ref,                      # (C, 8*HL) bf16 : fused x->gate weights (2 dirs x 4 gates)
                   whh_ref,                      # (2, HL, 4*HL) bf16 : fused h->gate weights per direction
                   lb_ref,                       # (2, 1, 4*HL) f32 : fused gate biases (b_ih + b_hh)
                   attw_ref, attb_ref,           # (2,1,HL) f32, (1,1) f32 : JK attention Linear
                   linw_ref, linb_ref,           # (C,C) bf16, (1,C) f32 : BasicGNN final Linear
                   rw1_ref, rb1_ref, rbs_ref, rbb_ref, rw2_ref, rb2_ref,  # rho MLP
                   out_ref):                     # VMEM (Np, C) f32
    f32 = jnp.float32
    bf16 = jnp.bfloat16

    n_p, C = x_ref.shape
    two_np = 2 * n_p
    e_p = src_ref.shape[0]
    HL = whh_ref.shape[1]

    def dot_f32(a, b):
        return jnp.dot(a, b, preferred_element_type=f32)

    # --- gather / scatter one-hots built in-kernel from the index vectors -----
    # TODO(synk): O(E*N) VMEM + O(E*N*C) MXU -> replace with indexed DMA
    #   gather / node-tiled scatter-add for large graphs (see header TODO).
    src = src_ref[...]                                             # [Ep, 1]
    dst = dst_ref[...]                                             # [1, Ep]
    gat = jnp.where(
        lax.broadcasted_iota(jnp.int32, (e_p, n_p), 1) == src, 1.0, 0.0
    ).astype(bf16)                                                 # [Ep, Np]
    sct = jnp.where(
        lax.broadcasted_iota(jnp.int32, (n_p, e_p), 0) == dst, 1.0, 0.0
    ).astype(bf16)                                                 # [Np, Ep]

    ea = ea_ref[...]                                               # [Ep, C] bf16

    # column-packed sign branches: lanes [0:C) = phi(+x), [C:2C) = phi(-x)
    x0 = x_ref[...]                                                # [Np, C] f32
    h_both = jnp.concatenate([x0, -x0], axis=1)                    # [Np, 2C] f32

    # ----------------------- 3 fused GINEConv layers --------------------------
    xs_layers = []                                                 # bf16 [2Np, C] per layer
    for l in range(3):                                             # static unroll
        one_plus_eps = eps_ref[l]
        # edge Linear is independent of x -> computed once, shared by branches
        e_lin = dot_f32(ea, we_ref[l]) + be_ref[l]                 # [Ep, C]
        e_lin2 = jnp.concatenate([e_lin, e_lin], axis=1)           # [Ep, 2C]

        if l == 0:
            # layer-1 branches are exact negatives: gather once, flip sign
            xj = dot_f32(gat, x0.astype(bf16))                     # [Ep, C]
            xj_both = jnp.concatenate([xj, -xj], axis=1)           # [Ep, 2C]
        else:
            xj_both = dot_f32(gat, h_both.astype(bf16))            # 256-wide gather

        msg = jnp.maximum(xj_both + e_lin2, 0.0).astype(bf16)      # message relu
        agg = dot_f32(sct, msg)                                    # 256-wide scatter-add
        h_in = agg + one_plus_eps * h_both                         # [Np, 2C] f32

        # unpack to row-stacked [2Np, C] so one MLP matmul covers both branches
        h_rows = jnp.concatenate([h_in[:, :C], h_in[:, C:]], axis=0)
        h1 = dot_f32(h_rows.astype(bf16), w1_ref[l]) + b1_ref[l]   # Lin1
        h1 = jnp.maximum(h1 * bns_ref[l] + bnb_ref[l], 0.0)        # BN(eval) + ReLU
        h2 = dot_f32(h1.astype(bf16), w2_ref[l]) + b2_ref[l]       # Lin2
        h_act = jnp.maximum(h2, 0.0)                               # BasicGNN act (ReLU)
        xs_layers.append(h_act.astype(bf16))                       # keep bf16 (VMEM)
        if l < 2:                                                  # repack for next gather
            h_both = jnp.concatenate([h_act[:n_p], h_act[n_p:]], axis=1)

    # ------------- JumpingKnowledge('lstm'): bi-LSTM + attention --------------
    # Input projections hoisted out of the recurrence: one fused matmul covers
    # all 3 timesteps x 2 directions x 4 gates.
    xs_all = jnp.concatenate(xs_layers, axis=0)                    # [6Np, C] bf16
    xproj = dot_f32(xs_all, wih_ref[...])                          # [6Np, 8*HL] f32

    def lstm_scores(d, order):
        whh = whh_ref[d]                                           # [HL, 4HL] bf16
        bias = lb_ref[d]                                           # [1, 4HL] f32
        attw = attw_ref[d]                                         # [1, HL] f32
        h = jnp.zeros((two_np, HL), f32)
        c = jnp.zeros((two_np, HL), f32)
        sc = [None, None, None]
        for t in order:                                            # static unroll (seq len 3)
            xp_dt = xproj[t * two_np:(t + 1) * two_np,
                          d * 4 * HL:(d + 1) * 4 * HL]             # [2Np, 4HL]
            g = xp_dt + dot_f32(h.astype(bf16), whh) + bias        # fused 512-wide gate matmul
            i_g = jax.nn.sigmoid(g[:, 0:HL])
            f_g = jax.nn.sigmoid(g[:, HL:2 * HL])
            g_g = jnp.tanh(g[:, 2 * HL:3 * HL])
            o_g = jax.nn.sigmoid(g[:, 3 * HL:4 * HL])
            c = f_g * c + i_g * g_g
            h = o_g * jnp.tanh(c)
            # attention score contribution computed on the fly; h/c not kept
            sc[t] = jnp.sum(h * attw, axis=-1, keepdims=True)      # [2Np, 1]
        return sc

    sc_f = lstm_scores(0, (0, 1, 2))                               # forward direction
    sc_b = lstm_scores(1, (2, 1, 0))                               # backward direction
    ab = attb_ref[...]                                             # [1, 1]
    scores = [sc_f[t] + sc_b[t] + ab for t in range(3)]

    # exact softmax over the 3 timesteps (review: no approx reciprocal here)
    mx = jnp.maximum(jnp.maximum(scores[0], scores[1]), scores[2])
    es = [jnp.exp(s - mx) for s in scores]
    den = es[0] + es[1] + es[2]
    xw = (es[0] * xs_layers[0].astype(f32)
          + es[1] * xs_layers[1].astype(f32)
          + es[2] * xs_layers[2].astype(f32)) / den                # [2Np, C] f32

    # BasicGNN final Linear(hidden, out)
    phi = dot_f32(xw.astype(bf16), linw_ref[...]) + linb_ref[...]  # [2Np, C]

    # phi(x) + phi(-x)
    phi_sum = phi[:n_p] + phi[n_p:]                                # [Np, C]

    # ----------------------------- rho MLP ------------------------------------
    r1 = dot_f32(phi_sum.astype(bf16), rw1_ref[...]) + rb1_ref[...]
    r1 = jnp.maximum(r1 * rbs_ref[...] + rbb_ref[...], 0.0)
    out_ref[...] = dot_f32(r1.astype(bf16), rw2_ref[...]) + rb2_ref[...]


# ---------------------------------------------------------------------------
# Wrapper: padding / packing glue + single pallas_call
# ---------------------------------------------------------------------------
def signnet_forward(x, edge_index, edge_attr, params):
    n, in_dim = x.shape
    e, edge_dim = edge_attr.shape
    n_p = _round_up(max(n, 8), 8)
    e_p = _round_up(max(e, 8), 8)
    C = params['C']
    out_dim = params['out_dim']

    # pad node features to the 128-lane width (single branch; -x built in-kernel)
    xp = jnp.zeros((n_p, C), jnp.float32).at[:n, :in_dim].set(x)

    # padded edge features (bf16 matmul operand)
    eap = jnp.zeros((e_p, C), jnp.float32).at[:e, :edge_dim].set(edge_attr)
    eap = eap.astype(jnp.bfloat16)

    # edge indices; padded edges get src/dst = -1 so they never gather/scatter
    # TODO(synk): src as [Ep,1] wastes ~512 B/edge of VMEM; becomes material at
    #   tens of thousands of edges -- folded into the indexed-gather rewrite.
    src = jnp.full((e_p, 1), -1, jnp.int32).at[:e, 0].set(edge_index[0].astype(jnp.int32))
    dst = jnp.full((1, e_p), -1, jnp.int32).at[0, :e].set(edge_index[1].astype(jnp.int32))

    vspec = pl.BlockSpec(memory_space=pltpu.MemorySpace.VMEM)
    sspec = pl.BlockSpec(memory_space=pltpu.MemorySpace.SMEM)

    p = params
    out = pl.pallas_call(
        signnet_kernel,
        out_shape=jax.ShapeDtypeStruct((n_p, C), jnp.float32),
        in_specs=[sspec] + [vspec] * 25,
        out_specs=vspec,
        compiler_params=pltpu.CompilerParams(
            vmem_limit_bytes=48 * 1024 * 1024),
    )(p['eps1p'], src, dst, xp, eap,
      p['conv_we'], p['conv_be'],
      p['conv_w1'], p['conv_b1'], p['conv_bns'], p['conv_bnb'],
      p['conv_w2'], p['conv_b2'],
      p['lstm_wih'], p['lstm_whh'], p['lstm_b'],
      p['att_w'], p['att_b'], p['lin_w'], p['lin_b'],
      p['rho_w1'], p['rho_b1'], p['rho_bns'], p['rho_bnb'],
      p['rho_w2'], p['rho_b2'])
    return out[:n, :out_dim]


# ---------------------------------------------------------------------------
# Deterministic parameter initialization (padded / packed for the kernel)
# ---------------------------------------------------------------------------
def init_params(key, in_dim, hidden, out_dim, edge_dim):
    C = LANE                          # padded width for every channel dim
    hl = (3 * hidden) // 2            # JumpingKnowledge LSTM hidden size (=48)
    HL = LANE                         # padded LSTM hidden (gate block width)

    keys = iter(jax.random.split(key, 200))
    nk = lambda: next(keys)

    def rnd(shape, s=0.2):
        return s * jax.random.normal(nk(), shape, jnp.float32)

    def pad_to(a, shape):
        out = jnp.zeros(shape, jnp.float32)
        return out.at[tuple(slice(0, s) for s in a.shape)].set(a)

    def bn_fold(dim):
        gamma = 1.0 + 0.1 * jax.random.normal(nk(), (dim,), jnp.float32)
        beta = 0.1 * jax.random.normal(nk(), (dim,), jnp.float32)
        mean = 0.05 * jax.random.normal(nk(), (dim,), jnp.float32)
        var = 1.0 + 0.1 * jnp.abs(jax.random.normal(nk(), (dim,), jnp.float32))
        scale = gamma / jnp.sqrt(var + 1e-5)
        shift = beta - mean * scale
        return scale, shift

    # ---- phi: 3 GINEConv layers (weights stacked on a leading layer axis) ----
    conv_we, conv_be = [], []
    conv_w1, conv_b1, conv_bns, conv_bnb, conv_w2, conv_b2 = [], [], [], [], [], []
    cin = in_dim
    for _ in range(3):
        bn_s, bn_b = bn_fold(hidden)
        conv_we.append(pad_to(rnd((edge_dim, cin)), (C, C)))    # edge Linear(edge_dim, cin)
        conv_be.append(pad_to(rnd((1, cin)), (1, C)))
        conv_w1.append(pad_to(rnd((cin, hidden)), (C, C)))      # MLP Lin1
        conv_b1.append(pad_to(rnd((1, hidden)), (1, C)))
        conv_bns.append(pad_to(bn_s[None, :], (1, C)))          # MLP BatchNorm (eval, folded)
        conv_bnb.append(pad_to(bn_b[None, :], (1, C)))
        conv_w2.append(pad_to(rnd((hidden, hidden)), (C, C)))   # MLP Lin2
        conv_b2.append(pad_to(rnd((1, hidden)), (1, C)))
        cin = hidden

    stack = lambda xs: jnp.stack(xs, axis=0)
    bf = lambda a: a.astype(jnp.bfloat16)

    # ---- JK 'lstm': bi-LSTM with gates fused at 128-lane offsets (i,f,g,o) ----
    # Input-projection weight fused across BOTH directions -> one [C, 8*HL] block.
    wih = jnp.zeros((C, 8 * HL), jnp.float32)
    whh = jnp.zeros((2, HL, 4 * HL), jnp.float32)
    lb = jnp.zeros((2, 1, 4 * HL), jnp.float32)
    for d in range(2):
        for k in range(4):                                      # gates i, f, g, o
            off = (d * 4 + k) * HL
            wih = wih.at[:hidden, off:off + hl].set(rnd((hidden, hl)))
            whh = whh.at[d, :hl, k * HL:k * HL + hl].set(rnd((hl, hl)))
            lb = lb.at[d, 0, k * HL:k * HL + hl].set(rnd((hl,)))   # b_ih + b_hh folded
    att_w = jnp.zeros((2, 1, HL), jnp.float32)
    att_w = att_w.at[0, 0, :hl].set(rnd((hl,)))                 # fwd half of Linear(2*hl, 1)
    att_w = att_w.at[1, 0, :hl].set(rnd((hl,)))                 # bwd half
    att_b = rnd((1, 1))
    lin_w = pad_to(rnd((hidden, out_dim)), (C, C))              # BasicGNN final Linear
    lin_b = pad_to(rnd((1, out_dim)), (1, C))

    # ---- rho = MLP([out_dim, hidden, out_dim]) with BatchNorm ----
    rbn_s, rbn_b = bn_fold(hidden)
    rho_w1 = pad_to(rnd((out_dim, hidden)), (C, C))
    rho_b1 = pad_to(rnd((1, hidden)), (1, C))
    rho_bns = pad_to(rbn_s[None, :], (1, C))
    rho_bnb = pad_to(rbn_b[None, :], (1, C))
    rho_w2 = pad_to(rnd((hidden, out_dim)), (C, C))
    rho_b2 = pad_to(rnd((1, out_dim)), (1, C))

    return dict(
        C=C, out_dim=out_dim,
        eps1p=jnp.ones((3,), jnp.float32),        # GINEConv eps init = 0 -> (1 + eps) = 1
        conv_we=bf(stack(conv_we)), conv_be=stack(conv_be),
        conv_w1=bf(stack(conv_w1)), conv_b1=stack(conv_b1),
        conv_bns=stack(conv_bns), conv_bnb=stack(conv_bnb),
        conv_w2=bf(stack(conv_w2)), conv_b2=stack(conv_b2),
        lstm_wih=bf(wih), lstm_whh=bf(whh), lstm_b=lb,
        att_w=att_w, att_b=att_b, lin_w=bf(lin_w), lin_b=lin_b,
        rho_w1=bf(rho_w1), rho_b1=rho_b1, rho_bns=rho_bns, rho_bnb=rho_bnb,
        rho_w2=bf(rho_w2), rho_b2=rho_b2,
    )


# ---------------------------------------------------------------------------
if __name__ == "__main__":
    key = jax.random.PRNGKey(0)
    n_nodes, n_edges = 16, 32
    in_dim, hidden_dim, out_dim, edge_dim = 8, 32, 16, 8

    k_x, k_ei, k_ea, k_p = jax.random.split(key, 4)
    pos_enc = jax.random.normal(k_x, (n_nodes, in_dim), jnp.float32)       # data.pos_enc
    edge_index = jax.random.randint(k_ei, (2, n_edges), 0, n_nodes)        # data.edge_index
    edge_attr = jax.random.normal(k_ea, (n_edges, edge_dim), jnp.float32)  # data.edge_attr

    params = init_params(k_p, in_dim, hidden_dim, out_dim, edge_dim)

    out = signnet_forward(pos_enc, edge_index, edge_attr, params)
    out = jax.block_until_ready(out)

    assert out.shape == (n_nodes, out_dim), out.shape
    assert bool(jnp.all(jnp.isfinite(out)))
    print("KERNEL_OK")
</pallas_src>

<mosaic_0001>
module attributes {stable_mosaic.version = 11 : i64} {
  func.func @signnet_kernel(%arg0: memref<3xf32, #tpu.memory_space<smem>>, %arg1: memref<32x1xi32, #tpu.memory_space<vmem>>, %arg2: memref<1x32xi32, #tpu.memory_space<vmem>>, %arg3: memref<16x128xf32, #tpu.memory_space<vmem>>, %arg4: memref<32x128xbf16, #tpu.memory_space<vmem>>, %arg5: memref<3x128x128xbf16, #tpu.memory_space<vmem>>, %arg6: memref<3x1x128xf32, #tpu.memory_space<vmem>>, %arg7: memref<3x128x128xbf16, #tpu.memory_space<vmem>>, %arg8: memref<3x1x128xf32, #tpu.memory_space<vmem>>, %arg9: memref<3x1x128xf32, #tpu.memory_space<vmem>>, %arg10: memref<3x1x128xf32, #tpu.memory_space<vmem>>, %arg11: memref<3x128x128xbf16, #tpu.memory_space<vmem>>, %arg12: memref<3x1x128xf32, #tpu.memory_space<vmem>>, %arg13: memref<128x1024xbf16, #tpu.memory_space<vmem>>, %arg14: memref<2x128x512xbf16, #tpu.memory_space<vmem>>, %arg15: memref<2x1x512xf32, #tpu.memory_space<vmem>>, %arg16: memref<2x1x128xf32, #tpu.memory_space<vmem>>, %arg17: memref<1x1xf32, #tpu.memory_space<vmem>>, %arg18: memref<128x128xbf16, #tpu.memory_space<vmem>>, %arg19: memref<1x128xf32, #tpu.memory_space<vmem>>, %arg20: memref<128x128xbf16, #tpu.memory_space<vmem>>, %arg21: memref<1x128xf32, #tpu.memory_space<vmem>>, %arg22: memref<1x128xf32, #tpu.memory_space<vmem>>, %arg23: memref<1x128xf32, #tpu.memory_space<vmem>>, %arg24: memref<128x128xbf16, #tpu.memory_space<vmem>>, %arg25: memref<1x128xf32, #tpu.memory_space<vmem>>, %arg26: memref<16x128xf32, #tpu.memory_space<vmem>>) attributes {dimension_semantics = [], scalar_prefetch = 0 : i64, scratch_operands = 0 : i64, tpu.core_type = #tpu.core_type<tc>} {
    %c0 = arith.constant 0 : index
    %c0_0 = arith.constant 0 : index
    %0 = vector.load %arg1[%c0, %c0_0] : memref<32x1xi32, #tpu.memory_space<vmem>>, vector<32x1xi32>
    %c0_1 = arith.constant 0 : index
    %c0_2 = arith.constant 0 : index
    %1 = vector.load %arg2[%c0_1, %c0_2] : memref<1x32xi32, #tpu.memory_space<vmem>>, vector<1x32xi32>
    %2 = tpu.iota {dimensions = array<i32: 1>} : vector<32x16xi32>
    %3 = vector.broadcast %0 : vector<32x1xi32> to vector<32x16xi32>
    %4 = arith.cmpi eq, %2, %3 : vector<32x16xi32>
    %cst = arith.constant 1.000000e+00 : f32
    %cst_3 = arith.constant 0.000000e+00 : f32
    %5 = vector.broadcast %cst : f32 to vector<32x16xf32>
    %6 = vector.broadcast %cst_3 : f32 to vector<32x16xf32>
    %7 = arith.select %4, %5, %6 : vector<32x16xi1>, vector<32x16xf32>
    %8 = arith.truncf %7 : vector<32x16xf32> to vector<32x16xbf16>
    %9 = tpu.iota {dimensions = array<i32: 0>} : vector<16x32xi32>
    %10 = vector.broadcast %1 : vector<1x32xi32> to vector<16x32xi32>
    %11 = arith.cmpi eq, %9, %10 : vector<16x32xi32>
    %cst_4 = arith.constant 1.000000e+00 : f32
    %cst_5 = arith.constant 0.000000e+00 : f32
    %12 = vector.broadcast %cst_4 : f32 to vector<16x32xf32>
    %13 = vector.broadcast %cst_5 : f32 to vector<16x32xf32>
    %14 = arith.select %11, %12, %13 : vector<16x32xi1>, vector<16x32xf32>
    %15 = arith.truncf %14 : vector<16x32xf32> to vector<16x32xbf16>
    %c0_6 = arith.constant 0 : index
    %c0_7 = arith.constant 0 : index
    %16 = vector.load %arg4[%c0_6, %c0_7] : memref<32x128xbf16, #tpu.memory_space<vmem>>, vector<32x128xbf16>
    %c0_8 = arith.constant 0 : index
    %c0_9 = arith.constant 0 : index
    %17 = vector.load %arg3[%c0_8, %c0_9] : memref<16x128xf32, #tpu.memory_space<vmem>>, vector<16x128xf32>
    %cst_10 = arith.constant 0.000000e+00 : f32
    %18 = vector.broadcast %cst_10 : f32 to vector<16x128xf32>
    %19 = arith.subf %18, %17 : vector<16x128xf32>
    %20 = tpu.concatenate %17, %19 in 1 : vector<16x128xf32>, vector<16x128xf32> -> vector<16x256xf32>
    %c0_11 = arith.constant 0 : index
    %21 = memref.load %arg0[%c0_11] : memref<3xf32, #tpu.memory_space<smem>>
    %c0_12 = arith.constant 0 : index
    %c0_13 = arith.constant 0 : index
    %c0_14 = arith.constant 0 : index
    %22 = vector.load %arg5[%c0_12, %c0_13, %c0_14] : memref<3x128x128xbf16, #tpu.memory_space<vmem>>, vector<1x128x128xbf16>
    %23 = vector.shape_cast %22 : vector<1x128x128xbf16> to vector<128x128xbf16>
    %cst_15 = arith.constant dense<0.000000e+00> : vector<32x128xf32>
    %24 = tpu.matmul %16, %23, %cst_15 {dimension_numbers = #tpu.dot_dimension_numbers<[1], [0], [0], [1], [0, 0, 1, 1], [], []>} : vector<32x128xbf16>, vector<128x128xbf16>, vector<32x128xf32> -> vector<32x128xf32>
    %c0_16 = arith.constant 0 : index
    %c0_17 = arith.constant 0 : index
    %c0_18 = arith.constant 0 : index
    %25 = vector.load %arg6[%c0_16, %c0_17, %c0_18] : memref<3x1x128xf32, #tpu.memory_space<vmem>>, vector<1x1x128xf32>
    %26 = vector.shape_cast %25 : vector<1x1x128xf32> to vector<1x128xf32>
    %27 = vector.broadcast %26 : vector<1x128xf32> to vector<32x128xf32>
    %28 = arith.addf %24, %27 : vector<32x128xf32>
    %29 = tpu.concatenate %28, %28 in 1 : vector<32x128xf32>, vector<32x128xf32> -> vector<32x256xf32>
    %30 = arith.truncf %17 : vector<16x128xf32> to vector<16x128xbf16>
    %cst_19 = arith.constant dense<0.000000e+00> : vector<32x128xf32>
    %31 = tpu.matmul %8, %30, %cst_19 {dimension_numbers = #tpu.dot_dimension_numbers<[1], [0], [0], [1], [0, 0, 1, 1], [], []>} : vector<32x16xbf16>, vector<16x128xbf16>, vector<32x128xf32> -> vector<32x128xf32>
    %cst_20 = arith.constant 0.000000e+00 : f32
    %32 = vector.broadcast %cst_20 : f32 to vector<32x128xf32>
    %33 = arith.subf %32, %31 : vector<32x128xf32>
    %34 = tpu.concatenate %31, %33 in 1 : vector<32x128xf32>, vector<32x128xf32> -> vector<32x256xf32>
    %35 = arith.addf %34, %29 : vector<32x256xf32>
    %cst_21 = arith.constant 0.000000e+00 : f32
    %36 = vector.broadcast %cst_21 : f32 to vector<32x256xf32>
    %37 = arith.maximumf %35, %36 : vector<32x256xf32>
    %38 = arith.truncf %37 : vector<32x256xf32> to vector<32x256xbf16>
    %cst_22 = arith.constant dense<0.000000e+00> : vector<16x256xf32>
    %39 = tpu.matmul %15, %38, %cst_22 {dimension_numbers = #tpu.dot_dimension_numbers<[1], [0], [0], [1], [0, 0, 1, 1], [], []>} : vector<16x32xbf16>, vector<32x256xbf16>, vector<16x256xf32> -> vector<16x256xf32>
    %40 = vector.broadcast %21 : f32 to vector<16x256xf32>
    %41 = arith.mulf %40, %20 : vector<16x256xf32>
    %42 = arith.addf %39, %41 : vector<16x256xf32>
    %43 = vector.extract_strided_slice %42 {offsets = [0, 0], sizes = [16, 128], strides = [1, 1]} : vector<16x256xf32> to vector<16x128xf32>
    %44 = vector.extract_strided_slice %42 {offsets = [0, 128], sizes = [16, 128], strides = [1, 1]} : vector<16x256xf32> to vector<16x128xf32>
    %45 = tpu.concatenate %43, %44 in 0 : vector<16x128xf32>, vector<16x128xf32> -> vector<32x128xf32>
    %46 = arith.truncf %45 : vector<32x128xf32> to vector<32x128xbf16>
    %c0_23 = arith.constant 0 : index
    %c0_24 = arith.constant 0 : index
    %c0_25 = arith.constant 0 : index
    %47 = vector.load %arg7[%c0_23, %c0_24, %c0_25] : memref<3x128x128xbf16, #tpu.memory_space<vmem>>, vector<1x128x128xbf16>
    %48 = vector.shape_cast %47 : vector<1x128x128xbf16> to vector<128x128xbf16>
    %cst_26 = arith.constant dense<0.000000e+00> : vector<32x128xf32>
    %49 = tpu.matmul %46, %48, %cst_26 {dimension_numbers = #tpu.dot_dimension_numbers<[1], [0], [0], [1], [0, 0, 1, 1], [], []>} : vector<32x128xbf16>, vector<128x128xbf16>, vector<32x128xf32> -> vector<32x128xf32>
    %c0_27 = arith.constant 0 : index
    %c0_28 = arith.constant 0 : index
    %c0_29 = arith.constant 0 : index
    %50 = vector.load %arg8[%c0_27, %c0_28, %c0_29] : memref<3x1x128xf32, #tpu.memory_space<vmem>>, vector<1x1x128xf32>
    %51 = vector.shape_cast %50 : vector<1x1x128xf32> to vector<1x128xf32>
    %52 = vector.broadcast %51 : vector<1x128xf32> to vector<32x128xf32>
    %53 = arith.addf %49, %52 : vector<32x128xf32>
    %c0_30 = arith.constant 0 : index
    %c0_31 = arith.constant 0 : index
    %c0_32 = arith.constant 0 : index
    %54 = vector.load %arg9[%c0_30, %c0_31, %c0_32] : memref<3x1x128xf32, #tpu.memory_space<vmem>>, vector<1x1x128xf32>
    %55 = vector.shape_cast %54 : vector<1x1x128xf32> to vector<1x128xf32>
    %56 = vector.broadcast %55 : vector<1x128xf32> to vector<32x128xf32>
    %57 = arith.mulf %53, %56 : vector<32x128xf32>
    %c0_33 = arith.constant 0 : index
    %c0_34 = arith.constant 0 : index
    %c0_35 = arith.constant 0 : index
    %58 = vector.load %arg10[%c0_33, %c0_34, %c0_35] : memref<3x1x128xf32, #tpu.memory_space<vmem>>, vector<1x1x128xf32>
    %59 = vector.shape_cast %58 : vector<1x1x128xf32> to vector<1x128xf32>
    %60 = vector.broadcast %59 : vector<1x128xf32> to vector<32x128xf32>
    %61 = arith.addf %57, %60 : vector<32x128xf32>
    %cst_36 = arith.constant 0.000000e+00 : f32
    %62 = vector.broadcast %cst_36 : f32 to vector<32x128xf32>
    %63 = arith.maximumf %61, %62 : vector<32x128xf32>
    %64 = arith.truncf %63 : vector<32x128xf32> to vector<32x128xbf16>
    %c0_37 = arith.constant 0 : index
    %c0_38 = arith.constant 0 : index
    %c0_39 = arith.constant 0 : index
    %65 = vector.load %arg11[%c0_37, %c0_38, %c0_39] : memref<3x128x128xbf16, #tpu.memory_space<vmem>>, vector<1x128x128xbf16>
    %66 = vector.shape_cast %65 : vector<1x128x128xbf16> to vector<128x128xbf16>
    %cst_40 = arith.constant dense<0.000000e+00> : vector<32x128xf32>
    %67 = tpu.matmul %64, %66, %cst_40 {dimension_numbers = #tpu.dot_dimension_numbers<[1], [0], [0], [1], [0, 0, 1, 1], [], []>} : vector<32x128xbf16>, vector<128x128xbf16>, vector<32x128xf32> -> vector<32x128xf32>
    %c0_41 = arith.constant 0 : index
    %c0_42 = arith.constant 0 : index
    %c0_43 = arith.constant 0 : index
    %68 = vector.load %arg12[%c0_41, %c0_42, %c0_43] : memref<3x1x128xf32, #tpu.memory_space<vmem>>, vector<1x1x128xf32>
    %69 = vector.shape_cast %68 : vector<1x1x128xf32> to vector<1x128xf32>
    %70 = vector.broadcast %69 : vector<1x128xf32> to vector<32x128xf32>
    %71 = arith.addf %67, %70 : vector<32x128xf32>
    %cst_44 = arith.constant 0.000000e+00 : f32
    %72 = vector.broadcast %cst_44 : f32 to vector<32x128xf32>
    %73 = arith.maximumf %71, %72 : vector<32x128xf32>
    %74 = arith.truncf %73 : vector<32x128xf32> to vector<32x128xbf16>
    %75 = vector.extract_strided_slice %73 {offsets = [0, 0], sizes = [16, 128], strides = [1, 1]} : vector<32x128xf32> to vector<16x128xf32>
    %76 = vector.extract_strided_slice %73 {offsets = [16, 0], sizes = [16, 128], strides = [1, 1]} : vector<32x128xf32> to vector<16x128xf32>
    %77 = tpu.concatenate %75, %76 in 1 : vector<16x128xf32>, vector<16x128xf32> -> vector<16x256xf32>
    %c1 = arith.constant 1 : index
    %78 = memref.load %arg0[%c1] : memref<3xf32, #tpu.memory_space<smem>>
    %c1_45 = arith.constant 1 : index
    %c0_46 = arith.constant 0 : index
    %c0_47 = arith.constant 0 : index
    %79 = vector.load %arg5[%c1_45, %c0_46, %c0_47] : memref<3x128x128xbf16, #tpu.memory_space<vmem>>, vector<1x128x128xbf16>
    %80 = vector.shape_cast %79 : vector<1x128x128xbf16> to vector<128x128xbf16>
    %cst_48 = arith.constant dense<0.000000e+00> : vector<32x128xf32>
    %81 = tpu.matmul %16, %80, %cst_48 {dimension_numbers = #tpu.dot_dimension_numbers<[1], [0], [0], [1], [0, 0, 1, 1], [], []>} : vector<32x128xbf16>, vector<128x128xbf16>, vector<32x128xf32> -> vector<32x128xf32>
    %c1_49 = arith.constant 1 : index
    %c0_50 = arith.constant 0 : index
    %c0_51 = arith.constant 0 : index
    %82 = vector.load %arg6[%c1_49, %c0_50, %c0_51] : memref<3x1x128xf32, #tpu.memory_space<vmem>>, vector<1x1x128xf32>
    %83 = vector.shape_cast %82 : vector<1x1x128xf32> to vector<1x128xf32>
    %84 = vector.broadcast %83 : vector<1x128xf32> to vector<32x128xf32>
    %85 = arith.addf %81, %84 : vector<32x128xf32>
    %86 = tpu.concatenate %85, %85 in 1 : vector<32x128xf32>, vector<32x128xf32> -> vector<32x256xf32>
    %87 = arith.truncf %77 : vector<16x256xf32> to vector<16x256xbf16>
    %cst_52 = arith.constant dense<0.000000e+00> : vector<32x256xf32>
    %88 = tpu.matmul %8, %87, %cst_52 {dimension_numbers = #tpu.dot_dimension_numbers<[1], [0], [0], [1], [0, 0, 1, 1], [], []>} : vector<32x16xbf16>, vector<16x256xbf16>, vector<32x256xf32> -> vector<32x256xf32>
    %89 = arith.addf %88, %86 : vector<32x256xf32>
    %cst_53 = arith.constant 0.000000e+00 : f32
    %90 = vector.broadcast %cst_53 : f32 to vector<32x256xf32>
    %91 = arith.maximumf %89, %90 : vector<32x256xf32>
    %92 = arith.truncf %91 : vector<32x256xf32> to vector<32x256xbf16>
    %cst_54 = arith.constant dense<0.000000e+00> : vector<16x256xf32>
    %93 = tpu.matmul %15, %92, %cst_54 {dimension_numbers = #tpu.dot_dimension_numbers<[1], [0], [0], [1], [0, 0, 1, 1], [], []>} : vector<16x32xbf16>, vector<32x256xbf16>, vector<16x256xf32> -> vector<16x256xf32>
    %94 = vector.broadcast %78 : f32 to vector<16x256xf32>
    %95 = arith.mulf %94, %77 : vector<16x256xf32>
    %96 = arith.addf %93, %95 : vector<16x256xf32>
    %97 = vector.extract_strided_slice %96 {offsets = [0, 0], sizes = [16, 128], strides = [1, 1]} : vector<16x256xf32> to vector<16x128xf32>
    %98 = vector.extract_strided_slice %96 {offsets = [0, 128], sizes = [16, 128], strides = [1, 1]} : vector<16x256xf32> to vector<16x128xf32>
    %99 = tpu.concatenate %97, %98 in 0 : vector<16x128xf32>, vector<16x128xf32> -> vector<32x128xf32>
    %100 = arith.truncf %99 : vector<32x128xf32> to vector<32x128xbf16>
    %c1_55 = arith.constant 1 : index
    %c0_56 = arith.constant 0 : index
    %c0_57 = arith.constant 0 : index
    %101 = vector.load %arg7[%c1_55, %c0_56, %c0_57] : memref<3x128x128xbf16, #tpu.memory_space<vmem>>, vector<1x128x128xbf16>
    %102 = vector.shape_cast %101 : vector<1x128x128xbf16> to vector<128x128xbf16>
    %cst_58 = arith.constant dense<0.000000e+00> : vector<32x128xf32>
    %103 = tpu.matmul %100, %102, %cst_58 {dimension_numbers = #tpu.dot_dimension_numbers<[1], [0], [0], [1], [0, 0, 1, 1], [], []>} : vector<32x128xbf16>, vector<128x128xbf16>, vector<32x128xf32> -> vector<32x128xf32>
    %c1_59 = arith.constant 1 : index
    %c0_60 = arith.constant 0 : index
    %c0_61 = arith.constant 0 : index
    %104 = vector.load %arg8[%c1_59, %c0_60, %c0_61] : memref<3x1x128xf32, #tpu.memory_space<vmem>>, vector<1x1x128xf32>
    %105 = vector.shape_cast %104 : vector<1x1x128xf32> to vector<1x128xf32>
    %106 = vector.broadcast %105 : vector<1x128xf32> to vector<32x128xf32>
    %107 = arith.addf %103, %106 : vector<32x128xf32>
    %c1_62 = arith.constant 1 : index
    %c0_63 = arith.constant 0 : index
    %c0_64 = arith.constant 0 : index
    %108 = vector.load %arg9[%c1_62, %c0_63, %c0_64] : memref<3x1x128xf32, #tpu.memory_space<vmem>>, vector<1x1x128xf32>
    %109 = vector.shape_cast %108 : vector<1x1x128xf32> to vector<1x128xf32>
    %110 = vector.broadcast %109 : vector<1x128xf32> to vector<32x128xf32>
    %111 = arith.mulf %107, %110 : vector<32x128xf32>
    %c1_65 = arith.constant 1 : index
    %c0_66 = arith.constant 0 : index
    %c0_67 = arith.constant 0 : index
    %112 = vector.load %arg10[%c1_65, %c0_66, %c0_67] : memref<3x1x128xf32, #tpu.memory_space<vmem>>, vector<1x1x128xf32>
    %113 = vector.shape_cast %112 : vector<1x1x128xf32> to vector<1x128xf32>
    %114 = vector.broadcast %113 : vector<1x128xf32> to vector<32x128xf32>
    %115 = arith.addf %111, %114 : vector<32x128xf32>
    %cst_68 = arith.constant 0.000000e+00 : f32
    %116 = vector.broadcast %cst_68 : f32 to vector<32x128xf32>
    %117 = arith.maximumf %115, %116 : vector<32x128xf32>
    %118 = arith.truncf %117 : vector<32x128xf32> to vector<32x128xbf16>
    %c1_69 = arith.constant 1 : index
    %c0_70 = arith.constant 0 : index
    %c0_71 = arith.constant 0 : index
    %119 = vector.load %arg11[%c1_69, %c0_70, %c0_71] : memref<3x128x128xbf16, #tpu.memory_space<vmem>>, vector<1x128x128xbf16>
    %120 = vector.shape_cast %119 : vector<1x128x128xbf16> to vector<128x128xbf16>
    %cst_72 = arith.constant dense<0.000000e+00> : vector<32x128xf32>
    %121 = tpu.matmul %118, %120, %cst_72 {dimension_numbers = #tpu.dot_dimension_numbers<[1], [0], [0], [1], [0, 0, 1, 1], [], []>} : vector<32x128xbf16>, vector<128x128xbf16>, vector<32x128xf32> -> vector<32x128xf32>
    %c1_73 = arith.constant 1 : index
    %c0_74 = arith.constant 0 : index
    %c0_75 = arith.constant 0 : index
    %122 = vector.load %arg12[%c1_73, %c0_74, %c0_75] : memref<3x1x128xf32, #tpu.memory_space<vmem>>, vector<1x1x128xf32>
    %123 = vector.shape_cast %122 : vector<1x1x128xf32> to vector<1x128xf32>
    %124 = vector.broadcast %123 : vector<1x128xf32> to vector<32x128xf32>
    %125 = arith.addf %121, %124 : vector<32x128xf32>
    %cst_76 = arith.constant 0.000000e+00 : f32
    %126 = vector.broadcast %cst_76 : f32 to vector<32x128xf32>
    %127 = arith.maximumf %125, %126 : vector<32x128xf32>
    %128 = arith.truncf %127 : vector<32x128xf32> to vector<32x128xbf16>
    %129 = vector.extract_strided_slice %127 {offsets = [0, 0], sizes = [16, 128], strides = [1, 1]} : vector<32x128xf32> to vector<16x128xf32>
    %130 = vector.extract_strided_slice %127 {offsets = [16, 0], sizes = [16, 128], strides = [1, 1]} : vector<32x128xf32> to vector<16x128xf32>
    %131 = tpu.concatenate %129, %130 in 1 : vector<16x128xf32>, vector<16x128xf32> -> vector<16x256xf32>
    %c2 = arith.constant 2 : index
    %132 = memref.load %arg0[%c2] : memref<3xf32, #tpu.memory_space<smem>>
    %c2_77 = arith.constant 2 : index
    %c0_78 = arith.constant 0 : index
    %c0_79 = arith.constant 0 : index
    %133 = vector.load %arg5[%c2_77, %c0_78, %c0_79] : memref<3x128x128xbf16, #tpu.memory_space<vmem>>, vector<1x128x128xbf16>
    %134 = vector.shape_cast %133 : vector<1x128x128xbf16> to vector<128x128xbf16>
    %cst_80 = arith.constant dense<0.000000e+00> : vector<32x128xf32>
    %135 = tpu.matmul %16, %134, %cst_80 {dimension_numbers = #tpu.dot_dimension_numbers<[1], [0], [0], [1], [0, 0, 1, 1], [], []>} : vector<32x128xbf16>, vector<128x128xbf16>, vector<32x128xf32> -> vector<32x128xf32>
    %c2_81 = arith.constant 2 : index
    %c0_82 = arith.constant 0 : index
    %c0_83 = arith.constant 0 : index
    %136 = vector.load %arg6[%c2_81, %c0_82, %c0_83] : memref<3x1x128xf32, #tpu.memory_space<vmem>>, vector<1x1x128xf32>
    %137 = vector.shape_cast %136 : vector<1x1x128xf32> to vector<1x128xf32>
    %138 = vector.broadcast %137 : vector<1x128xf32> to vector<32x128xf32>
    %139 = arith.addf %135, %138 : vector<32x128xf32>
    %140 = tpu.concatenate %139, %139 in 1 : vector<32x128xf32>, vector<32x128xf32> -> vector<32x256xf32>
    %141 = arith.truncf %131 : vector<16x256xf32> to vector<16x256xbf16>
    %cst_84 = arith.constant dense<0.000000e+00> : vector<32x256xf32>
    %142 = tpu.matmul %8, %141, %cst_84 {dimension_numbers = #tpu.dot_dimension_numbers<[1], [0], [0], [1], [0, 0, 1, 1], [], []>} : vector<32x16xbf16>, vector<16x256xbf16>, vector<32x256xf32> -> vector<32x256xf32>
    %143 = arith.addf %142, %140 : vector<32x256xf32>
    %cst_85 = arith.constant 0.000000e+00 : f32
    %144 = vector.broadcast %cst_85 : f32 to vector<32x256xf32>
    %145 = arith.maximumf %143, %144 : vector<32x256xf32>
    %146 = arith.truncf %145 : vector<32x256xf32> to vector<32x256xbf16>
    %cst_86 = arith.constant dense<0.000000e+00> : vector<16x256xf32>
    %147 = tpu.matmul %15, %146, %cst_86 {dimension_numbers = #tpu.dot_dimension_numbers<[1], [0], [0], [1], [0, 0, 1, 1], [], []>} : vector<16x32xbf16>, vector<32x256xbf16>, vector<16x256xf32> -> vector<16x256xf32>
    %148 = vector.broadcast %132 : f32 to vector<16x256xf32>
    %149 = arith.mulf %148, %131 : vector<16x256xf32>
    %150 = arith.addf %147, %149 : vector<16x256xf32>
    %151 = vector.extract_strided_slice %150 {offsets = [0, 0], sizes = [16, 128], strides = [1, 1]} : vector<16x256xf32> to vector<16x128xf32>
    %152 = vector.extract_strided_slice %150 {offsets = [0, 128], sizes = [16, 128], strides = [1, 1]} : vector<16x256xf32> to vector<16x128xf32>
    %153 = tpu.concatenate %151, %152 in 0 : vector<16x128xf32>, vector<16x128xf32> -> vector<32x128xf32>
    %154 = arith.truncf %153 : vector<32x128xf32> to vector<32x128xbf16>
    %c2_87 = arith.constant 2 : index
    %c0_88 = arith.constant 0 : index
    %c0_89 = arith.constant 0 : index
    %155 = vector.load %arg7[%c2_87, %c0_88, %c0_89] : memref<3x128x128xbf16, #tpu.memory_space<vmem>>, vector<1x128x128xbf16>
    %156 = vector.shape_cast %155 : vector<1x128x128xbf16> to vector<128x128xbf16>
    %cst_90 = arith.constant dense<0.000000e+00> : vector<32x128xf32>
    %157 = tpu.matmul %154, %156, %cst_90 {dimension_numbers = #tpu.dot_dimension_numbers<[1], [0], [0], [1], [0, 0, 1, 1], [], []>} : vector<32x128xbf16>, vector<128x128xbf16>, vector<32x128xf32> -> vector<32x128xf32>
    %c2_91 = arith.constant 2 : index
    %c0_92 = arith.constant 0 : index
    %c0_93 = arith.constant 0 : index
    %158 = vector.load %arg8[%c2_91, %c0_92, %c0_93] : memref<3x1x128xf32, #tpu.memory_space<vmem>>, vector<1x1x128xf32>
    %159 = vector.shape_cast %158 : vector<1x1x128xf32> to vector<1x128xf32>
    %160 = vector.broadcast %159 : vector<1x128xf32> to vector<32x128xf32>
    %161 = arith.addf %157, %160 : vector<32x128xf32>
    %c2_94 = arith.constant 2 : index
    %c0_95 = arith.constant 0 : index
    %c0_96 = arith.constant 0 : index
    %162 = vector.load %arg9[%c2_94, %c0_95, %c0_96] : memref<3x1x128xf32, #tpu.memory_space<vmem>>, vector<1x1x128xf32>
    %163 = vector.shape_cast %162 : vector<1x1x128xf32> to vector<1x128xf32>
    %164 = vector.broadcast %163 : vector<1x128xf32> to vector<32x128xf32>
    %165 = arith.mulf %161, %164 : vector<32x128xf32>
    %c2_97 = arith.constant 2 : index
    %c0_98 = arith.constant 0 : index
    %c0_99 = arith.constant 0 : index
    %166 = vector.load %arg10[%c2_97, %c0_98, %c0_99] : memref<3x1x128xf32, #tpu.memory_space<vmem>>, vector<1x1x128xf32>
    %167 = vector.shape_cast %166 : vector<1x1x128xf32> to vector<1x128xf32>
    %168 = vector.broadcast %167 : vector<1x128xf32> to vector<32x128xf32>
    %169 = arith.addf %165, %168 : vector<32x128xf32>
    %cst_100 = arith.constant 0.000000e+00 : f32
    %170 = vector.broadcast %cst_100 : f32 to vector<32x128xf32>
    %171 = arith.maximumf %169, %170 : vector<32x128xf32>
    %172 = arith.truncf %171 : vector<32x128xf32> to vector<32x128xbf16>
    %c2_101 = arith.constant 2 : index
    %c0_102 = arith.constant 0 : index
    %c0_103 = arith.constant 0 : index
    %173 = vector.load %arg11[%c2_101, %c0_102, %c0_103] : memref<3x128x128xbf16, #tpu.memory_space<vmem>>, vector<1x128x128xbf16>
    %174 = vector.shape_cast %173 : vector<1x128x128xbf16> to vector<128x128xbf16>
    %cst_104 = arith.constant dense<0.000000e+00> : vector<32x128xf32>
    %175 = tpu.matmul %172, %174, %cst_104 {dimension_numbers = #tpu.dot_dimension_numbers<[1], [0], [0], [1], [0, 0, 1, 1], [], []>} : vector<32x128xbf16>, vector<128x128xbf16>, vector<32x128xf32> -> vector<32x128xf32>
    %c2_105 = arith.constant 2 : index
    %c0_106 = arith.constant 0 : index
    %c0_107 = arith.constant 0 : index
    %176 = vector.load %arg12[%c2_105, %c0_106, %c0_107] : memref<3x1x128xf32, #tpu.memory_space<vmem>>, vector<1x1x128xf32>
    %177 = vector.shape_cast %176 : vector<1x1x128xf32> to vector<1x128xf32>
    %178 = vector.broadcast %177 : vector<1x128xf32> to vector<32x128xf32>
    %179 = arith.addf %175, %178 : vector<32x128xf32>
    %cst_108 = arith.constant 0.000000e+00 : f32
    %180 = vector.broadcast %cst_108 : f32 to vector<32x128xf32>
    %181 = arith.maximumf %179, %180 : vector<32x128xf32>
    %182 = arith.truncf %181 : vector<32x128xf32> to vector<32x128xbf16>
    %183 = tpu.concatenate %74, %128, %182 in 0 : vector<32x128xbf16>, vector<32x128xbf16>, vector<32x128xbf16> -> vector<96x128xbf16>
    %c0_109 = arith.constant 0 : index
    %c0_110 = arith.constant 0 : index
    %184 = vector.load %arg13[%c0_109, %c0_110] : memref<128x1024xbf16, #tpu.memory_space<vmem>>, vector<128x1024xbf16>
    %cst_111 = arith.constant dense<0.000000e+00> : vector<96x1024xf32>
    %185 = tpu.matmul %183, %184, %cst_111 {dimension_numbers = #tpu.dot_dimension_numbers<[1], [0], [0], [1], [0, 0, 1, 1], [], []>} : vector<96x128xbf16>, vector<128x1024xbf16>, vector<96x1024xf32> -> vector<96x1024xf32>
    %c0_112 = arith.constant 0 : index
    %c0_113 = arith.constant 0 : index
    %c0_114 = arith.constant 0 : index
    %186 = vector.load %arg14[%c0_112, %c0_113, %c0_114] : memref<2x128x512xbf16, #tpu.memory_space<vmem>>, vector<1x128x512xbf16>
    %187 = vector.shape_cast %186 : vector<1x128x512xbf16> to vector<128x512xbf16>
    %c0_115 = arith.constant 0 : index
    %c0_116 = arith.constant 0 : index
    %c0_117 = arith.constant 0 : index
    %188 = vector.load %arg15[%c0_115, %c0_116, %c0_117] : memref<2x1x512xf32, #tpu.memory_space<vmem>>, vector<1x1x512xf32>
    %189 = vector.shape_cast %188 : vector<1x1x512xf32> to vector<1x512xf32>
    %c0_118 = arith.constant 0 : index
    %c0_119 = arith.constant 0 : index
    %c0_120 = arith.constant 0 : index
    %190 = vector.load %arg16[%c0_118, %c0_119, %c0_120] : memref<2x1x128xf32, #tpu.memory_space<vmem>>, vector<1x1x128xf32>
    %191 = vector.shape_cast %190 : vector<1x1x128xf32> to vector<1x128xf32>
    %cst_121 = arith.constant 0.000000e+00 : f32
    %192 = vector.broadcast %cst_121 : f32 to vector<32x128xf32>
    %cst_122 = arith.constant 0.000000e+00 : f32
    %193 = vector.broadcast %cst_122 : f32 to vector<32x128xf32>
    %194 = vector.extract_strided_slice %185 {offsets = [0, 0], sizes = [32, 512], strides = [1, 1]} : vector<96x1024xf32> to vector<32x512xf32>
    %195 = arith.truncf %192 : vector<32x128xf32> to vector<32x128xbf16>
    %cst_123 = arith.constant dense<0.000000e+00> : vector<32x512xf32>
    %196 = tpu.matmul %195, %187, %cst_123 {dimension_numbers = #tpu.dot_dimension_numbers<[1], [0], [0], [1], [0, 0, 1, 1], [], []>} : vector<32x128xbf16>, vector<128x512xbf16>, vector<32x512xf32> -> vector<32x512xf32>
    %197 = arith.addf %194, %196 : vector<32x512xf32>
    %198 = vector.broadcast %189 : vector<1x512xf32> to vector<32x512xf32>
    %199 = arith.addf %197, %198 : vector<32x512xf32>
    %200 = vector.extract_strided_slice %199 {offsets = [0, 0], sizes = [32, 128], strides = [1, 1]} : vector<32x512xf32> to vector<32x128xf32>
    %201 = arith.negf %200 : vector<32x128xf32>
    %202 = math.exp %201 : vector<32x128xf32>
    %cst_124 = arith.constant 1.000000e+00 : f32
    %203 = vector.broadcast %cst_124 : f32 to vector<32x128xf32>
    %204 = arith.addf %203, %202 : vector<32x128xf32>
    %205 = arith.divf %203, %204 : vector<32x128xf32>
    %206 = vector.extract_strided_slice %199 {offsets = [0, 128], sizes = [32, 128], strides = [1, 1]} : vector<32x512xf32> to vector<32x128xf32>
    %207 = arith.negf %206 : vector<32x128xf32>
    %208 = math.exp %207 : vector<32x128xf32>
    %cst_125 = arith.constant 1.000000e+00 : f32
    %209 = vector.broadcast %cst_125 : f32 to vector<32x128xf32>
    %210 = arith.addf %209, %208 : vector<32x128xf32>
    %211 = arith.divf %209, %210 : vector<32x128xf32>
    %212 = vector.extract_strided_slice %199 {offsets = [0, 256], sizes = [32, 128], strides = [1, 1]} : vector<32x512xf32> to vector<32x128xf32>
    %213 = math.tanh %212 : vector<32x128xf32>
    %214 = vector.extract_strided_slice %199 {offsets = [0, 384], sizes = [32, 128], strides = [1, 1]} : vector<32x512xf32> to vector<32x128xf32>
    %215 = arith.negf %214 : vector<32x128xf32>
    %216 = math.exp %215 : vector<32x128xf32>
    %cst_126 = arith.constant 1.000000e+00 : f32
    %217 = vector.broadcast %cst_126 : f32 to vector<32x128xf32>
    %218 = arith.addf %217, %216 : vector<32x128xf32>
    %219 = arith.divf %217, %218 : vector<32x128xf32>
    %220 = arith.mulf %211, %193 : vector<32x128xf32>
    %221 = arith.mulf %205, %213 : vector<32x128xf32>
    %222 = arith.addf %220, %221 : vector<32x128xf32>
    %223 = math.tanh %222 : vector<32x128xf32>
    %224 = arith.mulf %219, %223 : vector<32x128xf32>
    %225 = vector.broadcast %191 : vector<1x128xf32> to vector<32x128xf32>
    %226 = arith.mulf %224, %225 : vector<32x128xf32>
    %cst_127 = arith.constant dense<0.000000e+00> : vector<32xf32>
    %227 = vector.multi_reduction <add>, %226, %cst_127 [1] : vector<32x128xf32> to vector<32xf32>
    %228 = vector.shape_cast %227 : vector<32xf32> to vector<32x1xf32>
    %229 = vector.extract_strided_slice %185 {offsets = [32, 0], sizes = [32, 512], strides = [1, 1]} : vector<96x1024xf32> to vector<32x512xf32>
    %230 = arith.truncf %224 : vector<32x128xf32> to vector<32x128xbf16>
    %cst_128 = arith.constant dense<0.000000e+00> : vector<32x512xf32>
    %231 = tpu.matmul %230, %187, %cst_128 {dimension_numbers = #tpu.dot_dimension_numbers<[1], [0], [0], [1], [0, 0, 1, 1], [], []>} : vector<32x128xbf16>, vector<128x512xbf16>, vector<32x512xf32> -> vector<32x512xf32>
    %232 = arith.addf %229, %231 : vector<32x512xf32>
    %233 = vector.broadcast %189 : vector<1x512xf32> to vector<32x512xf32>
    %234 = arith.addf %232, %233 : vector<32x512xf32>
    %235 = vector.extract_strided_slice %234 {offsets = [0, 0], sizes = [32, 128], strides = [1, 1]} : vector<32x512xf32> to vector<32x128xf32>
    %236 = arith.negf %235 : vector<32x128xf32>
    %237 = math.exp %236 : vector<32x128xf32>
    %cst_129 = arith.constant 1.000000e+00 : f32
    %238 = vector.broadcast %cst_129 : f32 to vector<32x128xf32>
    %239 = arith.addf %238, %237 : vector<32x128xf32>
    %240 = arith.divf %238, %239 : vector<32x128xf32>
    %241 = vector.extract_strided_slice %234 {offsets = [0, 128], sizes = [32, 128], strides = [1, 1]} : vector<32x512xf32> to vector<32x128xf32>
    %242 = arith.negf %241 : vector<32x128xf32>
    %243 = math.exp %242 : vector<32x128xf32>
    %cst_130 = arith.constant 1.000000e+00 : f32
    %244 = vector.broadcast %cst_130 : f32 to vector<32x128xf32>
    %245 = arith.addf %244, %243 : vector<32x128xf32>
    %246 = arith.divf %244, %245 : vector<32x128xf32>
    %247 = vector.extract_strided_slice %234 {offsets = [0, 256], sizes = [32, 128], strides = [1, 1]} : vector<32x512xf32> to vector<32x128xf32>
    %248 = math.tanh %247 : vector<32x128xf32>
    %249 = vector.extract_strided_slice %234 {offsets = [0, 384], sizes = [32, 128], strides = [1, 1]} : vector<32x512xf32> to vector<32x128xf32>
    %250 = arith.negf %249 : vector<32x128xf32>
    %251 = math.exp %250 : vector<32x128xf32>
    %cst_131 = arith.constant 1.000000e+00 : f32
    %252 = vector.broadcast %cst_131 : f32 to vector<32x128xf32>
    %253 = arith.addf %252, %251 : vector<32x128xf32>
    %254 = arith.divf %252, %253 : vector<32x128xf32>
    %255 = arith.mulf %246, %222 : vector<32x128xf32>
    %256 = arith.mulf %240, %248 : vector<32x128xf32>
    %257 = arith.addf %255, %256 : vector<32x128xf32>
    %258 = math.tanh %257 : vector<32x128xf32>
    %259 = arith.mulf %254, %258 : vector<32x128xf32>
    %260 = vector.broadcast %191 : vector<1x128xf32> to vector<32x128xf32>
    %261 = arith.mulf %259, %260 : vector<32x128xf32>
    %cst_132 = arith.constant dense<0.000000e+00> : vector<32xf32>
    %262 = vector.multi_reduction <add>, %261, %cst_132 [1] : vector<32x128xf32> to vector<32xf32>
    %263 = vector.shape_cast %262 : vector<32xf32> to vector<32x1xf32>
    %264 = vector.extract_strided_slice %185 {offsets = [64, 0], sizes = [32, 512], strides = [1, 1]} : vector<96x1024xf32> to vector<32x512xf32>
    %265 = arith.truncf %259 : vector<32x128xf32> to vector<32x128xbf16>
    %cst_133 = arith.constant dense<0.000000e+00> : vector<32x512xf32>
    %266 = tpu.matmul %265, %187, %cst_133 {dimension_numbers = #tpu.dot_dimension_numbers<[1], [0], [0], [1], [0, 0, 1, 1], [], []>} : vector<32x128xbf16>, vector<128x512xbf16>, vector<32x512xf32> -> vector<32x512xf32>
    %267 = arith.addf %264, %266 : vector<32x512xf32>
    %268 = vector.broadcast %189 : vector<1x512xf32> to vector<32x512xf32>
    %269 = arith.addf %267, %268 : vector<32x512xf32>
    %270 = vector.extract_strided_slice %269 {offsets = [0, 0], sizes = [32, 128], strides = [1, 1]} : vector<32x512xf32> to vector<32x128xf32>
    %271 = arith.negf %270 : vector<32x128xf32>
    %272 = math.exp %271 : vector<32x128xf32>
    %cst_134 = arith.constant 1.000000e+00 : f32
    %273 = vector.broadcast %cst_134 : f32 to vector<32x128xf32>
    %274 = arith.addf %273, %272 : vector<32x128xf32>
    %275 = arith.divf %273, %274 : vector<32x128xf32>
    %276 = vector.extract_strided_slice %269 {offsets = [0, 128], sizes = [32, 128], strides = [1, 1]} : vector<32x512xf32> to vector<32x128xf32>
    %277 = arith.negf %276 : vector<32x128xf32>
    %278 = math.exp %277 : vector<32x128xf32>
    %cst_135 = arith.constant 1.000000e+00 : f32
    %279 = vector.broadcast %cst_135 : f32 to vector<32x128xf32>
    %280 = arith.addf %279, %278 : vector<32x128xf32>
    %281 = arith.divf %279, %280 : vector<32x128xf32>
    %282 = vector.extract_strided_slice %269 {offsets = [0, 256], sizes = [32, 128], strides = [1, 1]} : vector<32x512xf32> to vector<32x128xf32>
    %283 = math.tanh %282 : vector<32x128xf32>
    %284 = vector.extract_strided_slice %269 {offsets = [0, 384], sizes = [32, 128], strides = [1, 1]} : vector<32x512xf32> to vector<32x128xf32>
    %285 = arith.negf %284 : vector<32x128xf32>
    %286 = math.exp %285 : vector<32x128xf32>
    %cst_136 = arith.constant 1.000000e+00 : f32
    %287 = vector.broadcast %cst_136 : f32 to vector<32x128xf32>
    %288 = arith.addf %287, %286 : vector<32x128xf32>
    %289 = arith.divf %287, %288 : vector<32x128xf32>
    %290 = arith.mulf %281, %257 : vector<32x128xf32>
    %291 = arith.mulf %275, %283 : vector<32x128xf32>
    %292 = arith.addf %290, %291 : vector<32x128xf32>
    %293 = math.tanh %292 : vector<32x128xf32>
    %294 = arith.mulf %289, %293 : vector<32x128xf32>
    %295 = vector.broadcast %191 : vector<1x128xf32> to vector<32x128xf32>
    %296 = arith.mulf %294, %295 : vector<32x128xf32>
    %cst_137 = arith.constant dense<0.000000e+00> : vector<32xf32>
    %297 = vector.multi_reduction <add>, %296, %cst_137 [1] : vector<32x128xf32> to vector<32xf32>
    %298 = vector.shape_cast %297 : vector<32xf32> to vector<32x1xf32>
    %c1_138 = arith.constant 1 : index
    %c0_139 = arith.constant 0 : index
    %c0_140 = arith.constant 0 : index
    %299 = vector.load %arg14[%c1_138, %c0_139, %c0_140] : memref<2x128x512xbf16, #tpu.memory_space<vmem>>, vector<1x128x512xbf16>
    %300 = vector.shape_cast %299 : vector<1x128x512xbf16> to vector<128x512xbf16>
    %c1_141 = arith.constant 1 : index
    %c0_142 = arith.constant 0 : index
    %c0_143 = arith.constant 0 : index
    %301 = vector.load %arg15[%c1_141, %c0_142, %c0_143] : memref<2x1x512xf32, #tpu.memory_space<vmem>>, vector<1x1x512xf32>
    %302 = vector.shape_cast %301 : vector<1x1x512xf32> to vector<1x512xf32>
    %c1_144 = arith.constant 1 : index
    %c0_145 = arith.constant 0 : index
    %c0_146 = arith.constant 0 : index
    %303 = vector.load %arg16[%c1_144, %c0_145, %c0_146] : memref<2x1x128xf32, #tpu.memory_space<vmem>>, vector<1x1x128xf32>
    %304 = vector.shape_cast %303 : vector<1x1x128xf32> to vector<1x128xf32>
    %cst_147 = arith.constant 0.000000e+00 : f32
    %305 = vector.broadcast %cst_147 : f32 to vector<32x128xf32>
    %cst_148 = arith.constant 0.000000e+00 : f32
    %306 = vector.broadcast %cst_148 : f32 to vector<32x128xf32>
    %307 = vector.extract_strided_slice %185 {offsets = [64, 512], sizes = [32, 512], strides = [1, 1]} : vector<96x1024xf32> to vector<32x512xf32>
    %308 = arith.truncf %305 : vector<32x128xf32> to vector<32x128xbf16>
    %cst_149 = arith.constant dense<0.000000e+00> : vector<32x512xf32>
    %309 = tpu.matmul %308, %300, %cst_149 {dimension_numbers = #tpu.dot_dimension_numbers<[1], [0], [0], [1], [0, 0, 1, 1], [], []>} : vector<32x128xbf16>, vector<128x512xbf16>, vector<32x512xf32> -> vector<32x512xf32>
    %310 = arith.addf %307, %309 : vector<32x512xf32>
    %311 = vector.broadcast %302 : vector<1x512xf32> to vector<32x512xf32>
    %312 = arith.addf %310, %311 : vector<32x512xf32>
    %313 = vector.extract_strided_slice %312 {offsets = [0, 0], sizes = [32, 128], strides = [1, 1]} : vector<32x512xf32> to vector<32x128xf32>
    %314 = arith.negf %313 : vector<32x128xf32>
    %315 = math.exp %314 : vector<32x128xf32>
    %cst_150 = arith.constant 1.000000e+00 : f32
    %316 = vector.broadcast %cst_150 : f32 to vector<32x128xf32>
    %317 = arith.addf %316, %315 : vector<32x128xf32>
    %318 = arith.divf %316, %317 : vector<32x128xf32>
    %319 = vector.extract_strided_slice %312 {offsets = [0, 128], sizes = [32, 128], strides = [1, 1]} : vector<32x512xf32> to vector<32x128xf32>
    %320 = arith.negf %319 : vector<32x128xf32>
    %321 = math.exp %320 : vector<32x128xf32>
    %cst_151 = arith.constant 1.000000e+00 : f32
    %322 = vector.broadcast %cst_151 : f32 to vector<32x128xf32>
    %323 = arith.addf %322, %321 : vector<32x128xf32>
    %324 = arith.divf %322, %323 : vector<32x128xf32>
    %325 = vector.extract_strided_slice %312 {offsets = [0, 256], sizes = [32, 128], strides = [1, 1]} : vector<32x512xf32> to vector<32x128xf32>
    %326 = math.tanh %325 : vector<32x128xf32>
    %327 = vector.extract_strided_slice %312 {offsets = [0, 384], sizes = [32, 128], strides = [1, 1]} : vector<32x512xf32> to vector<32x128xf32>
    %328 = arith.negf %327 : vector<32x128xf32>
    %329 = math.exp %328 : vector<32x128xf32>
    %cst_152 = arith.constant 1.000000e+00 : f32
    %330 = vector.broadcast %cst_152 : f32 to vector<32x128xf32>
    %331 = arith.addf %330, %329 : vector<32x128xf32>
    %332 = arith.divf %330, %331 : vector<32x128xf32>
    %333 = arith.mulf %324, %306 : vector<32x128xf32>
    %334 = arith.mulf %318, %326 : vector<32x128xf32>
    %335 = arith.addf %333, %334 : vector<32x128xf32>
    %336 = math.tanh %335 : vector<32x128xf32>
    %337 = arith.mulf %332, %336 : vector<32x128xf32>
    %338 = vector.broadcast %304 : vector<1x128xf32> to vector<32x128xf32>
    %339 = arith.mulf %337, %338 : vector<32x128xf32>
    %cst_153 = arith.constant dense<0.000000e+00> : vector<32xf32>
    %340 = vector.multi_reduction <add>, %339, %cst_153 [1] : vector<32x128xf32> to vector<32xf32>
    %341 = vector.shape_cast %340 : vector<32xf32> to vector<32x1xf32>
    %342 = vector.extract_strided_slice %185 {offsets = [32, 512], sizes = [32, 512], strides = [1, 1]} : vector<96x1024xf32> to vector<32x512xf32>
    %343 = arith.truncf %337 : vector<32x128xf32> to vector<32x128xbf16>
    %cst_154 = arith.constant dense<0.000000e+00> : vector<32x512xf32>
    %344 = tpu.matmul %343, %300, %cst_154 {dimension_numbers = #tpu.dot_dimension_numbers<[1], [0], [0], [1], [0, 0, 1, 1], [], []>} : vector<32x128xbf16>, vector<128x512xbf16>, vector<32x512xf32> -> vector<32x512xf32>
    %345 = arith.addf %342, %344 : vector<32x512xf32>
    %346 = vector.broadcast %302 : vector<1x512xf32> to vector<32x512xf32>
    %347 = arith.addf %345, %346 : vector<32x512xf32>
    %348 = vector.extract_strided_slice %347 {offsets = [0, 0], sizes = [32, 128], strides = [1, 1]} : vector<32x512xf32> to vector<32x128xf32>
    %349 = arith.negf %348 : vector<32x128xf32>
    %350 = math.exp %349 : vector<32x128xf32>
    %cst_155 = arith.constant 1.000000e+00 : f32
    %351 = vector.broadcast %cst_155 : f32 to vector<32x128xf32>
    %352 = arith.addf %351, %350 : vector<32x128xf32>
    %353 = arith.divf %351, %352 : vector<32x128xf32>
    %354 = vector.extract_strided_slice %347 {offsets = [0, 128], sizes = [32, 128], strides = [1, 1]} : vector<32x512xf32> to vector<32x128xf32>
    %355 = arith.negf %354 : vector<32x128xf32>
    %356 = math.exp %355 : vector<32x128xf32>
    %cst_156 = arith.constant 1.000000e+00 : f32
    %357 = vector.broadcast %cst_156 : f32 to vector<32x128xf32>
    %358 = arith.addf %357, %356 : vector<32x128xf32>
    %359 = arith.divf %357, %358 : vector<32x128xf32>
    %360 = vector.extract_strided_slice %347 {offsets = [0, 256], sizes = [32, 128], strides = [1, 1]} : vector<32x512xf32> to vector<32x128xf32>
    %361 = math.tanh %360 : vector<32x128xf32>
    %362 = vector.extract_strided_slice %347 {offsets = [0, 384], sizes = [32, 128], strides = [1, 1]} : vector<32x512xf32> to vector<32x128xf32>
    %363 = arith.negf %362 : vector<32x128xf32>
    %364 = math.exp %363 : vector<32x128xf32>
    %cst_157 = arith.constant 1.000000e+00 : f32
    %365 = vector.broadcast %cst_157 : f32 to vector<32x128xf32>
    %366 = arith.addf %365, %364 : vector<32x128xf32>
    %367 = arith.divf %365, %366 : vector<32x128xf32>
    %368 = arith.mulf %359, %335 : vector<32x128xf32>
    %369 = arith.mulf %353, %361 : vector<32x128xf32>
    %370 = arith.addf %368, %369 : vector<32x128xf32>
    %371 = math.tanh %370 : vector<32x128xf32>
    %372 = arith.mulf %367, %371 : vector<32x128xf32>
    %373 = vector.broadcast %304 : vector<1x128xf32> to vector<32x128xf32>
    %374 = arith.mulf %372, %373 : vector<32x128xf32>
    %cst_158 = arith.constant dense<0.000000e+00> : vector<32xf32>
    %375 = vector.multi_reduction <add>, %374, %cst_158 [1] : vector<32x128xf32> to vector<32xf32>
    %376 = vector.shape_cast %375 : vector<32xf32> to vector<32x1xf32>
    %377 = vector.extract_strided_slice %185 {offsets = [0, 512], sizes = [32, 512], strides = [1, 1]} : vector<96x1024xf32> to vector<32x512xf32>
    %378 = arith.truncf %372 : vector<32x128xf32> to vector<32x128xbf16>
    %cst_159 = arith.constant dense<0.000000e+00> : vector<32x512xf32>
    %379 = tpu.matmul %378, %300, %cst_159 {dimension_numbers = #tpu.dot_dimension_numbers<[1], [0], [0], [1], [0, 0, 1, 1], [], []>} : vector<32x128xbf16>, vector<128x512xbf16>, vector<32x512xf32> -> vector<32x512xf32>
    %380 = arith.addf %377, %379 : vector<32x512xf32>
    %381 = vector.broadcast %302 : vector<1x512xf32> to vector<32x512xf32>
    %382 = arith.addf %380, %381 : vector<32x512xf32>
    %383 = vector.extract_strided_slice %382 {offsets = [0, 0], sizes = [32, 128], strides = [1, 1]} : vector<32x512xf32> to vector<32x128xf32>
    %384 = arith.negf %383 : vector<32x128xf32>
    %385 = math.exp %384 : vector<32x128xf32>
    %cst_160 = arith.constant 1.000000e+00 : f32
    %386 = vector.broadcast %cst_160 : f32 to vector<32x128xf32>
    %387 = arith.addf %386, %385 : vector<32x128xf32>
    %388 = arith.divf %386, %387 : vector<32x128xf32>
    %389 = vector.extract_strided_slice %382 {offsets = [0, 128], sizes = [32, 128], strides = [1, 1]} : vector<32x512xf32> to vector<32x128xf32>
    %390 = arith.negf %389 : vector<32x128xf32>
    %391 = math.exp %390 : vector<32x128xf32>
    %cst_161 = arith.constant 1.000000e+00 : f32
    %392 = vector.broadcast %cst_161 : f32 to vector<32x128xf32>
    %393 = arith.addf %392, %391 : vector<32x128xf32>
    %394 = arith.divf %392, %393 : vector<32x128xf32>
    %395 = vector.extract_strided_slice %382 {offsets = [0, 256], sizes = [32, 128], strides = [1, 1]} : vector<32x512xf32> to vector<32x128xf32>
    %396 = math.tanh %395 : vector<32x128xf32>
    %397 = vector.extract_strided_slice %382 {offsets = [0, 384], sizes = [32, 128], strides = [1, 1]} : vector<32x512xf32> to vector<32x128xf32>
    %398 = arith.negf %397 : vector<32x128xf32>
    %399 = math.exp %398 : vector<32x128xf32>
    %cst_162 = arith.constant 1.000000e+00 : f32
    %400 = vector.broadcast %cst_162 : f32 to vector<32x128xf32>
    %401 = arith.addf %400, %399 : vector<32x128xf32>
    %402 = arith.divf %400, %401 : vector<32x128xf32>
    %403 = arith.mulf %394, %370 : vector<32x128xf32>
    %404 = arith.mulf %388, %396 : vector<32x128xf32>
    %405 = arith.addf %403, %404 : vector<32x128xf32>
    %406 = math.tanh %405 : vector<32x128xf32>
    %407 = arith.mulf %402, %406 : vector<32x128xf32>
    %408 = vector.broadcast %304 : vector<1x128xf32> to vector<32x128xf32>
    %409 = arith.mulf %407, %408 : vector<32x128xf32>
    %cst_163 = arith.constant dense<0.000000e+00> : vector<32xf32>
    %410 = vector.multi_reduction <add>, %409, %cst_163 [1] : vector<32x128xf32> to vector<32xf32>
    %411 = vector.shape_cast %410 : vector<32xf32> to vector<32x1xf32>
    %c0_164 = arith.constant 0 : index
    %c0_165 = arith.constant 0 : index
    %412 = vector.load %arg17[%c0_164, %c0_165] : memref<1x1xf32, #tpu.memory_space<vmem>>, vector<1x1xf32>
    %413 = arith.addf %228, %411 : vector<32x1xf32>
    %414 = vector.broadcast %412 : vector<1x1xf32> to vector<32x1xf32>
    %415 = arith.addf %413, %414 : vector<32x1xf32>
    %416 = arith.addf %263, %376 : vector<32x1xf32>
    %417 = vector.broadcast %412 : vector<1x1xf32> to vector<32x1xf32>
    %418 = arith.addf %416, %417 : vector<32x1xf32>
    %419 = arith.addf %298, %341 : vector<32x1xf32>
    %420 = vector.broadcast %412 : vector<1x1xf32> to vector<32x1xf32>
    %421 = arith.addf %419, %420 : vector<32x1xf32>
    %422 = arith.maximumf %415, %418 : vector<32x1xf32>
    %423 = arith.maximumf %422, %421 : vector<32x1xf32>
    %424 = arith.subf %415, %423 : vector<32x1xf32>
    %425 = math.exp %424 : vector<32x1xf32>
    %426 = arith.subf %418, %423 : vector<32x1xf32>
    %427 = math.exp %426 : vector<32x1xf32>
    %428 = arith.subf %421, %423 : vector<32x1xf32>
    %429 = math.exp %428 : vector<32x1xf32>
    %430 = arith.addf %425, %427 : vector<32x1xf32>
    %431 = arith.addf %430, %429 : vector<32x1xf32>
    %432 = arith.extf %74 : vector<32x128xbf16> to vector<32x128xf32>
    %433 = vector.broadcast %425 : vector<32x1xf32> to vector<32x128xf32>
    %434 = arith.mulf %433, %432 : vector<32x128xf32>
    %435 = arith.extf %128 : vector<32x128xbf16> to vector<32x128xf32>
    %436 = vector.broadcast %427 : vector<32x1xf32> to vector<32x128xf32>
    %437 = arith.mulf %436, %435 : vector<32x128xf32>
    %438 = arith.addf %434, %437 : vector<32x128xf32>
    %439 = arith.extf %182 : vector<32x128xbf16> to vector<32x128xf32>
    %440 = vector.broadcast %429 : vector<32x1xf32> to vector<32x128xf32>
    %441 = arith.mulf %440, %439 : vector<32x128xf32>
    %442 = arith.addf %438, %441 : vector<32x128xf32>
    %443 = vector.broadcast %431 : vector<32x1xf32> to vector<32x128xf32>
    %444 = arith.divf %442, %443 : vector<32x128xf32>
    %445 = arith.truncf %444 : vector<32x128xf32> to vector<32x128xbf16>
    %c0_166 = arith.constant 0 : index
    %c0_167 = arith.constant 0 : index
    %446 = vector.load %arg18[%c0_166, %c0_167] : memref<128x128xbf16, #tpu.memory_space<vmem>>, vector<128x128xbf16>
    %cst_168 = arith.constant dense<0.000000e+00> : vector<32x128xf32>
    %447 = tpu.matmul %445, %446, %cst_168 {dimension_numbers = #tpu.dot_dimension_numbers<[1], [0], [0], [1], [0, 0, 1, 1], [], []>} : vector<32x128xbf16>, vector<128x128xbf16>, vector<32x128xf32> -> vector<32x128xf32>
    %c0_169 = arith.constant 0 : index
    %c0_170 = arith.constant 0 : index
    %448 = vector.load %arg19[%c0_169, %c0_170] : memref<1x128xf32, #tpu.memory_space<vmem>>, vector<1x128xf32>
    %449 = vector.broadcast %448 : vector<1x128xf32> to vector<32x128xf32>
    %450 = arith.addf %447, %449 : vector<32x128xf32>
    %451 = vector.extract_strided_slice %450 {offsets = [0, 0], sizes = [16, 128], strides = [1, 1]} : vector<32x128xf32> to vector<16x128xf32>
    %452 = vector.extract_strided_slice %450 {offsets = [16, 0], sizes = [16, 128], strides = [1, 1]} : vector<32x128xf32> to vector<16x128xf32>
    %453 = arith.addf %451, %452 : vector<16x128xf32>
    %454 = arith.truncf %453 : vector<16x128xf32> to vector<16x128xbf16>
    %c0_171 = arith.constant 0 : index
    %c0_172 = arith.constant 0 : index
    %455 = vector.load %arg20[%c0_171, %c0_172] : memref<128x128xbf16, #tpu.memory_space<vmem>>, vector<128x128xbf16>
    %cst_173 = arith.constant dense<0.000000e+00> : vector<16x128xf32>
    %456 = tpu.matmul %454, %455, %cst_173 {dimension_numbers = #tpu.dot_dimension_numbers<[1], [0], [0], [1], [0, 0, 1, 1], [], []>} : vector<16x128xbf16>, vector<128x128xbf16>, vector<16x128xf32> -> vector<16x128xf32>
    %c0_174 = arith.constant 0 : index
    %c0_175 = arith.constant 0 : index
    %457 = vector.load %arg21[%c0_174, %c0_175] : memref<1x128xf32, #tpu.memory_space<vmem>>, vector<1x128xf32>
    %458 = vector.broadcast %457 : vector<1x128xf32> to vector<16x128xf32>
    %459 = arith.addf %456, %458 : vector<16x128xf32>
    %c0_176 = arith.constant 0 : index
    %c0_177 = arith.constant 0 : index
    %460 = vector.load %arg22[%c0_176, %c0_177] : memref<1x128xf32, #tpu.memory_space<vmem>>, vector<1x128xf32>
    %461 = vector.broadcast %460 : vector<1x128xf32> to vector<16x128xf32>
    %462 = arith.mulf %459, %461 : vector<16x128xf32>
    %c0_178 = arith.constant 0 : index
    %c0_179 = arith.constant 0 : index
    %463 = vector.load %arg23[%c0_178, %c0_179] : memref<1x128xf32, #tpu.memory_space<vmem>>, vector<1x128xf32>
    %464 = vector.broadcast %463 : vector<1x128xf32> to vector<16x128xf32>
    %465 = arith.addf %462, %464 : vector<16x128xf32>
    %cst_180 = arith.constant 0.000000e+00 : f32
    %466 = vector.broadcast %cst_180 : f32 to vector<16x128xf32>
    %467 = arith.maximumf %465, %466 : vector<16x128xf32>
    %468 = arith.truncf %467 : vector<16x128xf32> to vector<16x128xbf16>
    %c0_181 = arith.constant 0 : index
    %c0_182 = arith.constant 0 : index
    %469 = vector.load %arg24[%c0_181, %c0_182] : memref<128x128xbf16, #tpu.memory_space<vmem>>, vector<128x128xbf16>
    %cst_183 = arith.constant dense<0.000000e+00> : vector<16x128xf32>
    %470 = tpu.matmul %468, %469, %cst_183 {dimension_numbers = #tpu.dot_dimension_numbers<[1], [0], [0], [1], [0, 0, 1, 1], [], []>} : vector<16x128xbf16>, vector<128x128xbf16>, vector<16x128xf32> -> vector<16x128xf32>
    %c0_184 = arith.constant 0 : index
    %c0_185 = arith.constant 0 : index
    %471 = vector.load %arg25[%c0_184, %c0_185] : memref<1x128xf32, #tpu.memory_space<vmem>>, vector<1x128xf32>
    %472 = vector.broadcast %471 : vector<1x128xf32> to vector<16x128xf32>
    %473 = arith.addf %470, %472 : vector<16x128xf32>
    %c0_186 = arith.constant 0 : index
    %c0_187 = arith.constant 0 : index
    %474 = vector.load %arg26[%c0_186, %c0_187] : memref<16x128xf32, #tpu.memory_space<vmem>>, vector<16x128xf32>
    tpu.vector_store %arg26[%c0_186, %c0_187], %473 {strides = array<i32>} : memref<16x128xf32, #tpu.memory_space<vmem>>, vector<16x128xf32>,
    return
  }
}

</mosaic_0001>

<llo_original>
// kernel: tpu_custom_call.1
$region0: #{tpu_custom_call.1}
  #allocation0 [shape = 'u32[]', space=smem, size = 0x4, offset = 0x4, fixed_abs, tag = 'smem constant byte address 0x4 - core index']
  #allocation1 [shape = 'u32[144,128]{1,0:T(1,128)}', space=vmem, size = 0x12000, scoped, tag = 'internal scratch']
  #allocation2 [shape = 'f32[1,1]{1,0:T(1,128)S(1)}', space=vmem, size = 0x200, scoped, tag = 'scoped memory for tpu_custom_call.1']
  %s0 = inlined_call_operand.hbm [shape: f32[3], index: 0, kind: input, shape index: {}]
  %s1 = inlined_call_operand.vmem [shape: s32[32,1], index: 1, kind: input, shape index: {}]
  %s2 = inlined_call_operand.hbm [shape: s32[1,32], index: 2, kind: input, shape index: {}]
  %s3 = inlined_call_operand.vmem [shape: f32[16,128], index: 3, kind: input, shape index: {}]
  %s4 = inlined_call_operand.vmem [shape: bf16[32,128], index: 4, kind: input, shape index: {}]
  %s5 = inlined_call_operand.hbm [shape: bf16[3,128,128], index: 5, kind: input, shape index: {}]
  %s6 = inlined_call_operand.vmem [shape: f32[3,1,128], index: 6, kind: input, shape index: {}]
  %s7 = inlined_call_operand.hbm [shape: bf16[3,128,128], index: 7, kind: input, shape index: {}]
  %s8 = inlined_call_operand.hbm [shape: f32[3,1,128], index: 8, kind: input, shape index: {}]
  %s9 = inlined_call_operand.hbm [shape: f32[3,1,128], index: 9, kind: input, shape index: {}]
  %s10 = inlined_call_operand.hbm [shape: f32[3,1,128], index: 10, kind: input, shape index: {}]
  %s11 = inlined_call_operand.hbm [shape: bf16[3,128,128], index: 11, kind: input, shape index: {}]
  %s12 = inlined_call_operand.hbm [shape: f32[3,1,128], index: 12, kind: input, shape index: {}]
  %s13 = inlined_call_operand.hbm [shape: bf16[128,1024], index: 13, kind: input, shape index: {}]
  %s14 = inlined_call_operand.hbm [shape: bf16[2,128,512], index: 14, kind: input, shape index: {}]
  %s15 = inlined_call_operand.hbm [shape: f32[2,1,512], index: 15, kind: input, shape index: {}]
  %s16 = inlined_call_operand.vmem [shape: f32[2,1,128], index: 16, kind: input, shape index: {}]
  %s17 = inlined_call_operand.<no memory space> [shape: f32[1,1], index: 17, kind: input, shape index: {}]
  %s18 = inlined_call_operand.vmem [shape: bf16[128,128], index: 18, kind: input, shape index: {}]
  %s19 = inlined_call_operand.vmem [shape: f32[1,128], index: 19, kind: input, shape index: {}]
  %s20 = inlined_call_operand.hbm [shape: bf16[128,128], index: 20, kind: input, shape index: {}]
  %s21 = inlined_call_operand.vmem [shape: f32[1,128], index: 21, kind: input, shape index: {}]
  %s22 = inlined_call_operand.vmem [shape: f32[1,128], index: 22, kind: input, shape index: {}]
  %s23 = inlined_call_operand.vmem [shape: f32[1,128], index: 23, kind: input, shape index: {}]
  %s24 = inlined_call_operand.hbm [shape: bf16[128,128], index: 24, kind: input, shape index: {}]
  %s25 = inlined_call_operand.vmem [shape: f32[1,128], index: 25, kind: input, shape index: {}]
  %s26 = inlined_call_operand.hbm [shape: f32[16,128], index: 26, kind: output, shape index: {}]
  %s27 = sld [smem:[#allocation0]]
  $region170: #{tpu_custom_call.1} parent=0
    _
  %s29 = ssub.s32 1, %s27
  %s30 = scalar_select 0, %s29, %s27
  %v31 = vstv %s17
  %32 = vst [vmem:[#allocation2] sm:$0x1] %v31
  $region1: #{tpu_custom_call.1} parent=0
    #allocation3 [shape = 'u8[512]{0}', space=smem, size = 0x200, scoped, tag = 'input window, operand 0, single buffered']
    #allocation4 [shape = 's32[1]{0}', space=sflag, size = 0x4, scoped, tag = 'scoped memory for tpu_custom_call.1']
    #allocation5 [shape = 's32[1]{0}', space=sflag, size = 0x4, scoped, tag = 'scoped memory for tpu_custom_call.1']
    #allocation6 [shape = 's32[1]{0}', space=sflag, size = 0x4, scoped, tag = 'scoped memory for tpu_custom_call.1']
    #allocation7 [shape = 'u8[512]{0}', space=vmem, size = 0x400, scoped, tag = 'input window, operand 2, single buffered']
    #allocation8 [shape = 'u8[98304]{0}', space=vmem, size = 0x18000, scoped, tag = 'input window, operand 5, single buffered']
    #allocation9 [shape = 's32[1]{0}', space=sflag, size = 0x4, scoped, tag = 'scoped memory for tpu_custom_call.1']
    #allocation10 [shape = 'u8[98304]{0}', space=vmem, size = 0x18000, scoped, tag = 'input window, operand 7, single buffered']
    #allocation11 [shape = 'u8[1536]{0}', space=vmem, size = 0x800, scoped, tag = 'input window, operand 8, single buffered']
    #allocation12 [shape = 's32[1]{0}', space=sflag, size = 0x4, scoped, tag = 'scoped memory for tpu_custom_call.1']
    #allocation13 [shape = 'u8[1536]{0}', space=vmem, size = 0x800, scoped, tag = 'input window, operand 9, single buffered']
    #allocation14 [shape = 'u8[1536]{0}', space=vmem, size = 0x800, scoped, tag = 'input window, operand 10, single buffered']
    #allocation15 [shape = 's32[1]{0}', space=sflag, size = 0x4, scoped, tag = 'scoped memory for tpu_custom_call.1']
    #allocation16 [shape = 'u8[98304]{0}', space=vmem, size = 0x18000, scoped, tag = 'input window, operand 11, single buffered']
    #allocation17 [shape = 'u8[1536]{0}', space=vmem, size = 0x800, scoped, tag = 'input window, operand 12, single buffered']
    #allocation18 [shape = 's32[1]{0}', space=sflag, size = 0x4, scoped, tag = 'scoped memory for tpu_custom_call.1']
    #allocation19 [shape = 'u8[262144]{0}', space=vmem, size = 0x40000, scoped, tag = 'input window, operand 13, single buffered']
    #allocation20 [shape = 'u8[262144]{0}', space=vmem, size = 0x40000, scoped, tag = 'input window, operand 14, single buffered']
    #allocation21 [shape = 's32[1]{0}', space=sflag, size = 0x4, scoped, tag = 'scoped memory for tpu_custom_call.1']
    #allocation22 [shape = 'u8[4096]{0}', space=vmem, size = 0x1000, scoped, tag = 'input window, operand 15, single buffered']
    #allocation23 [shape = 'u8[32768]{0}', space=vmem, size = 0x8000, scoped, tag = 'input window, operand 20, single buffered']
    #allocation24 [shape = 's32[1]{0}', space=sflag, size = 0x4, scoped, tag = 'scoped memory for tpu_custom_call.1']
    #allocation25 [shape = 'u8[32768]{0}', space=vmem, size = 0x8000, scoped, tag = 'input window, operand 24, single buffered']
    #allocation26 [shape = 'u8[8192]{0}', space=vmem, size = 0x2000, scoped, tag = 'output window, operand 0, single buffered']
    %33 = vsyncpa [#allocation6], 0
    %34 = vsyncpa [#allocation4], 0
    %35 = vsyncpa [#allocation9], 0
    %36 = vsyncpa [#allocation12], 0
    %37 = vsyncpa [#allocation15], 0
    %38 = vsyncpa [#allocation18], 0
    %39 = vsyncpa [#allocation21], 0
    %40 = vsyncpa [#allocation24], 0
    %41 = vsyncpa [#allocation5], 0
    // Predicated region
    $region2: #{tpu_custom_call.1} parent=1 // pred_check
      _
    $region3: #{tpu_custom_call.1} parent=1 // pred_check_branch
      %43 = sbr.rel (0) target = $region5
    $region4: #{tpu_custom_call.1} parent=1 // pred_region
      %s45 = ssub.s32 16, 16
      %46 = vsyncadd [#allocation6], %s45
      %49 = dma.hbm_to_smem %s0, 16, [#allocation3], [#allocation6]
    $region5: #{tpu_custom_call.1} parent=1 // pred_fallthru
      _
    // Predicated region
    $region6: #{tpu_custom_call.1} parent=1 // pred_check
      _
    $region7: #{tpu_custom_call.1} parent=1 // pred_check_branch
      %51 = sbr.rel (0) target = $region9
    $region8: #{tpu_custom_call.1} parent=1 // pred_region
      _
    $region9: #{tpu_custom_call.1} parent=1 // pred_fallthru
      _
    // Predicated region
    $region10: #{tpu_custom_call.1} parent=1 // pred_check
      _
    $region11: #{tpu_custom_call.1} parent=1 // pred_check_branch
      %53 = sbr.rel (0) target = $region13
    $region12: #{tpu_custom_call.1} parent=1 // pred_region
      %s55 = ssub.s32 16, 16
      %56 = vsyncadd [#allocation4], %s55
      %s58 = sshll.u32 [#allocation7], 4
      %s59 = int_to_ptr.vmem [resolvable:$true] %s58
      %61 = dma.hbm_to_vmem [thread:$0]  %s2, 16, %s59, [#allocation4]
    $region13: #{tpu_custom_call.1} parent=1 // pred_fallthru
      _
    // Predicated region
    $region14: #{tpu_custom_call.1} parent=1 // pred_check
      _
    $region15: #{tpu_custom_call.1} parent=1 // pred_check_branch
      %63 = sbr.rel (0) target = $region17
    $region16: #{tpu_custom_call.1} parent=1 // pred_region
      _
    $region17: #{tpu_custom_call.1} parent=1 // pred_fallthru
      _
    // Predicated region
    $region18: #{tpu_custom_call.1} parent=1 // pred_check
      _
    $region19: #{tpu_custom_call.1} parent=1 // pred_check_branch
      %65 = sbr.rel (0) target = $region21
    $region20: #{tpu_custom_call.1} parent=1 // pred_region
      _
    $region21: #{tpu_custom_call.1} parent=1 // pred_fallthru
      _
    // Predicated region
    $region22: #{tpu_custom_call.1} parent=1 // pred_check
      _
    $region23: #{tpu_custom_call.1} parent=1 // pred_check_branch
      %67 = sbr.rel (0) target = $region25
    $region24: #{tpu_custom_call.1} parent=1 // pred_region
      %s69 = ssub.s32 3072, 3072
      %70 = vsyncadd [#allocation9], %s69
      %s71 = sshll.u32 [#allocation8], 4
      %s72 = int_to_ptr.vmem [resolvable:$true] %s71
      %77 = dma.hbm_to_vmem [thread:$0]  %s5, 3072, %s72, [#allocation9], 64, 64, 4
    $region25: #{tpu_custom_call.1} parent=1 // pred_fallthru
      _
    // Predicated region
    $region26: #{tpu_custom_call.1} parent=1 // pred_check
      _
    $region27: #{tpu_custom_call.1} parent=1 // pred_check_branch
      %79 = sbr.rel (0) target = $region29
    $region28: #{tpu_custom_call.1} parent=1 // pred_region
      _
    $region29: #{tpu_custom_call.1} parent=1 // pred_fallthru
      _
    // Predicated region
    $region30: #{tpu_custom_call.1} parent=1 // pred_check
      _
    $region31: #{tpu_custom_call.1} parent=1 // pred_check_branch
      %81 = sbr.rel (0) target = $region33
    $region32: #{tpu_custom_call.1} parent=1 // pred_region
      %s83 = ssub.s32 3072, 3072
      %84 = vsyncadd [#allocation9], %s83
      %s85 = sshll.u32 [#allocation10], 4
      %s86 = int_to_ptr.vmem [resolvable:$true] %s85
      %91 = dma.hbm_to_vmem [thread:$0]  %s7, 3072, %s86, [#allocation9], 64, 64, 4
    $region33: #{tpu_custom_call.1} parent=1 // pred_fallthru
      _
    // Predicated region
    $region34: #{tpu_custom_call.1} parent=1 // pred_check
      _
    $region35: #{tpu_custom_call.1} parent=1 // pred_check_branch
      %93 = sbr.rel (0) target = $region37
    $region36: #{tpu_custom_call.1} parent=1 // pred_region
      %s95 = ssub.s32 48, 48
      %96 = vsyncadd [#allocation12], %s95
      %s97 = sshll.u32 [#allocation11], 4
      %s98 = int_to_ptr.vmem [resolvable:$true] %s97
      %103 = dma.hbm_to_vmem [thread:$0]  %s8, 48, %s98, [#allocation12], 16, 16, 1
    $region37: #{tpu_custom_call.1} parent=1 // pred_fallthru
      _
    // Predicated region
    $region38: #{tpu_custom_call.1} parent=1 // pred_check
      _
    $region39: #{tpu_custom_call.1} parent=1 // pred_check_branch
      %105 = sbr.rel (0) target = $region41
    $region40: #{tpu_custom_call.1} parent=1 // pred_region
      %s107 = ssub.s32 48, 48
      %108 = vsyncadd [#allocation12], %s107
      %s109 = sshll.u32 [#allocation13], 4
      %s110 = int_to_ptr.vmem [resolvable:$true] %s109
      %115 = dma.hbm_to_vmem [thread:$0]  %s9, 48, %s110, [#allocation12], 16, 16, 1
    $region41: #{tpu_custom_call.1} parent=1 // pred_fallthru
      _
    // Predicated region
    $region42: #{tpu_custom_call.1} parent=1 // pred_check
      _
    $region43: #{tpu_custom_call.1} parent=1 // pred_check_branch
      %117 = sbr.rel (0) target = $region45
    $region44: #{tpu_custom_call.1} parent=1 // pred_region
      %s119 = ssub.s32 48, 48
      %120 = vsyncadd [#allocation15], %s119
      %s121 = sshll.u32 [#allocation14], 4
      %s122 = int_to_ptr.vmem [resolvable:$true] %s121
      %127 = dma.hbm_to_vmem [thread:$0]  %s10, 48, %s122, [#allocation15], 16, 16, 1
    $region45: #{tpu_custom_call.1} parent=1 // pred_fallthru
      _
    // Predicated region
    $region46: #{tpu_custom_call.1} parent=1 // pred_check
      _
    $region47: #{tpu_custom_call.1} parent=1 // pred_check_branch
      %129 = sbr.rel (0) target = $region49
    $region48: #{tpu_custom_call.1} parent=1 // pred_region
      %s131 = ssub.s32 3072, 3072
      %132 = vsyncadd [#allocation15], %s131
      %s133 = sshll.u32 [#allocation16], 4
      %s134 = int_to_ptr.vmem [resolvable:$true] %s133
      %139 = dma.hbm_to_vmem [thread:$0]  %s11, 3072, %s134, [#allocation15], 64, 64, 4
    $region49: #{tpu_custom_call.1} parent=1 // pred_fallthru
      _
    // Predicated region
    $region50: #{tpu_custom_call.1} parent=1 // pred_check
      _
    $region51: #{tpu_custom_call.1} parent=1 // pred_check_branch
      %141 = sbr.rel (0) target = $region53
    $region52: #{tpu_custom_call.1} parent=1 // pred_region
      %s143 = ssub.s32 48, 48
      %144 = vsyncadd [#allocation18], %s143
      %s145 = sshll.u32 [#allocation17], 4
      %s146 = int_to_ptr.vmem [resolvable:$true] %s145
      %151 = dma.hbm_to_vmem [thread:$0]  %s12, 48, %s146, [#allocation18], 16, 16, 1
    $region53: #{tpu_custom_call.1} parent=1 // pred_fallthru
      _
    // Predicated region
    $region54: #{tpu_custom_call.1} parent=1 // pred_check
      _
    $region55: #{tpu_custom_call.1} parent=1 // pred_check_branch
      %153 = sbr.rel (0) target = $region57
    $region56: #{tpu_custom_call.1} parent=1 // pred_region
      %s155 = ssub.s32 8192, 8192
      %156 = vsyncadd [#allocation18], %s155
      %s157 = sshll.u32 [#allocation19], 4
      %s158 = int_to_ptr.vmem [resolvable:$true] %s157
      %163 = dma.hbm_to_vmem [thread:$0]  %s13, 8192, %s158, [#allocation18], 512, 512, 32
    $region57: #{tpu_custom_call.1} parent=1 // pred_fallthru
      _
    // Predicated region
    $region58: #{tpu_custom_call.1} parent=1 // pred_check
      _
    $region59: #{tpu_custom_call.1} parent=1 // pred_check_branch
      %165 = sbr.rel (0) target = $region61
    $region60: #{tpu_custom_call.1} parent=1 // pred_region
      %s167 = ssub.s32 8192, 8192
      %168 = vsyncadd [#allocation21], %s167
      %s169 = sshll.u32 [#allocation20], 4
      %s170 = int_to_ptr.vmem [resolvable:$true] %s169
      %175 = dma.hbm_to_vmem [thread:$0]  %s14, 8192, %s170, [#allocation21], 256, 256, 16
    $region61: #{tpu_custom_call.1} parent=1 // pred_fallthru
      _
    // Predicated region
    $region62: #{tpu_custom_call.1} parent=1 // pred_check
      _
    $region63: #{tpu_custom_call.1} parent=1 // pred_check_branch
      %177 = sbr.rel (0) target = $region65
    $region64: #{tpu_custom_call.1} parent=1 // pred_region
      %s179 = ssub.s32 128, 128
      %180 = vsyncadd [#allocation21], %s179
      %s181 = sshll.u32 [#allocation22], 4
      %s182 = int_to_ptr.vmem [resolvable:$true] %s181
      %187 = dma.hbm_to_vmem [thread:$0]  %s15, 128, %s182, [#allocation21], 64, 64, 4
    $region65: #{tpu_custom_call.1} parent=1 // pred_fallthru
      _
    // Predicated region
    $region66: #{tpu_custom_call.1} parent=1 // pred_check
      _
    $region67: #{tpu_custom_call.1} parent=1 // pred_check_branch
      %189 = sbr.rel (0) target = $region69
    $region68: #{tpu_custom_call.1} parent=1 // pred_region
      _
    $region69: #{tpu_custom_call.1} parent=1 // pred_fallthru
      _
    // Predicated region
    $region70: #{tpu_custom_call.1} parent=1 // pred_check
      _
    $region71: #{tpu_custom_call.1} parent=1 // pred_check_branch
      %191 = sbr.rel (0) target = $region73
    $region72: #{tpu_custom_call.1} parent=1 // pred_region
      _
    $region73: #{tpu_custom_call.1} parent=1 // pred_fallthru
      _
    // Predicated region
    $region74: #{tpu_custom_call.1} parent=1 // pred_check
      _
    $region75: #{tpu_custom_call.1} parent=1 // pred_check_branch
      %193 = sbr.rel (0) target = $region77
    $region76: #{tpu_custom_call.1} parent=1 // pred_region
      _
    $region77: #{tpu_custom_call.1} parent=1 // pred_fallthru
      _
    // Predicated region
    $region78: #{tpu_custom_call.1} parent=1 // pred_check
      _
    $region79: #{tpu_custom_call.1} parent=1 // pred_check_branch
      %195 = sbr.rel (0) target = $region81
    $region80: #{tpu_custom_call.1} parent=1 // pred_region
      _
    $region81: #{tpu_custom_call.1} parent=1 // pred_fallthru
      _
    // Predicated region
    $region82: #{tpu_custom_call.1} parent=1 // pred_check
      _
    $region83: #{tpu_custom_call.1} parent=1 // pred_check_branch
      %197 = sbr.rel (0) target = $region85
    $region84: #{tpu_custom_call.1} parent=1 // pred_region
      %s199 = ssub.s32 1024, 1024
      %200 = vsyncadd [#allocation24], %s199
      %s201 = sshll.u32 [#allocation23], 4
      %s202 = int_to_ptr.vmem [resolvable:$true] %s201
      %207 = dma.hbm_to_vmem [thread:$0]  %s20, 1024, %s202, [#allocation24], 64, 64, 4
    $region85: #{tpu_custom_call.1} parent=1 // pred_fallthru
      _
    // Predicated region
    $region86: #{tpu_custom_call.1} parent=1 // pred_check
      _
    $region87: #{tpu_custom_call.1} parent=1 // pred_check_branch
      %209 = sbr.rel (0) target = $region89
    $region88: #{tpu_custom_call.1} parent=1 // pred_region
      _
    $region89: #{tpu_custom_call.1} parent=1 // pred_fallthru
      _
    // Predicated region
    $region90: #{tpu_custom_call.1} parent=1 // pred_check
      _
    $region91: #{tpu_custom_call.1} parent=1 // pred_check_branch
      %211 = sbr.rel (0) target = $region93
    $region92: #{tpu_custom_call.1} parent=1 // pred_region
      _
    $region93: #{tpu_custom_call.1} parent=1 // pred_fallthru
      _
    // Predicated region
    $region94: #{tpu_custom_call.1} parent=1 // pred_check
      _
    $region95: #{tpu_custom_call.1} parent=1 // pred_check_branch
      %213 = sbr.rel (0) target = $region97
    $region96: #{tpu_custom_call.1} parent=1 // pred_region
      _
    $region97: #{tpu_custom_call.1} parent=1 // pred_fallthru
      _
    // Predicated region
    $region98: #{tpu_custom_call.1} parent=1 // pred_check
      _
    $region99: #{tpu_custom_call.1} parent=1 // pred_check_branch
      %215 = sbr.rel (0) target = $region101
    $region100: #{tpu_custom_call.1} parent=1 // pred_region
      %s217 = ssub.s32 1024, 1024
      %218 = vsyncadd [#allocation24], %s217
      %s219 = sshll.u32 [#allocation25], 4
      %s220 = int_to_ptr.vmem [resolvable:$true] %s219
      %225 = dma.hbm_to_vmem [thread:$0]  %s24, 1024, %s220, [#allocation24], 64, 64, 4
    $region101: #{tpu_custom_call.1} parent=1 // pred_fallthru
      _
    // Predicated region
    $region102: #{tpu_custom_call.1} parent=1 // pred_check
      _
    $region103: #{tpu_custom_call.1} parent=1 // pred_check_branch
      %227 = sbr.rel (0) target = $region105
    $region104: #{tpu_custom_call.1} parent=1 // pred_region
      _
    $region105: #{tpu_custom_call.1} parent=1 // pred_fallthru
      _
    // Predicated region
    $region106: #{tpu_custom_call.1} parent=1 // pred_check
      _
    $region107: #{tpu_custom_call.1} parent=1 // pred_check_branch
      %229 = sbr.rel (0) target = $region109
    $region108: #{tpu_custom_call.1} parent=1 // pred_region
      %230 = dma.done [#allocation6], 16
    $region109: #{tpu_custom_call.1} parent=1 // pred_fallthru
      _
    // Predicated region
    $region110: #{tpu_custom_call.1} parent=1 // pred_check
      _
    $region111: #{tpu_custom_call.1} parent=1 // pred_check_branch
      %232 = sbr.rel (0) target = $region113
    $region112: #{tpu_custom_call.1} parent=1 // pred_region
      %233 = dma.done [#allocation4], 16
    $region113: #{tpu_custom_call.1} parent=1 // pred_fallthru
      _
    // Predicated region
    $region114: #{tpu_custom_call.1} parent=1 // pred_check
      _
    $region115: #{tpu_custom_call.1} parent=1 // pred_check_branch
      %235 = sbr.rel (0) target = $region117
    $region116: #{tpu_custom_call.1} parent=1 // pred_region
      %236 = dma.done [#allocation9], 3072
    $region117: #{tpu_custom_call.1} parent=1 // pred_fallthru
      _
    // Predicated region
    $region118: #{tpu_custom_call.1} parent=1 // pred_check
      _
    $region119: #{tpu_custom_call.1} parent=1 // pred_check_branch
      %238 = sbr.rel (0) target = $region121
    $region120: #{tpu_custom_call.1} parent=1 // pred_region
      %239 = dma.done [#allocation9], 3072
    $region121: #{tpu_custom_call.1} parent=1 // pred_fallthru
      _
    // Predicated region
    $region122: #{tpu_custom_call.1} parent=1 // pred_check
      _
    $region123: #{tpu_custom_call.1} parent=1 // pred_check_branch
      %241 = sbr.rel (0) target = $region125
    $region124: #{tpu_custom_call.1} parent=1 // pred_region
      %242 = dma.done [#allocation12], 48
    $region125: #{tpu_custom_call.1} parent=1 // pred_fallthru
      _
    // Predicated region
    $region126: #{tpu_custom_call.1} parent=1 // pred_check
      _
    $region127: #{tpu_custom_call.1} parent=1 // pred_check_branch
      %244 = sbr.rel (0) target = $region129
    $region128: #{tpu_custom_call.1} parent=1 // pred_region
      %245 = dma.done [#allocation12], 48
    $region129: #{tpu_custom_call.1} parent=1 // pred_fallthru
      _
    // Predicated region
    $region130: #{tpu_custom_call.1} parent=1 // pred_check
      _
    $region131: #{tpu_custom_call.1} parent=1 // pred_check_branch
      %247 = sbr.rel (0) target = $region133
    $region132: #{tpu_custom_call.1} parent=1 // pred_region
      %248 = dma.done [#allocation15], 48
    $region133: #{tpu_custom_call.1} parent=1 // pred_fallthru
      _
    // Predicated region
    $region134: #{tpu_custom_call.1} parent=1 // pred_check
      _
    $region135: #{tpu_custom_call.1} parent=1 // pred_check_branch
      %250 = sbr.rel (0) target = $region137
    $region136: #{tpu_custom_call.1} parent=1 // pred_region
      %251 = dma.done [#allocation15], 3072
    $region137: #{tpu_custom_call.1} parent=1 // pred_fallthru
      _
    // Predicated region
    $region138: #{tpu_custom_call.1} parent=1 // pred_check
      _
    $region139: #{tpu_custom_call.1} parent=1 // pred_check_branch
      %253 = sbr.rel (0) target = $region141
    $region140: #{tpu_custom_call.1} parent=1 // pred_region
      %254 = dma.done [#allocation18], 48
    $region141: #{tpu_custom_call.1} parent=1 // pred_fallthru
      _
    // Predicated region
    $region142: #{tpu_custom_call.1} parent=1 // pred_check
      _
    $region143: #{tpu_custom_call.1} parent=1 // pred_check_branch
      %256 = sbr.rel (0) target = $region145
    $region144: #{tpu_custom_call.1} parent=1 // pred_region
      %257 = dma.done [#allocation18], 8192
    $region145: #{tpu_custom_call.1} parent=1 // pred_fallthru
      _
    // Predicated region
    $region146: #{tpu_custom_call.1} parent=1 // pred_check
      _
    $region147: #{tpu_custom_call.1} parent=1 // pred_check_branch
      %259 = sbr.rel (0) target = $region149
    $region148: #{tpu_custom_call.1} parent=1 // pred_region
      %260 = dma.done [#allocation21], 8192
    $region149: #{tpu_custom_call.1} parent=1 // pred_fallthru
      _
    // Predicated region
    $region150: #{tpu_custom_call.1} parent=1 // pred_check
      _
    $region151: #{tpu_custom_call.1} parent=1 // pred_check_branch
      %262 = sbr.rel (0) target = $region153
    $region152: #{tpu_custom_call.1} parent=1 // pred_region
      %263 = dma.done [#allocation21], 128
    $region153: #{tpu_custom_call.1} parent=1 // pred_fallthru
      _
    // Predicated region
    $region154: #{tpu_custom_call.1} parent=1 // pred_check
      _
    $region155: #{tpu_custom_call.1} parent=1 // pred_check_branch
      %265 = sbr.rel (0) target = $region157
    $region156: #{tpu_custom_call.1} parent=1 // pred_region
      %266 = dma.done [#allocation24], 1024
    $region157: #{tpu_custom_call.1} parent=1 // pred_fallthru
      _
    // Predicated region
    $region158: #{tpu_custom_call.1} parent=1 // pred_check
      _
    $region159: #{tpu_custom_call.1} parent=1 // pred_check_branch
      %268 = sbr.rel (0) target = $region161
    $region160: #{tpu_custom_call.1} parent=1 // pred_region
      %269 = dma.done [#allocation24], 1024
    $region161: #{tpu_custom_call.1} parent=1 // pred_fallthru
      _
    %270 = sfence
    %v272 = vld [vmem:[%s1] sm:$0xff]
    %v273 = vld [vmem:[%s1 + $0x8] sm:$0xff]
    %v274 = vld [vmem:[%s1 + $0x10] sm:$0xff]
    %v275 = vld [vmem:[%s1 + $0x18] sm:$0xff]
    %v276 = vld [vmem:[#allocation7] sm:$0x1]
    %v277 = vlaneseq
    %v278 = vand.u32 %v277, 127
    %279 = vset.pattern.permute.xlu0 0
    %280 = vperm.xlu0 %279, %v272
    %v281 = vpop.permute.xlu0 %280
    %282 = vset.pattern.permute.xlu0 0
    %283 = vperm.xlu0 %282, %v273
    %v284 = vpop.permute.xlu0 %283
    %285 = vset.pattern.permute.xlu0 0
    %286 = vperm.xlu0 %285, %v274
    %v287 = vpop.permute.xlu0 %286
    %288 = vset.pattern.permute.xlu0 0
    %289 = vperm.xlu0 %288, %v275
    %v290 = vpop.permute.xlu0 %289
    %vm291 = vcmp.eq.s32.totalorder %v278, %v281
    %vm292 = vcmp.eq.s32.totalorder %v278, %v284
    %vm293 = vcmp.eq.s32.totalorder %v278, %v287
    %vm294 = vcmp.eq.s32.totalorder %v278, %v290
    %v295 = vsel %vm291, 1.0, 0.0
    %v296 = vsel %vm292, 1.0, 0.0
    %v297 = vsel %vm293, 1.0, 0.0
    %v298 = vsel %vm294, 1.0, 0.0
    %v299 = vpack.c.bf16 %v296, %v295
    %v300 = vpack.c.bf16 %v298, %v297
    %v301 = vlaneseq
    %v302 = vshrl.u32 %v301, 7
    %v303 = vadd.s32 %v302, 8
    %v304 = vlaneseq
    %v305 = vshrl.u32 %v304, 7
    %v306 = vsub.s32 0, %v305
    %v307 = vrot.slane %v276, %v306
    %vm308 = vcmp.eq.s32.totalorder %v302, %v307
    %vm309 = vcmp.eq.s32.totalorder %v303, %v307
    %v310 = vsel %vm308, 1.0, 0.0
    %v311 = vsel %vm309, 1.0, 0.0
    %v312 = vpack.c.bf16 %v311, %v310
    %v313 = vld [vmem:[%s4] sm:$0xf]
    %v314 = vld [vmem:[%s4 + $0x4] sm:$0xf]
    %v315 = vld [vmem:[%s4 + $0x8] sm:$0xf]
    %v316 = vld [vmem:[%s4 + $0xc] sm:$0xf]
    %v317 = vld [vmem:[%s3] sm:$0xff]
    %v318 = vld [vmem:[%s3 + $0x8] sm:$0xff]
    %v319 = vsub.f32 0.0, %v317
    %v320 = vsub.f32 0.0, %v318
    %s321 = sld [smem:[#allocation3]]
    %v322 = vld [vmem:[#allocation8] sm:$0xf]
    %v323 = vld [vmem:[#allocation8 + $0x4] sm:$0xf]
    %v324 = vld [vmem:[#allocation8 + $0x8] sm:$0xf]
    %v325 = vld [vmem:[#allocation8 + $0xc] sm:$0xf]
    %v326 = vld [vmem:[#allocation8 + $0x10] sm:$0xf]
    %v327 = vld [vmem:[#allocation8 + $0x14] sm:$0xf]
    %v328 = vld [vmem:[#allocation8 + $0x18] sm:$0xf]
    %v329 = vld [vmem:[#allocation8 + $0x1c] sm:$0xf]
    %v330 = vld [vmem:[#allocation8 + $0x20] sm:$0xf]
    %v331 = vld [vmem:[#allocation8 + $0x24] sm:$0xf]
    %v332 = vld [vmem:[#allocation8 + $0x28] sm:$0xf]
    %v333 = vld [vmem:[#allocation8 + $0x2c] sm:$0xf]
    %v334 = vld [vmem:[#allocation8 + $0x30] sm:$0xf]
    %v335 = vld [vmem:[#allocation8 + $0x34] sm:$0xf]
    %v336 = vld [vmem:[#allocation8 + $0x38] sm:$0xf]
    %v337 = vld [vmem:[#allocation8 + $0x3c] sm:$0xf]
    %v338 = vld [vmem:[%s6] sm:$0x1]
    %v340 = vlaneseq
    %v341 = vshrl.u32 %v340, 7
    %v342 = vsub.s32 0, %v341
    %v343 = vrot.slane %v338, %v342
    %v349 = vunpack.c.l.b16 %v313
    %v350 = vunpack.c.l.b16 %v314
    %v351 = vunpack.c.l.b16 %v315
    %v352 = vunpack.c.l.b16 %v316
    %v353 = vpack.c.b16 %v350, %v349
    %v354 = vpack.c.b16 %v352, %v351
    %v373 = vunpack.c.l.b16 %v322
    %v374 = vunpack.c.l.b16 %v323
    %v375 = vunpack.c.l.b16 %v324
    %v376 = vunpack.c.l.b16 %v325
    %v377 = vunpack.c.l.b16 %v326
    %v378 = vunpack.c.l.b16 %v327
    %v379 = vunpack.c.l.b16 %v328
    %v380 = vunpack.c.l.b16 %v329
    %v381 = vunpack.c.l.b16 %v330
    %v382 = vunpack.c.l.b16 %v331
    %v383 = vunpack.c.l.b16 %v332
    %v384 = vunpack.c.l.b16 %v333
    %v385 = vunpack.c.l.b16 %v334
    %v386 = vunpack.c.l.b16 %v335
    %v387 = vunpack.c.l.b16 %v336
    %v388 = vunpack.c.l.b16 %v337
    %v389 = vpack.c.b16 %v374, %v373
    %v390 = vpack.c.b16 %v376, %v375
    %v391 = vpack.c.b16 %v378, %v377
    %v392 = vpack.c.b16 %v380, %v379
    %v393 = vpack.c.b16 %v382, %v381
    %v394 = vpack.c.b16 %v384, %v383
    %v395 = vpack.c.b16 %v386, %v385
    %v396 = vpack.c.b16 %v388, %v387
    %405 = vmatprep.subr.bf16.mxu0 0
    %406 = vmatpush1.bf16.msra.mxu0 %v389
    %407 = vmatprep.subr.bf16.mxu0 0
    %408 = vmatpush1.bf16.msra.mxu0 %v390
    %409 = vmatprep.subr.bf16.mxu0 0
    %410 = vmatpush1.bf16.msra.mxu0 %v391
    %411 = vmatprep.subr.bf16.mxu0 0
    %412 = vmatpush1.bf16.msra.mxu0 %v392
    %413 = vmatprep.subr.bf16.mxu0 0
    %414 = vmatpush1.bf16.msra.mxu0 %v393
    %415 = vmatprep.subr.bf16.mxu0 0
    %416 = vmatpush1.bf16.msra.mxu0 %v394
    %417 = vmatprep.subr.bf16.mxu0 0
    %418 = vmatpush1.bf16.msra.mxu0 %v395
    %419 = vmatprep.subr.bf16.mxu0 0
    %420 = vmatpush1.bf16.msra.mxu0 %v396
    %421 = vmatprep.subr.bf16.mxu0 0
    %422 = vmatpush1.bf16.msra.mxu0 0
    %423 = vmatprep.subr.bf16.mxu0 0
    %424 = vmatpush1.bf16.msra.mxu0 0
    %425 = vmatprep.subr.bf16.mxu0 0
    %426 = vmatpush1.bf16.msra.mxu0 0
    %427 = vmatprep.subr.bf16.mxu0 0
    %428 = vmatpush1.bf16.msra.mxu0 0
    %429 = vmatprep.subr.bf16.mxu0 0
    %430 = vmatpush1.bf16.msra.mxu0 0
    %431 = vmatprep.subr.bf16.mxu0 0
    %432 = vmatpush1.bf16.msra.mxu0 0
    %433 = vmatprep.subr.bf16.mxu0 0
    %434 = vmatpush1.bf16.msra.mxu0 0
    %435 = vmatprep.subr.bf16.mxu0 0
    %436 = vmatpush1.bf16.msra.mxu0 0
    %437 = vmatprep.mubr.bf16.mxu0 0
    %438 = vmatmul.mubr.bf16.gmra.mrb[0].mxu0 %v353
    %v439 = vpop.f32.mrb[0].mxu0
    %v440 = vadd.f32 %v343, %v439
    %v441 = vpop.f32.mrb[0].mxu0
    %v442 = vpop.f32.mrb[0].mxu0
    %v443 = vadd.f32 %v343, %v442
    %v444 = vpop.f32.mrb[0].mxu0
    %445 = vmatprep.mubr.bf16.mxu0 0
    %446 = vmatmul.mubr.bf16.gmra.mrb[0].mxu0 %v354
    %v447 = vpop.f32.mrb[0].mxu0
    %v448 = vadd.f32 %v343, %v447
    %v449 = vpop.f32.mrb[0].mxu0
    %v450 = vpop.f32.mrb[0].mxu0
    %v451 = vadd.f32 %v343, %v450
    %v452 = vpop.f32.mrb[0].mxu0
    %453 = vdwg.mxu0
    %v454 = vpack.c.bf16 %v318, %v317
    %vm455 = vcmask 130048
    %v457 = vsel %vm455, %v299, 0
    %v460 = vsel %vm455, %v300, 0
    %462 = vmatprep.subr.bf16.mxu0 0
    %463 = vmatpush1.bf16.msra.mxu0 %v454
    %464 = vmatprep.subr.bf16.mxu0 0
    %465 = vmatpush1.bf16.msra.mxu0 0
    %466 = vmatprep.subr.bf16.mxu0 0
    %467 = vmatpush1.bf16.msra.mxu0 0
    %468 = vmatprep.subr.bf16.mxu0 0
    %469 = vmatpush1.bf16.msra.mxu0 0
    %470 = vmatprep.subr.bf16.mxu0 0
    %471 = vmatpush1.bf16.msra.mxu0 0
    %472 = vmatprep.subr.bf16.mxu0 0
    %473 = vmatpush1.bf16.msra.mxu0 0
    %474 = vmatprep.subr.bf16.mxu0 0
    %475 = vmatpush1.bf16.msra.mxu0 0
    %476 = vmatprep.subr.bf16.mxu0 0
    %477 = vmatpush1.bf16.msra.mxu0 0
    %478 = vmatprep.subr.bf16.mxu0 0
    %479 = vmatpush1.bf16.msra.mxu0 0
    %480 = vmatprep.subr.bf16.mxu0 0
    %481 = vmatpush1.bf16.msra.mxu0 0
    %482 = vmatprep.subr.bf16.mxu0 0
    %483 = vmatpush1.bf16.msra.mxu0 0
    %484 = vmatprep.subr.bf16.mxu0 0
    %485 = vmatpush1.bf16.msra.mxu0 0
    %486 = vmatprep.subr.bf16.mxu0 0
    %487 = vmatpush1.bf16.msra.mxu0 0
    %488 = vmatprep.subr.bf16.mxu0 0
    %489 = vmatpush1.bf16.msra.mxu0 0
    %490 = vmatprep.subr.bf16.mxu0 0
    %491 = vmatpush1.bf16.msra.mxu0 0
    %492 = vmatprep.subr.bf16.mxu0 0
    %493 = vmatpush1.bf16.msra.mxu0 0
    %494 = vmatprep.mubr.bf16.mxu0 0
    %495 = vmatmul.mubr.bf16.gmra.mrb[0].mxu0 %v457
    %v496 = vpop.f32.mrb[0].mxu0
    %v497 = vadd.f32 0.0, %v496
    %v498 = vpop.f32.mrb[0].mxu0
    %v499 = vpop.f32.mrb[0].mxu0
    %v500 = vadd.f32 0.0, %v499
    %v501 = vpop.f32.mrb[0].mxu0
    %502 = vmatprep.mubr.bf16.mxu0 0
    %503 = vmatmul.mubr.bf16.gmra.mrb[0].mxu0 %v460
    %v504 = vpop.f32.mrb[0].mxu0
    %v505 = vadd.f32 0.0, %v504
    %v506 = vpop.f32.mrb[0].mxu0
    %v507 = vpop.f32.mrb[0].mxu0
    %v508 = vadd.f32 0.0, %v507
    %v509 = vpop.f32.mrb[0].mxu0
    %510 = vdwg.mxu0
    %v511 = vsub.f32 0.0, %v497
    %v512 = vsub.f32 0.0, %v500
    %v513 = vsub.f32 0.0, %v505
    %v514 = vsub.f32 0.0, %v508
    %v515 = vadd.f32 %v497, %v440
    %v516 = vadd.f32 %v511, %v440
    %v517 = vadd.f32 %v500, %v443
    %v518 = vadd.f32 %v512, %v443
    %v519 = vadd.f32 %v505, %v448
    %v520 = vadd.f32 %v513, %v448
    %v521 = vadd.f32 %v508, %v451
    %v522 = vadd.f32 %v514, %v451
    %v523 = vmax.f32 %v515, 0.0
    %v524 = vmax.f32 %v516, 0.0
    %v525 = vmax.f32 %v517, 0.0
    %v526 = vmax.f32 %v518, 0.0
    %v527 = vmax.f32 %v519, 0.0
    %v528 = vmax.f32 %v520, 0.0
    %v529 = vmax.f32 %v521, 0.0
    %v530 = vmax.f32 %v522, 0.0
    %v531 = vpack.c.bf16 %v525, %v523
    %v532 = vpack.c.bf16 %v526, %v524
    %v533 = vpack.c.bf16 %v529, %v527
    %v534 = vpack.c.bf16 %v530, %v528
    %v535 = vstv %s321
    %v536 = vmul.f32 %v535, %v317
    %v537 = vmul.f32 %v535, %v319
    %v538 = vmul.f32 %v535, %v318
    %v539 = vmul.f32 %v535, %v320
    %vm540 = vcmask 261120
    %v542 = vsel %vm540, %v312, 0
    %544 = vmatprep.subr.bf16.mxu0 %v532
    %545 = vmatpush1.bf16.msra.mxu0 %v531
    %546 = vmatprep.subr.bf16.mxu0 %v534
    %547 = vmatpush1.bf16.msra.mxu0 %v533
    %548 = vmatprep.subr.bf16.mxu0 0
    %549 = vmatpush1.bf16.msra.mxu0 0
    %550 = vmatprep.subr.bf16.mxu0 0
    %551 = vmatpush1.bf16.msra.mxu0 0
    %552 = vmatprep.subr.bf16.mxu0 0
    %553 = vmatpush1.bf16.msra.mxu0 0
    %554 = vmatprep.subr.bf16.mxu0 0
    %555 = vmatpush1.bf16.msra.mxu0 0
    %556 = vmatprep.subr.bf16.mxu0 0
    %557 = vmatpush1.bf16.msra.mxu0 0
    %558 = vmatprep.subr.bf16.mxu0 0
    %559 = vmatpush1.bf16.msra.mxu0 0
    %560 = vmatprep.subr.bf16.mxu0 0
    %561 = vmatpush1.bf16.msra.mxu0 0
    %562 = vmatprep.subr.bf16.mxu0 0
    %563 = vmatpush1.bf16.msra.mxu0 0
    %564 = vmatprep.subr.bf16.mxu0 0
    %565 = vmatpush1.bf16.msra.mxu0 0
    %566 = vmatprep.subr.bf16.mxu0 0
    %567 = vmatpush1.bf16.msra.mxu0 0
    %568 = vmatprep.subr.bf16.mxu0 0
    %569 = vmatpush1.bf16.msra.mxu0 0
    %570 = vmatprep.subr.bf16.mxu0 0
    %571 = vmatpush1.bf16.msra.mxu0 0
    %572 = vmatprep.subr.bf16.mxu0 0
    %573 = vmatpush1.bf16.msra.mxu0 0
    %574 = vmatprep.subr.bf16.mxu0 0
    %575 = vmatpush1.bf16.msra.mxu0 0
    %576 = vmatprep.mubr.bf16.mxu0 0
    %577 = vmatmul.mubr.bf16.gmra.mrb[0].mxu0 %v542
    %v578 = vpop.f32.mrb[0].mxu0
    %v579 = vadd.f32 %v536, %v578
    %v580 = vpop.f32.mrb[0].mxu0
    %v581 = vadd.f32 %v537, %v580
    %v582 = vpop.f32.mrb[0].mxu0
    %v583 = vadd.f32 %v538, %v582
    %v584 = vpop.f32.mrb[0].mxu0
    %v585 = vadd.f32 %v539, %v584
    %586 = vdwg.mxu0
    %v587 = vpack.c.bf16 %v583, %v579
    %v588 = vpack.c.bf16 %v585, %v581
    %v589 = vld [vmem:[#allocation10] sm:$0xf]
    %v590 = vld [vmem:[#allocation10 + $0x4] sm:$0xf]
    %v591 = vld [vmem:[#allocation10 + $0x8] sm:$0xf]
    %v592 = vld [vmem:[#allocation10 + $0xc] sm:$0xf]
    %v593 = vld [vmem:[#allocation10 + $0x10] sm:$0xf]
    %v594 = vld [vmem:[#allocation10 + $0x14] sm:$0xf]
    %v595 = vld [vmem:[#allocation10 + $0x18] sm:$0xf]
    %v596 = vld [vmem:[#allocation10 + $0x1c] sm:$0xf]
    %v597 = vld [vmem:[#allocation10 + $0x20] sm:$0xf]
    %v598 = vld [vmem:[#allocation10 + $0x24] sm:$0xf]
    %v599 = vld [vmem:[#allocation10 + $0x28] sm:$0xf]
    %v600 = vld [vmem:[#allocation10 + $0x2c] sm:$0xf]
    %v601 = vld [vmem:[#allocation10 + $0x30] sm:$0xf]
    %v602 = vld [vmem:[#allocation10 + $0x34] sm:$0xf]
    %v603 = vld [vmem:[#allocation10 + $0x38] sm:$0xf]
    %v604 = vld [vmem:[#allocation10 + $0x3c] sm:$0xf]
    %v605 = vld [vmem:[#allocation11] sm:$0x1]
    %v607 = vlaneseq
    %v608 = vshrl.u32 %v607, 7
    %v609 = vsub.s32 0, %v608
    %v610 = vrot.slane %v605, %v609
    %v628 = vunpack.c.l.b16 %v589
    %v629 = vunpack.c.l.b16 %v590
    %v630 = vunpack.c.l.b16 %v591
    %v631 = vunpack.c.l.b16 %v592
    %v632 = vunpack.c.l.b16 %v593
    %v633 = vunpack.c.l.b16 %v594
    %v634 = vunpack.c.l.b16 %v595
    %v635 = vunpack.c.l.b16 %v596
    %v636 = vunpack.c.l.b16 %v597
    %v637 = vunpack.c.l.b16 %v598
    %v638 = vunpack.c.l.b16 %v599
    %v639 = vunpack.c.l.b16 %v600
    %v640 = vunpack.c.l.b16 %v601
    %v641 = vunpack.c.l.b16 %v602
    %v642 = vunpack.c.l.b16 %v603
    %v643 = vunpack.c.l.b16 %v604
    %v644 = vpack.c.b16 %v629, %v628
    %v645 = vpack.c.b16 %v631, %v630
    %v646 = vpack.c.b16 %v633, %v632
    %v647 = vpack.c.b16 %v635, %v634
    %v648 = vpack.c.b16 %v637, %v636
    %v649 = vpack.c.b16 %v639, %v638
    %v650 = vpack.c.b16 %v641, %v640
    %v651 = vpack.c.b16 %v643, %v642
    %660 = vmatprep.subr.bf16.mxu0 0
    %661 = vmatpush1.bf16.msra.mxu0 %v644
    %662 = vmatprep.subr.bf16.mxu0 0
    %663 = vmatpush1.bf16.msra.mxu0 %v645
    %664 = vmatprep.subr.bf16.mxu0 0
    %665 = vmatpush1.bf16.msra.mxu0 %v646
    %666 = vmatprep.subr.bf16.mxu0 0
    %667 = vmatpush1.bf16.msra.mxu0 %v647
    %668 = vmatprep.subr.bf16.mxu0 0
    %669 = vmatpush1.bf16.msra.mxu0 %v648
    %670 = vmatprep.subr.bf16.mxu0 0
    %671 = vmatpush1.bf16.msra.mxu0 %v649
    %672 = vmatprep.subr.bf16.mxu0 0
    %673 = vmatpush1.bf16.msra.mxu0 %v650
    %674 = vmatprep.subr.bf16.mxu0 0
    %675 = vmatpush1.bf16.msra.mxu0 %v651
    %676 = vmatprep.subr.bf16.mxu0 0
    %677 = vmatpush1.bf16.msra.mxu0 0
    %678 = vmatprep.subr.bf16.mxu0 0
    %679 = vmatpush1.bf16.msra.mxu0 0
    %680 = vmatprep.subr.bf16.mxu0 0
    %681 = vmatpush1.bf16.msra.mxu0 0
    %682 = vmatprep.subr.bf16.mxu0 0
    %683 = vmatpush1.bf16.msra.mxu0 0
    %684 = vmatprep.subr.bf16.mxu0 0
    %685 = vmatpush1.bf16.msra.mxu0 0
    %686 = vmatprep.subr.bf16.mxu0 0
    %687 = vmatpush1.bf16.msra.mxu0 0
    %688 = vmatprep.subr.bf16.mxu0 0
    %689 = vmatpush1.bf16.msra.mxu0 0
    %690 = vmatprep.subr.bf16.mxu0 0
    %691 = vmatpush1.bf16.msra.mxu0 0
    %692 = vmatprep.mubr.bf16.mxu0 0
    %693 = vmatmul.mubr.bf16.gmra.mrb[0].mxu0 %v587
    %v694 = vpop.f32.mrb[0].mxu0
    %v695 = vadd.f32 %v610, %v694
    %v696 = vpop.f32.mrb[0].mxu0
    %v697 = vpop.f32.mrb[0].mxu0
    %v698 = vadd.f32 %v610, %v697
    %v699 = vpop.f32.mrb[0].mxu0
    %700 = vmatprep.mubr.bf16.mxu0 0
    %701 = vmatmul.mubr.bf16.gmra.mrb[0].mxu0 %v588
    %v702 = vpop.f32.mrb[0].mxu0
    %v703 = vadd.f32 %v610, %v702
    %v704 = vpop.f32.mrb[0].mxu0
    %v705 = vpop.f32.mrb[0].mxu0
    %v706 = vadd.f32 %v610, %v705
    %v707 = vpop.f32.mrb[0].mxu0
    %708 = vdwg.mxu0
    %v709 = vld [vmem:[#allocation13] sm:$0x1]
    %v711 = vlaneseq
    %v712 = vshrl.u32 %v711, 7
    %v713 = vsub.s32 0, %v712
    %v714 = vrot.slane %v709, %v713
    %v716 = vmul.f32 %v695, %v714
    %v717 = vmul.f32 %v698, %v714
    %v718 = vmul.f32 %v703, %v714
    %v719 = vmul.f32 %v706, %v714
    %v720 = vld [vmem:[#allocation14] sm:$0x1]
    %v722 = vlaneseq
    %v723 = vshrl.u32 %v722, 7
    %v724 = vsub.s32 0, %v723
    %v725 = vrot.slane %v720, %v724
    %v727 = vadd.f32 %v716, %v725
    %v728 = vadd.f32 %v717, %v725
    %v729 = vadd.f32 %v718, %v725
    %v730 = vadd.f32 %v719, %v725
    %v731 = vmax.f32 %v727, 0.0
    %v732 = vmax.f32 %v728, 0.0
    %v733 = vmax.f32 %v729, 0.0
    %v734 = vmax.f32 %v730, 0.0
    %v735 = vpack.c.bf16 %v732, %v731
    %v736 = vpack.c.bf16 %v734, %v733
    %v737 = vld [vmem:[#allocation16] sm:$0xf]
    %v738 = vld [vmem:[#allocation16 + $0x4] sm:$0xf]
    %v739 = vld [vmem:[#allocation16 + $0x8] sm:$0xf]
    %v740 = vld [vmem:[#allocation16 + $0xc] sm:$0xf]
    %v741 = vld [vmem:[#allocation16 + $0x10] sm:$0xf]
    %v742 = vld [vmem:[#allocation16 + $0x14] sm:$0xf]
    %v743 = vld [vmem:[#allocation16 + $0x18] sm:$0xf]
    %v744 = vld [vmem:[#allocation16 + $0x1c] sm:$0xf]
    %v745 = vld [vmem:[#allocation16 + $0x20] sm:$0xf]
    %v746 = vld [vmem:[#allocation16 + $0x24] sm:$0xf]
    %v747 = vld [vmem:[#allocation16 + $0x28] sm:$0xf]
    %v748 = vld [vmem:[#allocation16 + $0x2c] sm:$0xf]
    %v749 = vld [vmem:[#allocation16 + $0x30] sm:$0xf]
    %v750 = vld [vmem:[#allocation16 + $0x34] sm:$0xf]
    %v751 = vld [vmem:[#allocation16 + $0x38] sm:$0xf]
    %v752 = vld [vmem:[#allocation16 + $0x3c] sm:$0xf]
    %v753 = vld [vmem:[#allocation17] sm:$0x1]
    %v755 = vlaneseq
    %v756 = vshrl.u32 %v755, 7
    %v757 = vsub.s32 0, %v756
    %v758 = vrot.slane %v753, %v757
    %v776 = vunpack.c.l.b16 %v737
    %v777 = vunpack.c.l.b16 %v738
    %v778 = vunpack.c.l.b16 %v739
    %v779 = vunpack.c.l.b16 %v740
    %v780 = vunpack.c.l.b16 %v741
    %v781 = vunpack.c.l.b16 %v742
    %v782 = vunpack.c.l.b16 %v743
    %v783 = vunpack.c.l.b16 %v744
    %v784 = vunpack.c.l.b16 %v745
    %v785 = vunpack.c.l.b16 %v746
    %v786 = vunpack.c.l.b16 %v747
    %v787 = vunpack.c.l.b16 %v748
    %v788 = vunpack.c.l.b16 %v749
    %v789 = vunpack.c.l.b16 %v750
    %v790 = vunpack.c.l.b16 %v751
    %v791 = vunpack.c.l.b16 %v752
    %v792 = vpack.c.b16 %v777, %v776
    %v793 = vpack.c.b16 %v779, %v778
    %v794 = vpack.c.b16 %v781, %v780
    %v795 = vpack.c.b16 %v783, %v782
    %v796 = vpack.c.b16 %v785, %v784
    %v797 = vpack.c.b16 %v787, %v786
    %v798 = vpack.c.b16 %v789, %v788
    %v799 = vpack.c.b16 %v791, %v790
    %808 = vmatprep.subr.bf16.mxu0 0
    %809 = vmatpush1.bf16.msra.mxu0 %v792
    %810 = vmatprep.subr.bf16.mxu0 0
    %811 = vmatpush1.bf16.msra.mxu0 %v793
    %812 = vmatprep.subr.bf16.mxu0 0
    %813 = vmatpush1.bf16.msra.mxu0 %v794
    %814 = vmatprep.subr.bf16.mxu0 0
    %815 = vmatpush1.bf16.msra.mxu0 %v795
    %816 = vmatprep.subr.bf16.mxu0 0
    %817 = vmatpush1.bf16.msra.mxu0 %v796
    %818 = vmatprep.subr.bf16.mxu0 0
    %819 = vmatpush1.bf16.msra.mxu0 %v797
    %820 = vmatprep.subr.bf16.mxu0 0
    %821 = vmatpush1.bf16.msra.mxu0 %v798
    %822 = vmatprep.subr.bf16.mxu0 0
    %823 = vmatpush1.bf16.msra.mxu0 %v799
    %824 = vmatprep.subr.bf16.mxu0 0
    %825 = vmatpush1.bf16.msra.mxu0 0
    %826 = vmatprep.subr.bf16.mxu0 0
    %827 = vmatpush1.bf16.msra.mxu0 0
    %828 = vmatprep.subr.bf16.mxu0 0
    %829 = vmatpush1.bf16.msra.mxu0 0
    %830 = vmatprep.subr.bf16.mxu0 0
    %831 = vmatpush1.bf16.msra.mxu0 0
    %832 = vmatprep.subr.bf16.mxu0 0
    %833 = vmatpush1.bf16.msra.mxu0 0
    %834 = vmatprep.subr.bf16.mxu0 0
    %835 = vmatpush1.bf16.msra.mxu0 0
    %836 = vmatprep.subr.bf16.mxu0 0
    %837 = vmatpush1.bf16.msra.mxu0 0
    %838 = vmatprep.subr.bf16.mxu0 0
    %839 = vmatpush1.bf16.msra.mxu0 0
    %840 = vmatprep.mubr.bf16.mxu0 0
    %841 = vmatmul.mubr.bf16.gmra.mrb[0].mxu0 %v735
    %v842 = vpop.f32.mrb[0].mxu0
    %v843 = vadd.f32 %v758, %v842
    %v844 = vpop.f32.mrb[0].mxu0
    %v845 = vpop.f32.mrb[0].mxu0
    %v846 = vadd.f32 %v758, %v845
    %v847 = vpop.f32.mrb[0].mxu0
    %848 = vmatprep.mubr.bf16.mxu0 0
    %849 = vmatmul.mubr.bf16.gmra.mrb[0].mxu0 %v736
    %v850 = vpop.f32.mrb[0].mxu0
    %v851 = vadd.f32 %v758, %v850
    %v852 = vpop.f32.mrb[0].mxu0
    %v853 = vpop.f32.mrb[0].mxu0
    %v854 = vadd.f32 %v758, %v853
    %v855 = vpop.f32.mrb[0].mxu0
    %856 = vdwg.mxu0
    %v857 = vmax.f32 %v843, 0.0
    %v858 = vmax.f32 %v846, 0.0
    %v859 = vmax.f32 %v851, 0.0
    %v860 = vmax.f32 %v854, 0.0
    %v861 = vpack.c.bf16 %v858, %v857
    %v862 = vpack.c.bf16 %v860, %v859
    %s863 = sld [smem:[#allocation3 + $0x1]]
    %s864 = scalar_lea.vmem [#allocation8], 64
    %v865 = vld [vmem:[%s864] sm:$0xf]
    %v866 = vld [vmem:[%s864 + $0x4] sm:$0xf]
    %v867 = vld [vmem:[%s864 + $0x8] sm:$0xf]
    %v868 = vld [vmem:[%s864 + $0xc] sm:$0xf]
    %v869 = vld [vmem:[%s864 + $0x10] sm:$0xf]
    %v870 = vld [vmem:[%s864 + $0x14] sm:$0xf]
    %v871 = vld [vmem:[%s864 + $0x18] sm:$0xf]
    %v872 = vld [vmem:[%s864 + $0x1c] sm:$0xf]
    %v873 = vld [vmem:[%s864 + $0x20] sm:$0xf]
    %v874 = vld [vmem:[%s864 + $0x24] sm:$0xf]
    %v875 = vld [vmem:[%s864 + $0x28] sm:$0xf]
    %v876 = vld [vmem:[%s864 + $0x2c] sm:$0xf]
    %v877 = vld [vmem:[%s864 + $0x30] sm:$0xf]
    %v878 = vld [vmem:[%s864 + $0x34] sm:$0xf]
    %v879 = vld [vmem:[%s864 + $0x38] sm:$0xf]
    %v880 = vld [vmem:[%s864 + $0x3c] sm:$0xf]
    %s881 = scalar_lea.vmem %s6, 1
    %v882 = vld [vmem:[%s881] sm:$0x1]
    %v884 = vlaneseq
    %v885 = vshrl.u32 %v884, 7
    %v886 = vsub.s32 0, %v885
    %v887 = vrot.slane %v882, %v886
    %v905 = vunpack.c.l.b16 %v865
    %v906 = vunpack.c.l.b16 %v866
    %v907 = vunpack.c.l.b16 %v867
    %v908 = vunpack.c.l.b16 %v868
    %v909 = vunpack.c.l.b16 %v869
    %v910 = vunpack.c.l.b16 %v870
    %v911 = vunpack.c.l.b16 %v871
    %v912 = vunpack.c.l.b16 %v872
    %v913 = vunpack.c.l.b16 %v873
    %v914 = vunpack.c.l.b16 %v874
    %v915 = vunpack.c.l.b16 %v875
    %v916 = vunpack.c.l.b16 %v876
    %v917 = vunpack.c.l.b16 %v877
    %v918 = vunpack.c.l.b16 %v878
    %v919 = vunpack.c.l.b16 %v879
    %v920 = vunpack.c.l.b16 %v880
    %v921 = vpack.c.b16 %v906, %v905
    %v922 = vpack.c.b16 %v908, %v907
    %v923 = vpack.c.b16 %v910, %v909
    %v924 = vpack.c.b16 %v912, %v911
    %v925 = vpack.c.b16 %v914, %v913
    %v926 = vpack.c.b16 %v916, %v915
    %v927 = vpack.c.b16 %v918, %v917
    %v928 = vpack.c.b16 %v920, %v919
    %937 = vmatprep.subr.bf16.mxu0 0
    %938 = vmatpush1.bf16.msra.mxu0 %v921
    %939 = vmatprep.subr.bf16.mxu0 0
    %940 = vmatpush1.bf16.msra.mxu0 %v922
    %941 = vmatprep.subr.bf16.mxu0 0
    %942 = vmatpush1.bf16.msra.mxu0 %v923
    %943 = vmatprep.subr.bf16.mxu0 0
    %944 = vmatpush1.bf16.msra.mxu0 %v924
    %945 = vmatprep.subr.bf16.mxu0 0
    %946 = vmatpush1.bf16.msra.mxu0 %v925
    %947 = vmatprep.subr.bf16.mxu0 0
    %948 = vmatpush1.bf16.msra.mxu0 %v926
    %949 = vmatprep.subr.bf16.mxu0 0
    %950 = vmatpush1.bf16.msra.mxu0 %v927
    %951 = vmatprep.subr.bf16.mxu0 0
    %952 = vmatpush1.bf16.msra.mxu0 %v928
    %953 = vmatprep.subr.bf16.mxu0 0
    %954 = vmatpush1.bf16.msra.mxu0 0
    %955 = vmatprep.subr.bf16.mxu0 0
    %956 = vmatpush1.bf16.msra.mxu0 0
    %957 = vmatprep.subr.bf16.mxu0 0
    %958 = vmatpush1.bf16.msra.mxu0 0
    %959 = vmatprep.subr.bf16.mxu0 0
    %960 = vmatpush1.bf16.msra.mxu0 0
    %961 = vmatprep.subr.bf16.mxu0 0
    %962 = vmatpush1.bf16.msra.mxu0 0
    %963 = vmatprep.subr.bf16.mxu0 0
    %964 = vmatpush1.bf16.msra.mxu0 0
    %965 = vmatprep.subr.bf16.mxu0 0
    %966 = vmatpush1.bf16.msra.mxu0 0
    %967 = vmatprep.subr.bf16.mxu0 0
    %968 = vmatpush1.bf16.msra.mxu0 0
    %969 = vmatprep.mubr.bf16.mxu0 0
    %970 = vmatmul.mubr.bf16.gmra.mrb[0].mxu0 %v353
    %v971 = vpop.f32.mrb[0].mxu0
    %v972 = vadd.f32 %v887, %v971
    %v973 = vpop.f32.mrb[0].mxu0
    %v974 = vpop.f32.mrb[0].mxu0
    %v975 = vadd.f32 %v887, %v974
    %v976 = vpop.f32.mrb[0].mxu0
    %977 = vmatprep.mubr.bf16.mxu0 0
    %978 = vmatmul.mubr.bf16.gmra.mrb[0].mxu0 %v354
    %v979 = vpop.f32.mrb[0].mxu0
    %v980 = vadd.f32 %v887, %v979
    %v981 = vpop.f32.mrb[0].mxu0
    %v982 = vpop.f32.mrb[0].mxu0
    %v983 = vadd.f32 %v887, %v982
    %v984 = vpop.f32.mrb[0].mxu0
    %985 = vdwg.mxu0
    %986 = vmatprep.subr.bf16.mxu0 %v862
    %987 = vmatpush1.bf16.msra.mxu0 %v861
    %988 = vmatprep.subr.bf16.mxu0 0
    %989 = vmatpush1.bf16.msra.mxu0 0
    %990 = vmatprep.subr.bf16.mxu0 0
    %991 = vmatpush1.bf16.msra.mxu0 0
    %992 = vmatprep.subr.bf16.mxu0 0
    %993 = vmatpush1.bf16.msra.mxu0 0
    %994 = vmatprep.subr.bf16.mxu0 0
    %995 = vmatpush1.bf16.msra.mxu0 0
    %996 = vmatprep.subr.bf16.mxu0 0
    %997 = vmatpush1.bf16.msra.mxu0 0
    %998 = vmatprep.subr.bf16.mxu0 0
    %999 = vmatpush1.bf16.msra.mxu0 0
    %1000 = vmatprep.subr.bf16.mxu0 0
    %1001 = vmatpush1.bf16.msra.mxu0 0
    %1002 = vmatprep.subr.bf16.mxu0 0
    %1003 = vmatpush1.bf16.msra.mxu0 0
    %1004 = vmatprep.subr.bf16.mxu0 0
    %1005 = vmatpush1.bf16.msra.mxu0 0
    %1006 = vmatprep.subr.bf16.mxu0 0
    %1007 = vmatpush1.bf16.msra.mxu0 0
    %1008 = vmatprep.subr.bf16.mxu0 0
    %1009 = vmatpush1.bf16.msra.mxu0 0
    %1010 = vmatprep.subr.bf16.mxu0 0
    %1011 = vmatpush1.bf16.msra.mxu0 0
    %1012 = vmatprep.subr.bf16.mxu0 0
    %1013 = vmatpush1.bf16.msra.mxu0 0
    %1014 = vmatprep.subr.bf16.mxu0 0
    %1015 = vmatpush1.bf16.msra.mxu0 0
    %1016 = vmatprep.subr.bf16.mxu0 0
    %1017 = vmatpush1.bf16.msra.mxu0 0
    %1018 = vmatprep.mubr.bf16.mxu0 0
    %1019 = vmatmul.mubr.bf16.gmra.mrb[0].mxu0 %v457
    %v1020 = vpop.f32.mrb[0].mxu0
    %v1021 = vadd.f32 %v972, %v1020
    %v1022 = vpop.f32.mrb[0].mxu0
    %v1023 = vadd.f32 %v972, %v1022
    %v1024 = vpop.f32.mrb[0].mxu0
    %v1025 = vadd.f32 %v975, %v1024
    %v1026 = vpop.f32.mrb[0].mxu0
    %v1027 = vadd.f32 %v975, %v1026
    %1028 = vmatprep.mubr.bf16.mxu0 0
    %1029 = vmatmul.mubr.bf16.gmra.mrb[0].mxu0 %v460
    %v1030 = vpop.f32.mrb[0].mxu0
    %v1031 = vadd.f32 %v980, %v1030
    %v1032 = vpop.f32.mrb[0].mxu0
    %v1033 = vadd.f32 %v980, %v1032
    %v1034 = vpop.f32.mrb[0].mxu0
    %v1035 = vadd.f32 %v983, %v1034
    %v1036 = vpop.f32.mrb[0].mxu0
    %v1037 = vadd.f32 %v983, %v1036
    %1038 = vdwg.mxu0
    %v1039 = vmax.f32 %v1021, 0.0
    %v1040 = vmax.f32 %v1023, 0.0
    %v1041 = vmax.f32 %v1025, 0.0
    %v1042 = vmax.f32 %v1027, 0.0
    %v1043 = vmax.f32 %v1031, 0.0
    %v1044 = vmax.f32 %v1033, 0.0
    %v1045 = vmax.f32 %v1035, 0.0
    %v1046 = vmax.f32 %v1037, 0.0
    %v1047 = vpack.c.bf16 %v1041, %v1039
    %v1048 = vpack.c.bf16 %v1042, %v1040
    %v1049 = vpack.c.bf16 %v1045, %v1043
    %v1050 = vpack.c.bf16 %v1046, %v1044
    %v1051 = vstv %s863
    %v1052 = vmul.f32 %v1051, %v857
    %v1053 = vmul.f32 %v1051, %v859
    %v1054 = vmul.f32 %v1051, %v858
    %v1055 = vmul.f32 %v1051, %v860
    %1056 = vmatprep.subr.bf16.mxu0 %v1048
    %1057 = vmatpush1.bf16.msra.mxu0 %v1047
    %1058 = vmatprep.subr.bf16.mxu0 %v1050
    %1059 = vmatpush1.bf16.msra.mxu0 %v1049
    %1060 = vmatprep.subr.bf16.mxu0 0
    %1061 = vmatpush1.bf16.msra.mxu0 0
    %1062 = vmatprep.subr.bf16.mxu0 0
    %1063 = vmatpush1.bf16.msra.mxu0 0
    %1064 = vmatprep.subr.bf16.mxu0 0
    %1065 = vmatpush1.bf16.msra.mxu0 0
    %1066 = vmatprep.subr.bf16.mxu0 0
    %1067 = vmatpush1.bf16.msra.mxu0 0
    %1068 = vmatprep.subr.bf16.mxu0 0
    %1069 = vmatpush1.bf16.msra.mxu0 0
    %1070 = vmatprep.subr.bf16.mxu0 0
    %1071 = vmatpush1.bf16.msra.mxu0 0
    %1072 = vmatprep.subr.bf16.mxu0 0
    %1073 = vmatpush1.bf16.msra.mxu0 0
    %1074 = vmatprep.subr.bf16.mxu0 0
    %1075 = vmatpush1.bf16.msra.mxu0 0
    %1076 = vmatprep.subr.bf16.mxu0 0
    %1077 = vmatpush1.bf16.msra.mxu0 0
    %1078 = vmatprep.subr.bf16.mxu0 0
    %1079 = vmatpush1.bf16.msra.mxu0 0
    %1080 = vmatprep.subr.bf16.mxu0 0
    %1081 = vmatpush1.bf16.msra.mxu0 0
    %1082 = vmatprep.subr.bf16.mxu0 0
    %1083 = vmatpush1.bf16.msra.mxu0 0
    %1084 = vmatprep.subr.bf16.mxu0 0
    %1085 = vmatpush1.bf16.msra.mxu0 0
    %1086 = vmatprep.subr.bf16.mxu0 0
    %1087 = vmatpush1.bf16.msra.mxu0 0
    %1088 = vmatprep.mubr.bf16.mxu0 0
    %1089 = vmatmul.mubr.bf16.gmra.mrb[0].mxu0 %v542
    %v1090 = vpop.f32.mrb[0].mxu0
    %v1091 = vadd.f32 %v1052, %v1090
    %v1092 = vpop.f32.mrb[0].mxu0
    %v1093 = vadd.f32 %v1053, %v1092
    %v1094 = vpop.f32.mrb[0].mxu0
    %v1095 = vadd.f32 %v1054, %v1094
    %v1096 = vpop.f32.mrb[0].mxu0
    %v1097 = vadd.f32 %v1055, %v1096
    %1098 = vdwg.mxu0
    %v1099 = vpack.c.bf16 %v1095, %v1091
    %v1100 = vpack.c.bf16 %v1097, %v1093
    %s1101 = scalar_lea.vmem [#allocation10], 64
    %v1102 = vld [vmem:[%s1101] sm:$0xf]
    %v1103 = vld [vmem:[%s1101 + $0x4] sm:$0xf]
    %v1104 = vld [vmem:[%s1101 + $0x8] sm:$0xf]
    %v1105 = vld [vmem:[%s1101 + $0xc] sm:$0xf]
    %v1106 = vld [vmem:[%s1101 + $0x10] sm:$0xf]
    %v1107 = vld [vmem:[%s1101 + $0x14] sm:$0xf]
    %v1108 = vld [vmem:[%s1101 + $0x18] sm:$0xf]
    %v1109 = vld [vmem:[%s1101 + $0x1c] sm:$0xf]
    %v1110 = vld [vmem:[%s1101 + $0x20] sm:$0xf]
    %v1111 = vld [vmem:[%s1101 + $0x24] sm:$0xf]
    %v1112 = vld [vmem:[%s1101 + $0x28] sm:$0xf]
    %v1113 = vld [vmem:[%s1101 + $0x2c] sm:$0xf]
    %v1114 = vld [vmem:[%s1101 + $0x30] sm:$0xf]
    %v1115 = vld [vmem:[%s1101 + $0x34] sm:$0xf]
    %v1116 = vld [vmem:[%s1101 + $0x38] sm:$0xf]
    %v1117 = vld [vmem:[%s1101 + $0x3c] sm:$0xf]
    %s1118 = scalar_lea.vmem [#allocation11], 1
    %v1119 = vld [vmem:[%s1118] sm:$0x1]
    %v1121 = vlaneseq
    %v1122 = vshrl.u32 %v1121, 7
    %v1123 = vsub.s32 0, %v1122
    %v1124 = vrot.slane %v1119, %v1123
    %v1142 = vunpack.c.l.b16 %v1102
    %v1143 = vunpack.c.l.b16 %v1103
    %v1144 = vunpack.c.l.b16 %v1104
    %v1145 = vunpack.c.l.b16 %v1105
    %v1146 = vunpack.c.l.b16 %v1106
    %v1147 = vunpack.c.l.b16 %v1107
    %v1148 = vunpack.c.l.b16 %v1108
    %v1149 = vunpack.c.l.b16 %v1109
    %v1150 = vunpack.c.l.b16 %v1110
    %v1151 = vunpack.c.l.b16 %v1111
    %v1152 = vunpack.c.l.b16 %v1112
    %v1153 = vunpack.c.l.b16 %v1113
    %v1154 = vunpack.c.l.b16 %v1114
    %v1155 = vunpack.c.l.b16 %v1115
    %v1156 = vunpack.c.l.b16 %v1116
    %v1157 = vunpack.c.l.b16 %v1117
    %v1158 = vpack.c.b16 %v1143, %v1142
    %v1159 = vpack.c.b16 %v1145, %v1144
    %v1160 = vpack.c.b16 %v1147, %v1146
    %v1161 = vpack.c.b16 %v1149, %v1148
    %v1162 = vpack.c.b16 %v1151, %v1150
    %v1163 = vpack.c.b16 %v1153, %v1152
    %v1164 = vpack.c.b16 %v1155, %v1154
    %v1165 = vpack.c.b16 %v1157, %v1156
    %1174 = vmatprep.subr.bf16.mxu0 0
    %1175 = vmatpush1.bf16.msra.mxu0 %v1158
    %1176 = vmatprep.subr.bf16.mxu0 0
    %1177 = vmatpush1.bf16.msra.mxu0 %v1159
    %1178 = vmatprep.subr.bf16.mxu0 0
    %1179 = vmatpush1.bf16.msra.mxu0 %v1160
    %1180 = vmatprep.subr.bf16.mxu0 0
    %1181 = vmatpush1.bf16.msra.mxu0 %v1161
    %1182 = vmatprep.subr.bf16.mxu0 0
    %1183 = vmatpush1.bf16.msra.mxu0 %v1162
    %1184 = vmatprep.subr.bf16.mxu0 0
    %1185 = vmatpush1.bf16.msra.mxu0 %v1163
    %1186 = vmatprep.subr.bf16.mxu0 0
    %1187 = vmatpush1.bf16.msra.mxu0 %v1164
    %1188 = vmatprep.subr.bf16.mxu0 0
    %1189 = vmatpush1.bf16.msra.mxu0 %v1165
    %1190 = vmatprep.subr.bf16.mxu0 0
    %1191 = vmatpush1.bf16.msra.mxu0 0
    %1192 = vmatprep.subr.bf16.mxu0 0
    %1193 = vmatpush1.bf16.msra.mxu0 0
    %1194 = vmatprep.subr.bf16.mxu0 0
    %1195 = vmatpush1.bf16.msra.mxu0 0
    %1196 = vmatprep.subr.bf16.mxu0 0
    %1197 = vmatpush1.bf16.msra.mxu0 0
    %1198 = vmatprep.subr.bf16.mxu0 0
    %1199 = vmatpush1.bf16.msra.mxu0 0
    %1200 = vmatprep.subr.bf16.mxu0 0
    %1201 = vmatpush1.bf16.msra.mxu0 0
    %1202 = vmatprep.subr.bf16.mxu0 0
    %1203 = vmatpush1.bf16.msra.mxu0 0
    %1204 = vmatprep.subr.bf16.mxu0 0
    %1205 = vmatpush1.bf16.msra.mxu0 0
    %1206 = vmatprep.mubr.bf16.mxu0 0
    %1207 = vmatmul.mubr.bf16.gmra.mrb[0].mxu0 %v1099
    %v1208 = vpop.f32.mrb[0].mxu0
    %v1209 = vadd.f32 %v1124, %v1208
    %v1210 = vpop.f32.mrb[0].mxu0
    %v1211 = vpop.f32.mrb[0].mxu0
    %v1212 = vadd.f32 %v1124, %v1211
    %v1213 = vpop.f32.mrb[0].mxu0
    %1214 = vmatprep.mubr.bf16.mxu0 0
    %1215 = vmatmul.mubr.bf16.gmra.mrb[0].mxu0 %v1100
    %v1216 = vpop.f32.mrb[0].mxu0
    %v1217 = vadd.f32 %v1124, %v1216
    %v1218 = vpop.f32.mrb[0].mxu0
    %v1219 = vpop.f32.mrb[0].mxu0
    %v1220 = vadd.f32 %v1124, %v1219
    %v1221 = vpop.f32.mrb[0].mxu0
    %1222 = vdwg.mxu0
    %s1223 = scalar_lea.vmem [#allocation13], 1
    %v1224 = vld [vmem:[%s1223] sm:$0x1]
    %v1226 = vlaneseq
    %v1227 = vshrl.u32 %v1226, 7
    %v1228 = vsub.s32 0, %v1227
    %v1229 = vrot.slane %v1224, %v1228
    %v1231 = vmul.f32 %v1209, %v1229
    %v1232 = vmul.f32 %v1212, %v1229
    %v1233 = vmul.f32 %v1217, %v1229
    %v1234 = vmul.f32 %v1220, %v1229
    %s1235 = scalar_lea.vmem [#allocation14], 1
    %v1236 = vld [vmem:[%s1235] sm:$0x1]
    %v1238 = vlaneseq
    %v1239 = vshrl.u32 %v1238, 7
    %v1240 = vsub.s32 0, %v1239
    %v1241 = vrot.slane %v1236, %v1240
    %v1243 = vadd.f32 %v1231, %v1241
    %v1244 = vadd.f32 %v1232, %v1241
    %v1245 = vadd.f32 %v1233, %v1241
    %v1246 = vadd.f32 %v1234, %v1241
    %v1247 = vmax.f32 %v1243, 0.0
    %v1248 = vmax.f32 %v1244, 0.0
    %v1249 = vmax.f32 %v1245, 0.0
    %v1250 = vmax.f32 %v1246, 0.0
    %v1251 = vpack.c.bf16 %v1248, %v1247
    %v1252 = vpack.c.bf16 %v1250, %v1249
    %s1253 = scalar_lea.vmem [#allocation16], 64
    %v1254 = vld [vmem:[%s1253] sm:$0xf]
    %v1255 = vld [vmem:[%s1253 + $0x4] sm:$0xf]
    %v1256 = vld [vmem:[%s1253 + $0x8] sm:$0xf]
    %v1257 = vld [vmem:[%s1253 + $0xc] sm:$0xf]
    %v1258 = vld [vmem:[%s1253 + $0x10] sm:$0xf]
    %v1259 = vld [vmem:[%s1253 + $0x14] sm:$0xf]
    %v1260 = vld [vmem:[%s1253 + $0x18] sm:$0xf]
    %v1261 = vld [vmem:[%s1253 + $0x1c] sm:$0xf]
    %v1262 = vld [vmem:[%s1253 + $0x20] sm:$0xf]
    %v1263 = vld [vmem:[%s1253 + $0x24] sm:$0xf]
    %v1264 = vld [vmem:[%s1253 + $0x28] sm:$0xf]
    %v1265 = vld [vmem:[%s1253 + $0x2c] sm:$0xf]
    %v1266 = vld [vmem:[%s1253 + $0x30] sm:$0xf]
    %v1267 = vld [vmem:[%s1253 + $0x34] sm:$0xf]
    %v1268 = vld [vmem:[%s1253 + $0x38] sm:$0xf]
    %v1269 = vld [vmem:[%s1253 + $0x3c] sm:$0xf]
    %s1270 = scalar_lea.vmem [#allocation17], 1
    %v1271 = vld [vmem:[%s1270] sm:$0x1]
    %v1273 = vlaneseq
    %v1274 = vshrl.u32 %v1273, 7
    %v1275 = vsub.s32 0, %v1274
    %v1276 = vrot.slane %v1271, %v1275
    %v1294 = vunpack.c.l.b16 %v1254
    %v1295 = vunpack.c.l.b16 %v1255
    %v1296 = vunpack.c.l.b16 %v1256
    %v1297 = vunpack.c.l.b16 %v1257
    %v1298 = vunpack.c.l.b16 %v1258
    %v1299 = vunpack.c.l.b16 %v1259
    %v1300 = vunpack.c.l.b16 %v1260
    %v1301 = vunpack.c.l.b16 %v1261
    %v1302 = vunpack.c.l.b16 %v1262
    %v1303 = vunpack.c.l.b16 %v1263
    %v1304 = vunpack.c.l.b16 %v1264
    %v1305 = vunpack.c.l.b16 %v1265
    %v1306 = vunpack.c.l.b16 %v1266
    %v1307 = vunpack.c.l.b16 %v1267
    %v1308 = vunpack.c.l.b16 %v1268
    %v1309 = vunpack.c.l.b16 %v1269
    %v1310 = vpack.c.b16 %v1295, %v1294
    %v1311 = vpack.c.b16 %v1297, %v1296
    %v1312 = vpack.c.b16 %v1299, %v1298
    %v1313 = vpack.c.b16 %v1301, %v1300
    %v1314 = vpack.c.b16 %v1303, %v1302
    %v1315 = vpack.c.b16 %v1305, %v1304
    %v1316 = vpack.c.b16 %v1307, %v1306
    %v1317 = vpack.c.b16 %v1309, %v1308
    %1326 = vmatprep.subr.bf16.mxu0 0
    %1327 = vmatpush1.bf16.msra.mxu0 %v1310
    %1328 = vmatprep.subr.bf16.mxu0 0
    %1329 = vmatpush1.bf16.msra.mxu0 %v1311
    %1330 = vmatprep.subr.bf16.mxu0 0
    %1331 = vmatpush1.bf16.msra.mxu0 %v1312
    %1332 = vmatprep.subr.bf16.mxu0 0
    %1333 = vmatpush1.bf16.msra.mxu0 %v1313
    %1334 = vmatprep.subr.bf16.mxu0 0
    %1335 = vmatpush1.bf16.msra.mxu0 %v1314
    %1336 = vmatprep.subr.bf16.mxu0 0
    %1337 = vmatpush1.bf16.msra.mxu0 %v1315
    %1338 = vmatprep.subr.bf16.mxu0 0
    %1339 = vmatpush1.bf16.msra.mxu0 %v1316
    %1340 = vmatprep.subr.bf16.mxu0 0
    %1341 = vmatpush1.bf16.msra.mxu0 %v1317
    %1342 = vmatprep.subr.bf16.mxu0 0
    %1343 = vmatpush1.bf16.msra.mxu0 0
    %1344 = vmatprep.subr.bf16.mxu0 0
    %1345 = vmatpush1.bf16.msra.mxu0 0
    %1346 = vmatprep.subr.bf16.mxu0 0
    %1347 = vmatpush1.bf16.msra.mxu0 0
    %1348 = vmatprep.subr.bf16.mxu0 0
    %1349 = vmatpush1.bf16.msra.mxu0 0
    %1350 = vmatprep.subr.bf16.mxu0 0
    %1351 = vmatpush1.bf16.msra.mxu0 0
    %1352 = vmatprep.subr.bf16.mxu0 0
    %1353 = vmatpush1.bf16.msra.mxu0 0
    %1354 = vmatprep.subr.bf16.mxu0 0
    %1355 = vmatpush1.bf16.msra.mxu0 0
    %1356 = vmatprep.subr.bf16.mxu0 0
    %1357 = vmatpush1.bf16.msra.mxu0 0
    %1358 = vmatprep.mubr.bf16.mxu0 0
    %1359 = vmatmul.mubr.bf16.gmra.mrb[0].mxu0 %v1251
    %v1360 = vpop.f32.mrb[0].mxu0
    %v1361 = vadd.f32 %v1276, %v1360
    %v1362 = vpop.f32.mrb[0].mxu0
    %v1363 = vpop.f32.mrb[0].mxu0
    %v1364 = vadd.f32 %v1276, %v1363
    %v1365 = vpop.f32.mrb[0].mxu0
    %1366 = vmatprep.mubr.bf16.mxu0 0
    %1367 = vmatmul.mubr.bf16.gmra.mrb[0].mxu0 %v1252
    %v1368 = vpop.f32.mrb[0].mxu0
    %v1369 = vadd.f32 %v1276, %v1368
    %v1370 = vpop.f32.mrb[0].mxu0
    %v1371 = vpop.f32.mrb[0].mxu0
    %v1372 = vadd.f32 %v1276, %v1371
    %v1373 = vpop.f32.mrb[0].mxu0
    %1374 = vdwg.mxu0
    %v1375 = vmax.f32 %v1361, 0.0
    %v1376 = vmax.f32 %v1364, 0.0
    %v1377 = vmax.f32 %v1369, 0.0
    %v1378 = vmax.f32 %v1372, 0.0
    %v1379 = vpack.c.bf16 %v1376, %v1375
    %v1380 = vpack.c.bf16 %v1378, %v1377
    %s1381 = sld [smem:[#allocation3 + $0x2]]
    %s1382 = scalar_lea.vmem [#allocation8], 128
    %v1383 = vld [vmem:[%s1382] sm:$0xf]
    %v1384 = vld [vmem:[%s1382 + $0x4] sm:$0xf]
    %v1385 = vld [vmem:[%s1382 + $0x8] sm:$0xf]
    %v1386 = vld [vmem:[%s1382 + $0xc] sm:$0xf]
    %v1387 = vld [vmem:[%s1382 + $0x10] sm:$0xf]
    %v1388 = vld [vmem:[%s1382 + $0x14] sm:$0xf]
    %v1389 = vld [vmem:[%s1382 + $0x18] sm:$0xf]
    %v1390 = vld [vmem:[%s1382 + $0x1c] sm:$0xf]
    %v1391 = vld [vmem:[%s1382 + $0x20] sm:$0xf]
    %v1392 = vld [vmem:[%s1382 + $0x24] sm:$0xf]
    %v1393 = vld [vmem:[%s1382 + $0x28] sm:$0xf]
    %v1394 = vld [vmem:[%s1382 + $0x2c] sm:$0xf]
    %v1395 = vld [vmem:[%s1382 + $0x30] sm:$0xf]
    %v1396 = vld [vmem:[%s1382 + $0x34] sm:$0xf]
    %v1397 = vld [vmem:[%s1382 + $0x38] sm:$0xf]
    %v1398 = vld [vmem:[%s1382 + $0x3c] sm:$0xf]
    %s1399 = scalar_lea.vmem %s6, 2
    %v1400 = vld [vmem:[%s1399] sm:$0x1]
    %v1402 = vlaneseq
    %v1403 = vshrl.u32 %v1402, 7
    %v1404 = vsub.s32 0, %v1403
    %v1405 = vrot.slane %v1400, %v1404
    %v1423 = vunpack.c.l.b16 %v1383
    %v1424 = vunpack.c.l.b16 %v1384
    %v1425 = vunpack.c.l.b16 %v1385
    %v1426 = vunpack.c.l.b16 %v1386
    %v1427 = vunpack.c.l.b16 %v1387
    %v1428 = vunpack.c.l.b16 %v1388
    %v1429 = vunpack.c.l.b16 %v1389
    %v1430 = vunpack.c.l.b16 %v1390
    %v1431 = vunpack.c.l.b16 %v1391
    %v1432 = vunpack.c.l.b16 %v1392
    %v1433 = vunpack.c.l.b16 %v1393
    %v1434 = vunpack.c.l.b16 %v1394
    %v1435 = vunpack.c.l.b16 %v1395
    %v1436 = vunpack.c.l.b16 %v1396
    %v1437 = vunpack.c.l.b16 %v1397
    %v1438 = vunpack.c.l.b16 %v1398
    %v1439 = vpack.c.b16 %v1424, %v1423
    %v1440 = vpack.c.b16 %v1426, %v1425
    %v1441 = vpack.c.b16 %v1428, %v1427
    %v1442 = vpack.c.b16 %v1430, %v1429
    %v1443 = vpack.c.b16 %v1432, %v1431
    %v1444 = vpack.c.b16 %v1434, %v1433
    %v1445 = vpack.c.b16 %v1436, %v1435
    %v1446 = vpack.c.b16 %v1438, %v1437
    %1455 = vmatprep.subr.bf16.mxu0 0
    %1456 = vmatpush1.bf16.msra.mxu0 %v1439
    %1457 = vmatprep.subr.bf16.mxu0 0
    %1458 = vmatpush1.bf16.msra.mxu0 %v1440
    %1459 = vmatprep.subr.bf16.mxu0 0
    %1460 = vmatpush1.bf16.msra.mxu0 %v1441
    %1461 = vmatprep.subr.bf16.mxu0 0
    %1462 = vmatpush1.bf16.msra.mxu0 %v1442
    %1463 = vmatprep.subr.bf16.mxu0 0
    %1464 = vmatpush1.bf16.msra.mxu0 %v1443
    %1465 = vmatprep.subr.bf16.mxu0 0
    %1466 = vmatpush1.bf16.msra.mxu0 %v1444
    %1467 = vmatprep.subr.bf16.mxu0 0
    %1468 = vmatpush1.bf16.msra.mxu0 %v1445
    %1469 = vmatprep.subr.bf16.mxu0 0
    %1470 = vmatpush1.bf16.msra.mxu0 %v1446
    %1471 = vmatprep.subr.bf16.mxu0 0
    %1472 = vmatpush1.bf16.msra.mxu0 0
    %1473 = vmatprep.subr.bf16.mxu0 0
    %1474 = vmatpush1.bf16.msra.mxu0 0
    %1475 = vmatprep.subr.bf16.mxu0 0
    %1476 = vmatpush1.bf16.msra.mxu0 0
    %1477 = vmatprep.subr.bf16.mxu0 0
    %1478 = vmatpush1.bf16.msra.mxu0 0
    %1479 = vmatprep.subr.bf16.mxu0 0
    %1480 = vmatpush1.bf16.msra.mxu0 0
    %1481 = vmatprep.subr.bf16.mxu0 0
    %1482 = vmatpush1.bf16.msra.mxu0 0
    %1483 = vmatprep.subr.bf16.mxu0 0
    %1484 = vmatpush1.bf16.msra.mxu0 0
    %1485 = vmatprep.subr.bf16.mxu0 0
    %1486 = vmatpush1.bf16.msra.mxu0 0
    %1487 = vmatprep.mubr.bf16.mxu0 0
    %1488 = vmatmul.mubr.bf16.gmra.mrb[0].mxu0 %v353
    %v1489 = vpop.f32.mrb[0].mxu0
    %v1490 = vadd.f32 %v1405, %v1489
    %v1491 = vpop.f32.mrb[0].mxu0
    %v1492 = vpop.f32.mrb[0].mxu0
    %v1493 = vadd.f32 %v1405, %v1492
    %v1494 = vpop.f32.mrb[0].mxu0
    %1495 = vmatprep.mubr.bf16.mxu0 0
    %1496 = vmatmul.mubr.bf16.gmra.mrb[0].mxu0 %v354
    %v1497 = vpop.f32.mrb[0].mxu0
    %v1498 = vadd.f32 %v1405, %v1497
    %v1499 = vpop.f32.mrb[0].mxu0
    %v1500 = vpop.f32.mrb[0].mxu0
    %v1501 = vadd.f32 %v1405, %v1500
    %v1502 = vpop.f32.mrb[0].mxu0
    %1503 = vdwg.mxu0
    %1504 = vmatprep.subr.bf16.mxu0 %v1380
    %1505 = vmatpush1.bf16.msra.mxu0 %v1379
    %1506 = vmatprep.subr.bf16.mxu0 0
    %1507 = vmatpush1.bf16.msra.mxu0 0
    %1508 = vmatprep.subr.bf16.mxu0 0
    %1509 = vmatpush1.bf16.msra.mxu0 0
    %1510 = vmatprep.subr.bf16.mxu0 0
    %1511 = vmatpush1.bf16.msra.mxu0 0
    %1512 = vmatprep.subr.bf16.mxu0 0
    %1513 = vmatpush1.bf16.msra.mxu0 0
    %1514 = vmatprep.subr.bf16.mxu0 0
    %1515 = vmatpush1.bf16.msra.mxu0 0
    %1516 = vmatprep.subr.bf16.mxu0 0
    %1517 = vmatpush1.bf16.msra.mxu0 0
    %1518 = vmatprep.subr.bf16.mxu0 0
    %1519 = vmatpush1.bf16.msra.mxu0 0
    %1520 = vmatprep.subr.bf16.mxu0 0
    %1521 = vmatpush1.bf16.msra.mxu0 0
    %1522 = vmatprep.subr.bf16.mxu0 0
    %1523 = vmatpush1.bf16.msra.mxu0 0
    %1524 = vmatprep.subr.bf16.mxu0 0
    %1525 = vmatpush1.bf16.msra.mxu0 0
    %1526 = vmatprep.subr.bf16.mxu0 0
    %1527 = vmatpush1.bf16.msra.mxu0 0
    %1528 = vmatprep.subr.bf16.mxu0 0
    %1529 = vmatpush1.bf16.msra.mxu0 0
    %1530 = vmatprep.subr.bf16.mxu0 0
    %1531 = vmatpush1.bf16.msra.mxu0 0
    %1532 = vmatprep.subr.bf16.mxu0 0
    %1533 = vmatpush1.bf16.msra.mxu0 0
    %1534 = vmatprep.subr.bf16.mxu0 0
    %1535 = vmatpush1.bf16.msra.mxu0 0
    %1536 = vmatprep.mubr.bf16.mxu0 0
    %1537 = vmatmul.mubr.bf16.gmra.mrb[0].mxu0 %v457
    %v1538 = vpop.f32.mrb[0].mxu0
    %v1539 = vadd.f32 %v1490, %v1538
    %v1540 = vpop.f32.mrb[0].mxu0
    %v1541 = vadd.f32 %v1490, %v1540
    %v1542 = vpop.f32.mrb[0].mxu0
    %v1543 = vadd.f32 %v1493, %v1542
    %v1544 = vpop.f32.mrb[0].mxu0
    %v1545 = vadd.f32 %v1493, %v1544
    %1546 = vmatprep.mubr.bf16.mxu0 0
    %1547 = vmatmul.mubr.bf16.gmra.mrb[0].mxu0 %v460
    %v1548 = vpop.f32.mrb[0].mxu0
    %v1549 = vadd.f32 %v1498, %v1548
    %v1550 = vpop.f32.mrb[0].mxu0
    %v1551 = vadd.f32 %v1498, %v1550
    %v1552 = vpop.f32.mrb[0].mxu0
    %v1553 = vadd.f32 %v1501, %v1552
    %v1554 = vpop.f32.mrb[0].mxu0
    %v1555 = vadd.f32 %v1501, %v1554
    %1556 = vdwg.mxu0
    %v1557 = vmax.f32 %v1539, 0.0
    %v1558 = vmax.f32 %v1541, 0.0
    %v1559 = vmax.f32 %v1543, 0.0
    %v1560 = vmax.f32 %v1545, 0.0
    %v1561 = vmax.f32 %v1549, 0.0
    %v1562 = vmax.f32 %v1551, 0.0
    %v1563 = vmax.f32 %v1553, 0.0
    %v1564 = vmax.f32 %v1555, 0.0
    %v1565 = vpack.c.bf16 %v1559, %v1557
    %v1566 = vpack.c.bf16 %v1560, %v1558
    %v1567 = vpack.c.bf16 %v1563, %v1561
    %v1568 = vpack.c.bf16 %v1564, %v1562
    %v1569 = vstv %s1381
    %v1570 = vmul.f32 %v1569, %v1375
    %v1571 = vmul.f32 %v1569, %v1377
    %v1572 = vmul.f32 %v1569, %v1376
    %v1573 = vmul.f32 %v1569, %v1378
    %1574 = vmatprep.subr.bf16.mxu0 %v1566
    %1575 = vmatpush1.bf16.msra.mxu0 %v1565
    %1576 = vmatprep.subr.bf16.mxu0 %v1568
    %1577 = vmatpush1.bf16.msra.mxu0 %v1567
    %1578 = vmatprep.subr.bf16.mxu0 0
    %1579 = vmatpush1.bf16.msra.mxu0 0
    %1580 = vmatprep.subr.bf16.mxu0 0
    %1581 = vmatpush1.bf16.msra.mxu0 0
    %1582 = vmatprep.subr.bf16.mxu0 0
    %1583 = vmatpush1.bf16.msra.mxu0 0
    %1584 = vmatprep.subr.bf16.mxu0 0
    %1585 = vmatpush1.bf16.msra.mxu0 0
    %1586 = vmatprep.subr.bf16.mxu0 0
    %1587 = vmatpush1.bf16.msra.mxu0 0
    %1588 = vmatprep.subr.bf16.mxu0 0
    %1589 = vmatpush1.bf16.msra.mxu0 0
    %1590 = vmatprep.subr.bf16.mxu0 0
    %1591 = vmatpush1.bf16.msra.mxu0 0
    %1592 = vmatprep.subr.bf16.mxu0 0
    %1593 = vmatpush1.bf16.msra.mxu0 0
    %1594 = vmatprep.subr.bf16.mxu0 0
    %1595 = vmatpush1.bf16.msra.mxu0 0
    %1596 = vmatprep.subr.bf16.mxu0 0
    %1597 = vmatpush1.bf16.msra.mxu0 0
    %1598 = vmatprep.subr.bf16.mxu0 0
    %1599 = vmatpush1.bf16.msra.mxu0 0
    %1600 = vmatprep.subr.bf16.mxu0 0
    %1601 = vmatpush1.bf16.msra.mxu0 0
    %1602 = vmatprep.subr.bf16.mxu0 0
    %1603 = vmatpush1.bf16.msra.mxu0 0
    %1604 = vmatprep.subr.bf16.mxu0 0
    %1605 = vmatpush1.bf16.msra.mxu0 0
    %1606 = vmatprep.mubr.bf16.mxu0 0
    %1607 = vmatmul.mubr.bf16.gmra.mrb[0].mxu0 %v542
    %v1608 = vpop.f32.mrb[0].mxu0
    %v1609 = vadd.f32 %v1570, %v1608
    %v1610 = vpop.f32.mrb[0].mxu0
    %v1611 = vadd.f32 %v1571, %v1610
    %v1612 = vpop.f32.mrb[0].mxu0
    %v1613 = vadd.f32 %v1572, %v1612
    %v1614 = vpop.f32.mrb[0].mxu0
    %v1615 = vadd.f32 %v1573, %v1614
    %1616 = vdwg.mxu0
    %v1617 = vpack.c.bf16 %v1613, %v1609
    %v1618 = vpack.c.bf16 %v1615, %v1611
    %s1619 = scalar_lea.vmem [#allocation10], 128
    %v1620 = vld [vmem:[%s1619] sm:$0xf]
    %v1621 = vld [vmem:[%s1619 + $0x4] sm:$0xf]
    %v1622 = vld [vmem:[%s1619 + $0x8] sm:$0xf]
    %v1623 = vld [vmem:[%s1619 + $0xc] sm:$0xf]
    %v1624 = vld [vmem:[%s1619 + $0x10] sm:$0xf]
    %v1625 = vld [vmem:[%s1619 + $0x14] sm:$0xf]
    %v1626 = vld [vmem:[%s1619 + $0x18] sm:$0xf]
    %v1627 = vld [vmem:[%s1619 + $0x1c] sm:$0xf]
    %v1628 = vld [vmem:[%s1619 + $0x20] sm:$0xf]
    %v1629 = vld [vmem:[%s1619 + $0x24] sm:$0xf]
    %v1630 = vld [vmem:[%s1619 + $0x28] sm:$0xf]
    %v1631 = vld [vmem:[%s1619 + $0x2c] sm:$0xf]
    %v1632 = vld [vmem:[%s1619 + $0x30] sm:$0xf]
    %v1633 = vld [vmem:[%s1619 + $0x34] sm:$0xf]
    %v1634 = vld [vmem:[%s1619 + $0x38] sm:$0xf]
    %v1635 = vld [vmem:[%s1619 + $0x3c] sm:$0xf]
    %s1636 = scalar_lea.vmem [#allocation11], 2
    %v1637 = vld [vmem:[%s1636] sm:$0x1]
    %v1639 = vlaneseq
    %v1640 = vshrl.u32 %v1639, 7
    %v1641 = vsub.s32 0, %v1640
    %v1642 = vrot.slane %v1637, %v1641
    %v1660 = vunpack.c.l.b16 %v1620
    %v1661 = vunpack.c.l.b16 %v1621
    %v1662 = vunpack.c.l.b16 %v1622
    %v1663 = vunpack.c.l.b16 %v1623
    %v1664 = vunpack.c.l.b16 %v1624
    %v1665 = vunpack.c.l.b16 %v1625
    %v1666 = vunpack.c.l.b16 %v1626
    %v1667 = vunpack.c.l.b16 %v1627
    %v1668 = vunpack.c.l.b16 %v1628
    %v1669 = vunpack.c.l.b16 %v1629
    %v1670 = vunpack.c.l.b16 %v1630
    %v1671 = vunpack.c.l.b16 %v1631
    %v1672 = vunpack.c.l.b16 %v1632
    %v1673 = vunpack.c.l.b16 %v1633
    %v1674 = vunpack.c.l.b16 %v1634
    %v1675 = vunpack.c.l.b16 %v1635
    %v1676 = vpack.c.b16 %v1661, %v1660
    %v1677 = vpack.c.b16 %v1663, %v1662
    %v1678 = vpack.c.b16 %v1665, %v1664
    %v1679 = vpack.c.b16 %v1667, %v1666
    %v1680 = vpack.c.b16 %v1669, %v1668
    %v1681 = vpack.c.b16 %v1671, %v1670
    %v1682 = vpack.c.b16 %v1673, %v1672
    %v1683 = vpack.c.b16 %v1675, %v1674
    %1692 = vmatprep.subr.bf16.mxu0 0
    %1693 = vmatpush1.bf16.msra.mxu0 %v1676
    %1694 = vmatprep.subr.bf16.mxu0 0
    %1695 = vmatpush1.bf16.msra.mxu0 %v1677
    %1696 = vmatprep.subr.bf16.mxu0 0
    %1697 = vmatpush1.bf16.msra.mxu0 %v1678
    %1698 = vmatprep.subr.bf16.mxu0 0
    %1699 = vmatpush1.bf16.msra.mxu0 %v1679
    %1700 = vmatprep.subr.bf16.mxu0 0
    %1701 = vmatpush1.bf16.msra.mxu0 %v1680
    %1702 = vmatprep.subr.bf16.mxu0 0
    %1703 = vmatpush1.bf16.msra.mxu0 %v1681
    %1704 = vmatprep.subr.bf16.mxu0 0
    %1705 = vmatpush1.bf16.msra.mxu0 %v1682
    %1706 = vmatprep.subr.bf16.mxu0 0
    %1707 = vmatpush1.bf16.msra.mxu0 %v1683
    %1708 = vmatprep.subr.bf16.mxu0 0
    %1709 = vmatpush1.bf16.msra.mxu0 0
    %1710 = vmatprep.subr.bf16.mxu0 0
    %1711 = vmatpush1.bf16.msra.mxu0 0
    %1712 = vmatprep.subr.bf16.mxu0 0
    %1713 = vmatpush1.bf16.msra.mxu0 0
    %1714 = vmatprep.subr.bf16.mxu0 0
    %1715 = vmatpush1.bf16.msra.mxu0 0
    %1716 = vmatprep.subr.bf16.mxu0 0
    %1717 = vmatpush1.bf16.msra.mxu0 0
    %1718 = vmatprep.subr.bf16.mxu0 0
    %1719 = vmatpush1.bf16.msra.mxu0 0
    %1720 = vmatprep.subr.bf16.mxu0 0
    %1721 = vmatpush1.bf16.msra.mxu0 0
    %1722 = vmatprep.subr.bf16.mxu0 0
    %1723 = vmatpush1.bf16.msra.mxu0 0
    %1724 = vmatprep.mubr.bf16.mxu0 0
    %1725 = vmatmul.mubr.bf16.gmra.mrb[0].mxu0 %v1617
    %v1726 = vpop.f32.mrb[0].mxu0
    %v1727 = vadd.f32 %v1642, %v1726
    %v1728 = vpop.f32.mrb[0].mxu0
    %v1729 = vpop.f32.mrb[0].mxu0
    %v1730 = vadd.f32 %v1642, %v1729
    %v1731 = vpop.f32.mrb[0].mxu0
    %1732 = vmatprep.mubr.bf16.mxu0 0
    %1733 = vmatmul.mubr.bf16.gmra.mrb[0].mxu0 %v1618
    %v1734 = vpop.f32.mrb[0].mxu0
    %v1735 = vadd.f32 %v1642, %v1734
    %v1736 = vpop.f32.mrb[0].mxu0
    %v1737 = vpop.f32.mrb[0].mxu0
    %v1738 = vadd.f32 %v1642, %v1737
    %v1739 = vpop.f32.mrb[0].mxu0
    %1740 = vdwg.mxu0
    %s1741 = scalar_lea.vmem [#allocation13], 2
    %v1742 = vld [vmem:[%s1741] sm:$0x1]
    %v1744 = vlaneseq
    %v1745 = vshrl.u32 %v1744, 7
    %v1746 = vsub.s32 0, %v1745
    %v1747 = vrot.slane %v1742, %v1746
    %v1749 = vmul.f32 %v1727, %v1747
    %v1750 = vmul.f32 %v1730, %v1747
    %v1751 = vmul.f32 %v1735, %v1747
    %v1752 = vmul.f32 %v1738, %v1747
    %s1753 = scalar_lea.vmem [#allocation14], 2
    %v1754 = vld [vmem:[%s1753] sm:$0x1]
    %v1756 = vlaneseq
    %v1757 = vshrl.u32 %v1756, 7
    %v1758 = vsub.s32 0, %v1757
    %v1759 = vrot.slane %v1754, %v1758
    %v1761 = vadd.f32 %v1749, %v1759
    %v1762 = vadd.f32 %v1750, %v1759
    %v1763 = vadd.f32 %v1751, %v1759
    %v1764 = vadd.f32 %v1752, %v1759
    %v1765 = vmax.f32 %v1761, 0.0
    %v1766 = vmax.f32 %v1762, 0.0
    %v1767 = vmax.f32 %v1763, 0.0
    %v1768 = vmax.f32 %v1764, 0.0
    %v1769 = vpack.c.bf16 %v1766, %v1765
    %v1770 = vpack.c.bf16 %v1768, %v1767
    %s1771 = scalar_lea.vmem [#allocation16], 128
    %v1772 = vld [vmem:[%s1771] sm:$0xf]
    %v1773 = vld [vmem:[%s1771 + $0x4] sm:$0xf]
    %v1774 = vld [vmem:[%s1771 + $0x8] sm:$0xf]
    %v1775 = vld [vmem:[%s1771 + $0xc] sm:$0xf]
    %v1776 = vld [vmem:[%s1771 + $0x10] sm:$0xf]
    %v1777 = vld [vmem:[%s1771 + $0x14] sm:$0xf]
    %v1778 = vld [vmem:[%s1771 + $0x18] sm:$0xf]
    %v1779 = vld [vmem:[%s1771 + $0x1c] sm:$0xf]
    %v1780 = vld [vmem:[%s1771 + $0x20] sm:$0xf]
    %v1781 = vld [vmem:[%s1771 + $0x24] sm:$0xf]
    %v1782 = vld [vmem:[%s1771 + $0x28] sm:$0xf]
    %v1783 = vld [vmem:[%s1771 + $0x2c] sm:$0xf]
    %v1784 = vld [vmem:[%s1771 + $0x30] sm:$0xf]
    %v1785 = vld [vmem:[%s1771 + $0x34] sm:$0xf]
    %v1786 = vld [vmem:[%s1771 + $0x38] sm:$0xf]
    %v1787 = vld [vmem:[%s1771 + $0x3c] sm:$0xf]
    %s1788 = scalar_lea.vmem [#allocation17], 2
    %v1789 = vld [vmem:[%s1788] sm:$0x1]
    %v1791 = vlaneseq
    %v1792 = vshrl.u32 %v1791, 7
    %v1793 = vsub.s32 0, %v1792
    %v1794 = vrot.slane %v1789, %v1793
    %v1812 = vunpack.c.l.b16 %v1772
    %v1813 = vunpack.c.l.b16 %v1773
    %v1814 = vunpack.c.l.b16 %v1774
    %v1815 = vunpack.c.l.b16 %v1775
    %v1816 = vunpack.c.l.b16 %v1776
    %v1817 = vunpack.c.l.b16 %v1777
    %v1818 = vunpack.c.l.b16 %v1778
    %v1819 = vunpack.c.l.b16 %v1779
    %v1820 = vunpack.c.l.b16 %v1780
    %v1821 = vunpack.c.l.b16 %v1781
    %v1822 = vunpack.c.l.b16 %v1782
    %v1823 = vunpack.c.l.b16 %v1783
    %v1824 = vunpack.c.l.b16 %v1784
    %v1825 = vunpack.c.l.b16 %v1785
    %v1826 = vunpack.c.l.b16 %v1786
    %v1827 = vunpack.c.l.b16 %v1787
    %v1828 = vpack.c.b16 %v1813, %v1812
    %v1829 = vpack.c.b16 %v1815, %v1814
    %v1830 = vpack.c.b16 %v1817, %v1816
    %v1831 = vpack.c.b16 %v1819, %v1818
    %v1832 = vpack.c.b16 %v1821, %v1820
    %v1833 = vpack.c.b16 %v1823, %v1822
    %v1834 = vpack.c.b16 %v1825, %v1824
    %v1835 = vpack.c.b16 %v1827, %v1826
    %1844 = vmatprep.subr.bf16.mxu0 0
    %1845 = vmatpush1.bf16.msra.mxu0 %v1828
    %1846 = vmatprep.subr.bf16.mxu0 0
    %1847 = vmatpush1.bf16.msra.mxu0 %v1829
    %1848 = vmatprep.subr.bf16.mxu0 0
    %1849 = vmatpush1.bf16.msra.mxu0 %v1830
    %1850 = vmatprep.subr.bf16.mxu0 0
    %1851 = vmatpush1.bf16.msra.mxu0 %v1831
    %1852 = vmatprep.subr.bf16.mxu0 0
    %1853 = vmatpush1.bf16.msra.mxu0 %v1832
    %1854 = vmatprep.subr.bf16.mxu0 0
    %1855 = vmatpush1.bf16.msra.mxu0 %v1833
    %1856 = vmatprep.subr.bf16.mxu0 0
    %1857 = vmatpush1.bf16.msra.mxu0 %v1834
    %1858 = vmatprep.subr.bf16.mxu0 0
    %1859 = vmatpush1.bf16.msra.mxu0 %v1835
    %1860 = vmatprep.subr.bf16.mxu0 0
    %1861 = vmatpush1.bf16.msra.mxu0 0
    %1862 = vmatprep.subr.bf16.mxu0 0
    %1863 = vmatpush1.bf16.msra.mxu0 0
    %1864 = vmatprep.subr.bf16.mxu0 0
    %1865 = vmatpush1.bf16.msra.mxu0 0
    %1866 = vmatprep.subr.bf16.mxu0 0
    %1867 = vmatpush1.bf16.msra.mxu0 0
    %1868 = vmatprep.subr.bf16.mxu0 0
    %1869 = vmatpush1.bf16.msra.mxu0 0
    %1870 = vmatprep.subr.bf16.mxu0 0
    %1871 = vmatpush1.bf16.msra.mxu0 0
    %1872 = vmatprep.subr.bf16.mxu0 0
    %1873 = vmatpush1.bf16.msra.mxu0 0
    %1874 = vmatprep.subr.bf16.mxu0 0
    %1875 = vmatpush1.bf16.msra.mxu0 0
    %1876 = vmatprep.mubr.bf16.mxu0 0
    %1877 = vmatmul.mubr.bf16.gmra.mrb[0].mxu0 %v1769
    %v1878 = vpop.f32.mrb[0].mxu0
    %v1879 = vadd.f32 %v1794, %v1878
    %v1880 = vpop.f32.mrb[0].mxu0
    %v1881 = vpop.f32.mrb[0].mxu0
    %v1882 = vadd.f32 %v1794, %v1881
    %v1883 = vpop.f32.mrb[0].mxu0
    %1884 = vmatprep.mubr.bf16.mxu0 0
    %1885 = vmatmul.mubr.bf16.gmra.mrb[0].mxu0 %v1770
    %v1886 = vpop.f32.mrb[0].mxu0
    %v1887 = vadd.f32 %v1794, %v1886
    %v1888 = vpop.f32.mrb[0].mxu0
    %v1889 = vpop.f32.mrb[0].mxu0
    %v1890 = vadd.f32 %v1794, %v1889
    %v1891 = vpop.f32.mrb[0].mxu0
    %1892 = vdwg.mxu0
    %v1893 = vmax.f32 %v1879, 0.0
    %v1894 = vmax.f32 %v1882, 0.0
    %v1895 = vmax.f32 %v1887, 0.0
    %v1896 = vmax.f32 %v1890, 0.0
    %v1897 = vpack.c.bf16 %v1894, %v1893
    %v1898 = vpack.c.bf16 %v1896, %v1895
    %v1899 = vld [vmem:[#allocation19] sm:$0xff]
    %v1900 = vld [vmem:[#allocation19 + $0x8] sm:$0xff]
    %v1901 = vld [vmem:[#allocation19 + $0x10] sm:$0xff]
    %v1902 = vld [vmem:[#allocation19 + $0x18] sm:$0xff]
    %v1903 = vld [vmem:[#allocation19 + $0x20] sm:$0xff]
    %v1904 = vld [vmem:[#allocation19 + $0x28] sm:$0xff]
    %v1905 = vld [vmem:[#allocation19 + $0x30] sm:$0xff]
    %v1906 = vld [vmem:[#allocation19 + $0x38] sm:$0xff]
    %v1907 = vld [vmem:[#allocation19 + $0x40] sm:$0xff]
    %v1908 = vld [vmem:[#allocation19 + $0x48] sm:$0xff]
    %v1909 = vld [vmem:[#allocation19 + $0x50] sm:$0xff]
    %v1910 = vld [vmem:[#allocation19 + $0x58] sm:$0xff]
    %v1911 = vld [vmem:[#allocation19 + $0x60] sm:$0xff]
    %v1912 = vld [vmem:[#allocation19 + $0x68] sm:$0xff]
    %v1913 = vld [vmem:[#allocation19 + $0x70] sm:$0xff]
    %v1914 = vld [vmem:[#allocation19 + $0x78] sm:$0xff]
    %v1915 = vld [vmem:[#allocation19 + $0x80] sm:$0xff]
    %v1916 = vld [vmem:[#allocation19 + $0x88] sm:$0xff]
    %v1917 = vld [vmem:[#allocation19 + $0x90] sm:$0xff]
    %v1918 = vld [vmem:[#allocation19 + $0x98] sm:$0xff]
    %v1919 = vld [vmem:[#allocation19 + $0xa0] sm:$0xff]
    %v1920 = vld [vmem:[#allocation19 + $0xa8] sm:$0xff]
    %v1921 = vld [vmem:[#allocation19 + $0xb0] sm:$0xff]
    %v1922 = vld [vmem:[#allocation19 + $0xb8] sm:$0xff]
    %v1923 = vld [vmem:[#allocation19 + $0xc0] sm:$0xff]
    %v1924 = vld [vmem:[#allocation19 + $0xc8] sm:$0xff]
    %v1925 = vld [vmem:[#allocation19 + $0xd0] sm:$0xff]
    %v1926 = vld [vmem:[#allocation19 + $0xd8] sm:$0xff]
    %v1927 = vld [vmem:[#allocation19 + $0xe0] sm:$0xff]
    %v1928 = vld [vmem:[#allocation19 + $0xe8] sm:$0xff]
    %v1929 = vld [vmem:[#allocation19 + $0xf0] sm:$0xff]
    %v1930 = vld [vmem:[#allocation19 + $0xf8] sm:$0xff]
    %v1931 = vld [vmem:[#allocation19 + $0x100] sm:$0xff]
    %v1932 = vld [vmem:[#allocation19 + $0x108] sm:$0xff]
    %v1933 = vld [vmem:[#allocation19 + $0x110] sm:$0xff]
    %v1934 = vld [vmem:[#allocation19 + $0x118] sm:$0xff]
    %v1935 = vld [vmem:[#allocation19 + $0x120] sm:$0xff]
    %v1936 = vld [vmem:[#allocation19 + $0x128] sm:$0xff]
    %v1937 = vld [vmem:[#allocation19 + $0x130] sm:$0xff]
    %v1938 = vld [vmem:[#allocation19 + $0x138] sm:$0xff]
    %v1939 = vld [vmem:[#allocation19 + $0x140] sm:$0xff]
    %v1940 = vld [vmem:[#allocation19 + $0x148] sm:$0xff]
    %v1941 = vld [vmem:[#allocation19 + $0x150] sm:$0xff]
    %v1942 = vld [vmem:[#allocation19 + $0x158] sm:$0xff]
    %v1943 = vld [vmem:[#allocation19 + $0x160] sm:$0xff]
    %v1944 = vld [vmem:[#allocation19 + $0x168] sm:$0xff]
    %v1945 = vld [vmem:[#allocation19 + $0x170] sm:$0xff]
    %v1946 = vld [vmem:[#allocation19 + $0x178] sm:$0xff]
    %v1947 = vld [vmem:[#allocation19 + $0x180] sm:$0xff]
    %v1948 = vld [vmem:[#allocation19 + $0x188] sm:$0xff]
    %v1949 = vld [vmem:[#allocation19 + $0x190] sm:$0xff]
    %v1950 = vld [vmem:[#allocation19 + $0x198] sm:$0xff]
    %v1951 = vld [vmem:[#allocation19 + $0x1a0] sm:$0xff]
    %v1952 = vld [vmem:[#allocation19 + $0x1a8] sm:$0xff]
    %v1953 = vld [vmem:[#allocation19 + $0x1b0] sm:$0xff]
    %v1954 = vld [vmem:[#allocation19 + $0x1b8] sm:$0xff]
    %v1955 = vld [vmem:[#allocation19 + $0x1c0] sm:$0xff]
    %v1956 = vld [vmem:[#allocation19 + $0x1c8] sm:$0xff]
    %v1957 = vld [vmem:[#allocation19 + $0x1d0] sm:$0xff]
    %v1958 = vld [vmem:[#allocation19 + $0x1d8] sm:$0xff]
    %v1959 = vld [vmem:[#allocation19 + $0x1e0] sm:$0xff]
    %v1960 = vld [vmem:[#allocation19 + $0x1e8] sm:$0xff]
    %v1961 = vld [vmem:[#allocation19 + $0x1f0] sm:$0xff]
    %v1962 = vld [vmem:[#allocation19 + $0x1f8] sm:$0xff]
    %v2027 = vunpack.c.l.b16 %v1899
    %v2028 = vunpack.c.h.b16 %v1899
    %v2029 = vunpack.c.l.b16 %v1900
    %v2030 = vunpack.c.h.b16 %v1900
    %v2031 = vunpack.c.l.b16 %v1901
    %v2032 = vunpack.c.h.b16 %v1901
    %v2033 = vunpack.c.l.b16 %v1902
    %v2034 = vunpack.c.h.b16 %v1902
    %v2035 = vunpack.c.l.b16 %v1903
    %v2036 = vunpack.c.h.b16 %v1903
    %v2037 = vunpack.c.l.b16 %v1904
    %v2038 = vunpack.c.h.b16 %v1904
    %v2039 = vunpack.c.l.b16 %v1905
    %v2040 = vunpack.c.h.b16 %v1905
    %v2041 = vunpack.c.l.b16 %v1906
    %v2042 = vunpack.c.h.b16 %v1906
    %v2043 = vunpack.c.l.b16 %v1907
    %v2044 = vunpack.c.h.b16 %v1907
    %v2045 = vunpack.c.l.b16 %v1908
    %v2046 = vunpack.c.h.b16 %v1908
    %v2047 = vunpack.c.l.b16 %v1909
    %v2048 = vunpack.c.h.b16 %v1909
    %v2049 = vunpack.c.l.b16 %v1910
    %v2050 = vunpack.c.h.b16 %v1910
    %v2051 = vunpack.c.l.b16 %v1911
    %v2052 = vunpack.c.h.b16 %v1911
    %v2053 = vunpack.c.l.b16 %v1912
    %v2054 = vunpack.c.h.b16 %v1912
    %v2055 = vunpack.c.l.b16 %v1913
    %v2056 = vunpack.c.h.b16 %v1913
    %v2057 = vunpack.c.l.b16 %v1914
    %v2058 = vunpack.c.h.b16 %v1914
    %v2059 = vunpack.c.l.b16 %v1915
    %v2060 = vunpack.c.h.b16 %v1915
    %v2061 = vunpack.c.l.b16 %v1916
    %v2062 = vunpack.c.h.b16 %v1916
    %v2063 = vunpack.c.l.b16 %v1917
    %v2064 = vunpack.c.h.b16 %v1917
    %v2065 = vunpack.c.l.b16 %v1918
    %v2066 = vunpack.c.h.b16 %v1918
    %v2067 = vunpack.c.l.b16 %v1919
    %v2068 = vunpack.c.h.b16 %v1919
    %v2069 = vunpack.c.l.b16 %v1920
    %v2070 = vunpack.c.h.b16 %v1920
    %v2071 = vunpack.c.l.b16 %v1921
    %v2072 = vunpack.c.h.b16 %v1921
    %v2073 = vunpack.c.l.b16 %v1922
    %v2074 = vunpack.c.h.b16 %v1922
    %v2075 = vunpack.c.l.b16 %v1923
    %v2076 = vunpack.c.h.b16 %v1923
    %v2077 = vunpack.c.l.b16 %v1924
    %v2078 = vunpack.c.h.b16 %v1924
    %v2079 = vunpack.c.l.b16 %v1925
    %v2080 = vunpack.c.h.b16 %v1925
    %v2081 = vunpack.c.l.b16 %v1926
    %v2082 = vunpack.c.h.b16 %v1926
    %v2083 = vunpack.c.l.b16 %v1927
    %v2084 = vunpack.c.h.b16 %v1927
    %v2085 = vunpack.c.l.b16 %v1928
    %v2086 = vunpack.c.h.b16 %v1928
    %v2087 = vunpack.c.l.b16 %v1929
    %v2088 = vunpack.c.h.b16 %v1929
    %v2089 = vunpack.c.l.b16 %v1930
    %v2090 = vunpack.c.h.b16 %v1930
    %v2091 = vunpack.c.l.b16 %v1931
    %v2092 = vunpack.c.h.b16 %v1931
    %v2093 = vunpack.c.l.b16 %v1932
    %v2094 = vunpack.c.h.b16 %v1932
    %v2095 = vunpack.c.l.b16 %v1933
    %v2096 = vunpack.c.h.b16 %v1933
    %v2097 = vunpack.c.l.b16 %v1934
    %v2098 = vunpack.c.h.b16 %v1934
    %v2099 = vunpack.c.l.b16 %v1935
    %v2100 = vunpack.c.h.b16 %v1935
    %v2101 = vunpack.c.l.b16 %v1936
    %v2102 = vunpack.c.h.b16 %v1936
    %v2103 = vunpack.c.l.b16 %v1937
    %v2104 = vunpack.c.h.b16 %v1937
    %v2105 = vunpack.c.l.b16 %v1938
    %v2106 = vunpack.c.h.b16 %v1938
    %v2107 = vunpack.c.l.b16 %v1939
    %v2108 = vunpack.c.h.b16 %v1939
    %v2109 = vunpack.c.l.b16 %v1940
    %v2110 = vunpack.c.h.b16 %v1940
    %v2111 = vunpack.c.l.b16 %v1941
    %v2112 = vunpack.c.h.b16 %v1941
    %v2113 = vunpack.c.l.b16 %v1942
    %v2114 = vunpack.c.h.b16 %v1942
    %v2115 = vunpack.c.l.b16 %v1943
    %v2116 = vunpack.c.h.b16 %v1943
    %v2117 = vunpack.c.l.b16 %v1944
    %v2118 = vunpack.c.h.b16 %v1944
    %v2119 = vunpack.c.l.b16 %v1945
    %v2120 = vunpack.c.h.b16 %v1945
    %v2121 = vunpack.c.l.b16 %v1946
    %v2122 = vunpack.c.h.b16 %v1946
    %v2123 = vunpack.c.l.b16 %v1947
    %v2124 = vunpack.c.h.b16 %v1947
    %v2125 = vunpack.c.l.b16 %v1948
    %v2126 = vunpack.c.h.b16 %v1948
    %v2127 = vunpack.c.l.b16 %v1949
    %v2128 = vunpack.c.h.b16 %v1949
    %v2129 = vunpack.c.l.b16 %v1950
    %v2130 = vunpack.c.h.b16 %v1950
    %v2131 = vunpack.c.l.b16 %v1951
    %v2132 = vunpack.c.h.b16 %v1951
    %v2133 = vunpack.c.l.b16 %v1952
    %v2134 = vunpack.c.h.b16 %v1952
    %v2135 = vunpack.c.l.b16 %v1953
    %v2136 = vunpack.c.h.b16 %v1953
    %v2137 = vunpack.c.l.b16 %v1954
    %v2138 = vunpack.c.h.b16 %v1954
    %v2139 = vunpack.c.l.b16 %v1955
    %v2140 = vunpack.c.h.b16 %v1955
    %v2141 = vunpack.c.l.b16 %v1956
    %v2142 = vunpack.c.h.b16 %v1956
    %v2143 = vunpack.c.l.b16 %v1957
    %v2144 = vunpack.c.h.b16 %v1957
    %v2145 = vunpack.c.l.b16 %v1958
    %v2146 = vunpack.c.h.b16 %v1958
    %v2147 = vunpack.c.l.b16 %v1959
    %v2148 = vunpack.c.h.b16 %v1959
    %v2149 = vunpack.c.l.b16 %v1960
    %v2150 = vunpack.c.h.b16 %v1960
    %v2151 = vunpack.c.l.b16 %v1961
    %v2152 = vunpack.c.h.b16 %v1961
    %v2153 = vunpack.c.l.b16 %v1962
    %v2154 = vunpack.c.h.b16 %v1962
    %v2155 = vpack.c.b16 %v2035, %v2027
    %v2156 = vpack.c.b16 %v2036, %v2028
    %v2157 = vpack.c.b16 %v2037, %v2029
    %v2158 = vpack.c.b16 %v2038, %v2030
    %v2159 = vpack.c.b16 %v2039, %v2031
    %v2160 = vpack.c.b16 %v2040, %v2032
    %v2161 = vpack.c.b16 %v2041, %v2033
    %v2162 = vpack.c.b16 %v2042, %v2034
    %v2163 = vpack.c.b16 %v2051, %v2043
    %v2164 = vpack.c.b16 %v2052, %v2044
    %v2165 = vpack.c.b16 %v2053, %v2045
    %v2166 = vpack.c.b16 %v2054, %v2046
    %v2167 = vpack.c.b16 %v2055, %v2047
    %v2168 = vpack.c.b16 %v2056, %v2048
    %v2169 = vpack.c.b16 %v2057, %v2049
    %v2170 = vpack.c.b16 %v2058, %v2050
    %v2171 = vpack.c.b16 %v2067, %v2059
    %v2172 = vpack.c.b16 %v2068, %v2060
    %v2173 = vpack.c.b16 %v2069, %v2061
    %v2174 = vpack.c.b16 %v2070, %v2062
    %v2175 = vpack.c.b16 %v2071, %v2063
    %v2176 = vpack.c.b16 %v2072, %v2064
    %v2177 = vpack.c.b16 %v2073, %v2065
    %v2178 = vpack.c.b16 %v2074, %v2066
    %v2179 = vpack.c.b16 %v2083, %v2075
    %v2180 = vpack.c.b16 %v2084, %v2076
    %v2181 = vpack.c.b16 %v2085, %v2077
    %v2182 = vpack.c.b16 %v2086, %v2078
    %v2183 = vpack.c.b16 %v2087, %v2079
    %v2184 = vpack.c.b16 %v2088, %v2080
    %v2185 = vpack.c.b16 %v2089, %v2081
    %v2186 = vpack.c.b16 %v2090, %v2082
    %v2187 = vpack.c.b16 %v2099, %v2091
    %v2188 = vpack.c.b16 %v2100, %v2092
    %v2189 = vpack.c.b16 %v2101, %v2093
    %v2190 = vpack.c.b16 %v2102, %v2094
    %v2191 = vpack.c.b16 %v2103, %v2095
    %v2192 = vpack.c.b16 %v2104, %v2096
    %v2193 = vpack.c.b16 %v2105, %v2097
    %v2194 = vpack.c.b16 %v2106, %v2098
    %v2195 = vpack.c.b16 %v2115, %v2107
    %v2196 = vpack.c.b16 %v2116, %v2108
    %v2197 = vpack.c.b16 %v2117, %v2109
    %v2198 = vpack.c.b16 %v2118, %v2110
    %v2199 = vpack.c.b16 %v2119, %v2111
    %v2200 = vpack.c.b16 %v2120, %v2112
    %v2201 = vpack.c.b16 %v2121, %v2113
    %v2202 = vpack.c.b16 %v2122, %v2114
    %v2203 = vpack.c.b16 %v2131, %v2123
    %v2204 = vpack.c.b16 %v2132, %v2124
    %v2205 = vpack.c.b16 %v2133, %v2125
    %v2206 = vpack.c.b16 %v2134, %v2126
    %v2207 = vpack.c.b16 %v2135, %v2127
    %v2208 = vpack.c.b16 %v2136, %v2128
    %v2209 = vpack.c.b16 %v2137, %v2129
    %v2210 = vpack.c.b16 %v2138, %v2130
    %v2211 = vpack.c.b16 %v2147, %v2139
    %v2212 = vpack.c.b16 %v2148, %v2140
    %v2213 = vpack.c.b16 %v2149, %v2141
    %v2214 = vpack.c.b16 %v2150, %v2142
    %v2215 = vpack.c.b16 %v2151, %v2143
    %v2216 = vpack.c.b16 %v2152, %v2144
    %v2217 = vpack.c.b16 %v2153, %v2145
    %v2218 = vpack.c.b16 %v2154, %v2146
    %2283 = vmatprep.subr.bf16.mxu0 %v2156
    %2284 = vmatpush1.bf16.msra.mxu0 %v2155
    %2285 = vmatprep.subr.bf16.mxu0 %v2164
    %2286 = vmatpush1.bf16.msra.mxu0 %v2163
    %2287 = vmatprep.subr.bf16.mxu0 %v2172
    %2288 = vmatpush1.bf16.msra.mxu0 %v2171
    %2289 = vmatprep.subr.bf16.mxu0 %v2180
    %2290 = vmatpush1.bf16.msra.mxu0 %v2179
    %2291 = vmatprep.subr.bf16.mxu0 %v2188
    %2292 = vmatpush1.bf16.msra.mxu0 %v2187
    %2293 = vmatprep.subr.bf16.mxu0 %v2196
    %2294 = vmatpush1.bf16.msra.mxu0 %v2195
    %2295 = vmatprep.subr.bf16.mxu0 %v2204
    %2296 = vmatpush1.bf16.msra.mxu0 %v2203
    %2297 = vmatprep.subr.bf16.mxu0 %v2212
    %2298 = vmatpush1.bf16.msra.mxu0 %v2211
    %2299 = vmatprep.subr.bf16.mxu0 0
    %2300 = vmatpush1.bf16.msra.mxu0 0
    %2301 = vmatprep.subr.bf16.mxu0 0
    %2302 = vmatpush1.bf16.msra.mxu0 0
    %2303 = vmatprep.subr.bf16.mxu0 0
    %2304 = vmatpush1.bf16.msra.mxu0 0
    %2305 = vmatprep.subr.bf16.mxu0 0
    %2306 = vmatpush1.bf16.msra.mxu0 0
    %2307 = vmatprep.subr.bf16.mxu0 0
    %2308 = vmatpush1.bf16.msra.mxu0 0
    %2309 = vmatprep.subr.bf16.mxu0 0
    %2310 = vmatpush1.bf16.msra.mxu0 0
    %2311 = vmatprep.subr.bf16.mxu0 0
    %2312 = vmatpush1.bf16.msra.mxu0 0
    %2313 = vmatprep.subr.bf16.mxu0 0
    %2314 = vmatpush1.bf16.msra.mxu0 0
    %2315 = vmatprep.mubr.bf16.mxu0 0
    %2316 = vmatmul.mubr.bf16.gmra.mrb[0].mxu0 %v861
    %v2317 = vpop.f32.mrb[0].mxu0
    %v2318 = vadd.f32 0.0, %v2317
    %v2319 = vpop.f32.mrb[0].mxu0
    %v2320 = vadd.f32 0.0, %v2319
    %v2321 = vpop.f32.mrb[0].mxu0
    %v2322 = vadd.f32 0.0, %v2321
    %v2323 = vpop.f32.mrb[0].mxu0
    %v2324 = vadd.f32 0.0, %v2323
    %2325 = vmatprep.mubr.bf16.mxu0 0
    %2326 = vmatmul.mubr.bf16.gmra.mrb[0].mxu0 %v862
    %v2327 = vpop.f32.mrb[0].mxu0
    %v2328 = vadd.f32 0.0, %v2327
    %v2329 = vpop.f32.mrb[0].mxu0
    %v2330 = vadd.f32 0.0, %v2329
    %v2331 = vpop.f32.mrb[0].mxu0
    %v2332 = vadd.f32 0.0, %v2331
    %v2333 = vpop.f32.mrb[0].mxu0
    %v2334 = vadd.f32 0.0, %v2333
    %2335 = vmatprep.mubr.bf16.mxu0 0
    %2336 = vmatmul.mubr.bf16.gmra.mrb[0].mxu0 %v1379
    %v2337 = vpop.f32.mrb[0].mxu0
    %v2338 = vadd.f32 0.0, %v2337
    %v2339 = vpop.f32.mrb[0].mxu0
    %v2340 = vadd.f32 0.0, %v2339
    %v2341 = vpop.f32.mrb[0].mxu0
    %v2342 = vadd.f32 0.0, %v2341
    %v2343 = vpop.f32.mrb[0].mxu0
    %v2344 = vadd.f32 0.0, %v2343
    %2345 = vmatprep.mubr.bf16.mxu0 0
    %2346 = vmatmul.mubr.bf16.gmra.mrb[0].mxu0 %v1380
    %v2347 = vpop.f32.mrb[0].mxu0
    %v2348 = vadd.f32 0.0, %v2347
    %v2349 = vpop.f32.mrb[0].mxu0
    %v2350 = vadd.f32 0.0, %v2349
    %v2351 = vpop.f32.mrb[0].mxu0
    %v2352 = vadd.f32 0.0, %v2351
    %v2353 = vpop.f32.mrb[0].mxu0
    %v2354 = vadd.f32 0.0, %v2353
    %2355 = vmatprep.mubr.bf16.mxu0 0
    %2356 = vmatmul.mubr.bf16.gmra.mrb[0].mxu0 %v1897
    %v2357 = vpop.f32.mrb[0].mxu0
    %v2358 = vadd.f32 0.0, %v2357
    %v2359 = vpop.f32.mrb[0].mxu0
    %v2360 = vadd.f32 0.0, %v2359
    %v2361 = vpop.f32.mrb[0].mxu0
    %v2362 = vadd.f32 0.0, %v2361
    %v2363 = vpop.f32.mrb[0].mxu0
    %v2364 = vadd.f32 0.0, %v2363
    %2365 = vmatprep.mubr.bf16.mxu0 0
    %2366 = vmatmul.mubr.bf16.gmra.mrb[0].mxu0 %v1898
    %v2367 = vpop.f32.mrb[0].mxu0
    %v2368 = vadd.f32 0.0, %v2367
    %v2369 = vpop.f32.mrb[0].mxu0
    %v2370 = vadd.f32 0.0, %v2369
    %v2371 = vpop.f32.mrb[0].mxu0
    %v2372 = vadd.f32 0.0, %v2371
    %v2373 = vpop.f32.mrb[0].mxu0
    %v2374 = vadd.f32 0.0, %v2373
    %2375 = vdwg.mxu0
    %2376 = vmatprep.subr.bf16.mxu0 %v2158
    %2377 = vmatpush1.bf16.msra.mxu0 %v2157
    %2378 = vmatprep.subr.bf16.mxu0 %v2166
    %2379 = vmatpush1.bf16.msra.mxu0 %v2165
    %2380 = vmatprep.subr.bf16.mxu0 %v2174
    %2381 = vmatpush1.bf16.msra.mxu0 %v2173
    %2382 = vmatprep.subr.bf16.mxu0 %v2182
    %2383 = vmatpush1.bf16.msra.mxu0 %v2181
    %2384 = vmatprep.subr.bf16.mxu0 %v2190
    %2385 = vmatpush1.bf16.msra.mxu0 %v2189
    %2386 = vmatprep.subr.bf16.mxu0 %v2198
    %2387 = vmatpush1.bf16.msra.mxu0 %v2197
    %2388 = vmatprep.subr.bf16.mxu0 %v2206
    %2389 = vmatpush1.bf16.msra.mxu0 %v2205
    %2390 = vmatprep.subr.bf16.mxu0 %v2214
    %2391 = vmatpush1.bf16.msra.mxu0 %v2213
    %2392 = vmatprep.subr.bf16.mxu0 0
    %2393 = vmatpush1.bf16.msra.mxu0 0
    %2394 = vmatprep.subr.bf16.mxu0 0
    %2395 = vmatpush1.bf16.msra.mxu0 0
    %2396 = vmatprep.subr.bf16.mxu0 0
    %2397 = vmatpush1.bf16.msra.mxu0 0
    %2398 = vmatprep.subr.bf16.mxu0 0
    %2399 = vmatpush1.bf16.msra.mxu0 0
    %2400 = vmatprep.subr.bf16.mxu0 0
    %2401 = vmatpush1.bf16.msra.mxu0 0
    %2402 = vmatprep.subr.bf16.mxu0 0
    %2403 = vmatpush1.bf16.msra.mxu0 0
    %2404 = vmatprep.subr.bf16.mxu0 0
    %2405 = vmatpush1.bf16.msra.mxu0 0
    %2406 = vmatprep.subr.bf16.mxu0 0
    %2407 = vmatpush1.bf16.msra.mxu0 0
    %2408 = vmatprep.mubr.bf16.mxu0 0
    %2409 = vmatmul.mubr.bf16.gmra.mrb[0].mxu0 %v861
    %v2410 = vpop.f32.mrb[0].mxu0
    %v2411 = vadd.f32 0.0, %v2410
    %v2412 = vpop.f32.mrb[0].mxu0
    %v2413 = vadd.f32 0.0, %v2412
    %v2414 = vpop.f32.mrb[0].mxu0
    %v2415 = vadd.f32 0.0, %v2414
    %v2416 = vpop.f32.mrb[0].mxu0
    %v2417 = vadd.f32 0.0, %v2416
    %2418 = vmatprep.mubr.bf16.mxu0 0
    %2419 = vmatmul.mubr.bf16.gmra.mrb[0].mxu0 %v862
    %v2420 = vpop.f32.mrb[0].mxu0
    %v2421 = vadd.f32 0.0, %v2420
    %v2422 = vpop.f32.mrb[0].mxu0
    %v2423 = vadd.f32 0.0, %v2422
    %v2424 = vpop.f32.mrb[0].mxu0
    %v2425 = vadd.f32 0.0, %v2424
    %v2426 = vpop.f32.mrb[0].mxu0
    %v2427 = vadd.f32 0.0, %v2426
    %2428 = vmatprep.mubr.bf16.mxu0 0
    %2429 = vmatmul.mubr.bf16.gmra.mrb[0].mxu0 %v1379
    %v2430 = vpop.f32.mrb[0].mxu0
    %v2431 = vadd.f32 0.0, %v2430
    %v2432 = vpop.f32.mrb[0].mxu0
    %v2433 = vadd.f32 0.0, %v2432
    %v2434 = vpop.f32.mrb[0].mxu0
    %v2435 = vadd.f32 0.0, %v2434
    %v2436 = vpop.f32.mrb[0].mxu0
    %v2437 = vadd.f32 0.0, %v2436
    %2438 = vmatprep.mubr.bf16.mxu0 0
    %2439 = vmatmul.mubr.bf16.gmra.mrb[0].mxu0 %v1380
    %v2440 = vpop.f32.mrb[0].mxu0
    %v2441 = vadd.f32 0.0, %v2440
    %v2442 = vpop.f32.mrb[0].mxu0
    %v2443 = vadd.f32 0.0, %v2442
    %v2444 = vpop.f32.mrb[0].mxu0
    %v2445 = vadd.f32 0.0, %v2444
    %v2446 = vpop.f32.mrb[0].mxu0
    %v2447 = vadd.f32 0.0, %v2446
    %2448 = vmatprep.mubr.bf16.mxu0 0
    %2449 = vmatmul.mubr.bf16.gmra.mrb[0].mxu0 %v1897
    %v2450 = vpop.f32.mrb[0].mxu0
    %v2451 = vadd.f32 0.0, %v2450
    %v2452 = vpop.f32.mrb[0].mxu0
    %v2453 = vadd.f32 0.0, %v2452
    %v2454 = vpop.f32.mrb[0].mxu0
    %v2455 = vadd.f32 0.0, %v2454
    %v2456 = vpop.f32.mrb[0].mxu0
    %v2457 = vadd.f32 0.0, %v2456
    %2458 = vmatprep.mubr.bf16.mxu0 0
    %2459 = vmatmul.mubr.bf16.gmra.mrb[0].mxu0 %v1898
    %v2460 = vpop.f32.mrb[0].mxu0
    %v2461 = vadd.f32 0.0, %v2460
    %v2462 = vpop.f32.mrb[0].mxu0
    %v2463 = vadd.f32 0.0, %v2462
    %v2464 = vpop.f32.mrb[0].mxu0
    %v2465 = vadd.f32 0.0, %v2464
    %v2466 = vpop.f32.mrb[0].mxu0
    %v2467 = vadd.f32 0.0, %v2466
    %2468 = vdwg.mxu0
    %2469 = vmatprep.subr.bf16.mxu0 %v2160
    %2470 = vmatpush1.bf16.msra.mxu0 %v2159
    %2471 = vmatprep.subr.bf16.mxu0 %v2168
    %2472 = vmatpush1.bf16.msra.mxu0 %v2167
    %2473 = vmatprep.subr.bf16.mxu0 %v2176
    %2474 = vmatpush1.bf16.msra.mxu0 %v2175
    %2475 = vmatprep.subr.bf16.mxu0 %v2184
    %2476 = vmatpush1.bf16.msra.mxu0 %v2183
    %2477 = vmatprep.subr.bf16.mxu0 %v2192
    %2478 = vmatpush1.bf16.msra.mxu0 %v2191
    %2479 = vmatprep.subr.bf16.mxu0 %v2200
    %2480 = vmatpush1.bf16.msra.mxu0 %v2199
    %2481 = vmatprep.subr.bf16.mxu0 %v2208
    %2482 = vmatpush1.bf16.msra.mxu0 %v2207
    %2483 = vmatprep.subr.bf16.mxu0 %v2216
    %2484 = vmatpush1.bf16.msra.mxu0 %v2215
    %2485 = vmatprep.subr.bf16.mxu0 0
    %2486 = vmatpush1.bf16.msra.mxu0 0
    %2487 = vmatprep.subr.bf16.mxu0 0
    %2488 = vmatpush1.bf16.msra.mxu0 0
    %2489 = vmatprep.subr.bf16.mxu0 0
    %2490 = vmatpush1.bf16.msra.mxu0 0
    %2491 = vmatprep.subr.bf16.mxu0 0
    %2492 = vmatpush1.bf16.msra.mxu0 0
    %2493 = vmatprep.subr.bf16.mxu0 0
    %2494 = vmatpush1.bf16.msra.mxu0 0
    %2495 = vmatprep.subr.bf16.mxu0 0
    %2496 = vmatpush1.bf16.msra.mxu0 0
    %2497 = vmatprep.subr.bf16.mxu0 0
    %2498 = vmatpush1.bf16.msra.mxu0 0
    %2499 = vmatprep.subr.bf16.mxu0 0
    %2500 = vmatpush1.bf16.msra.mxu0 0
    %2501 = vmatprep.mubr.bf16.mxu0 0
    %2502 = vmatmul.mubr.bf16.gmra.mrb[0].mxu0 %v861
    %v2503 = vpop.f32.mrb[0].mxu0
    %v2504 = vadd.f32 0.0, %v2503
    %v2505 = vpop.f32.mrb[0].mxu0
    %v2506 = vadd.f32 0.0, %v2505
    %v2507 = vpop.f32.mrb[0].mxu0
    %v2508 = vadd.f32 0.0, %v2507
    %v2509 = vpop.f32.mrb[0].mxu0
    %v2510 = vadd.f32 0.0, %v2509
    %2511 = vmatprep.mubr.bf16.mxu0 0
    %2512 = vmatmul.mubr.bf16.gmra.mrb[0].mxu0 %v862
    %v2513 = vpop.f32.mrb[0].mxu0
    %v2514 = vadd.f32 0.0, %v2513
    %v2515 = vpop.f32.mrb[0].mxu0
    %v2516 = vadd.f32 0.0, %v2515
    %v2517 = vpop.f32.mrb[0].mxu0
    %v2518 = vadd.f32 0.0, %v2517
    %v2519 = vpop.f32.mrb[0].mxu0
    %v2520 = vadd.f32 0.0, %v2519
    %2521 = vmatprep.mubr.bf16.mxu0 0
    %2522 = vmatmul.mubr.bf16.gmra.mrb[0].mxu0 %v1379
    %v2523 = vpop.f32.mrb[0].mxu0
    %v2524 = vadd.f32 0.0, %v2523
    %v2525 = vpop.f32.mrb[0].mxu0
    %v2526 = vadd.f32 0.0, %v2525
    %v2527 = vpop.f32.mrb[0].mxu0
    %v2528 = vadd.f32 0.0, %v2527
    %v2529 = vpop.f32.mrb[0].mxu0
    %v2530 = vadd.f32 0.0, %v2529
    %2531 = vmatprep.mubr.bf16.mxu0 0
    %2532 = vmatmul.mubr.bf16.gmra.mrb[0].mxu0 %v1380
    %v2533 = vpop.f32.mrb[0].mxu0
    %v2534 = vadd.f32 0.0, %v2533
    %v2535 = vpop.f32.mrb[0].mxu0
    %v2536 = vadd.f32 0.0, %v2535
    %v2537 = vpop.f32.mrb[0].mxu0
    %v2538 = vadd.f32 0.0, %v2537
    %v2539 = vpop.f32.mrb[0].mxu0
    %v2540 = vadd.f32 0.0, %v2539
    %2541 = vmatprep.mubr.bf16.mxu0 0
    %2542 = vmatmul.mubr.bf16.gmra.mrb[0].mxu0 %v1897
    %v2543 = vpop.f32.mrb[0].mxu0
    %v2544 = vadd.f32 0.0, %v2543
    %v2545 = vpop.f32.mrb[0].mxu0
    %v2546 = vadd.f32 0.0, %v2545
    %v2547 = vpop.f32.mrb[0].mxu0
    %v2548 = vadd.f32 0.0, %v2547
    %v2549 = vpop.f32.mrb[0].mxu0
    %v2550 = vadd.f32 0.0, %v2549
    %2551 = vmatprep.mubr.bf16.mxu0 0
    %2552 = vmatmul.mubr.bf16.gmra.mrb[0].mxu0 %v1898
    %v2553 = vpop.f32.mrb[0].mxu0
    %v2554 = vadd.f32 0.0, %v2553
    %v2555 = vpop.f32.mrb[0].mxu0
    %v2556 = vadd.f32 0.0, %v2555
    %v2557 = vpop.f32.mrb[0].mxu0
    %v2558 = vadd.f32 0.0, %v2557
    %v2559 = vpop.f32.mrb[0].mxu0
    %v2560 = vadd.f32 0.0, %v2559
    %2561 = vdwg.mxu0
    %2562 = vmatprep.subr.bf16.mxu0 %v2162
    %2563 = vmatpush1.bf16.msra.mxu0 %v2161
    %2564 = vmatprep.subr.bf16.mxu0 %v2170
    %2565 = vmatpush1.bf16.msra.mxu0 %v2169
    %2566 = vmatprep.subr.bf16.mxu0 %v2178
    %2567 = vmatpush1.bf16.msra.mxu0 %v2177
    %2568 = vmatprep.subr.bf16.mxu0 %v2186
    %2569 = vmatpush1.bf16.msra.mxu0 %v2185
    %2570 = vmatprep.subr.bf16.mxu0 %v2194
    %2571 = vmatpush1.bf16.msra.mxu0 %v2193
    %2572 = vmatprep.subr.bf16.mxu0 %v2202
    %2573 = vmatpush1.bf16.msra.mxu0 %v2201
    %2574 = vmatprep.subr.bf16.mxu0 %v2210
    %2575 = vmatpush1.bf16.msra.mxu0 %v2209
    %2576 = vmatprep.subr.bf16.mxu0 %v2218
    %2577 = vmatpush1.bf16.msra.mxu0 %v2217
    %2578 = vmatprep.subr.bf16.mxu0 0
    %2579 = vmatpush1.bf16.msra.mxu0 0
    %2580 = vmatprep.subr.bf16.mxu0 0
    %2581 = vmatpush1.bf16.msra.mxu0 0
    %2582 = vmatprep.subr.bf16.mxu0 0
    %2583 = vmatpush1.bf16.msra.mxu0 0
    %2584 = vmatprep.subr.bf16.mxu0 0
    %2585 = vmatpush1.bf16.msra.mxu0 0
    %2586 = vmatprep.subr.bf16.mxu0 0
    %2587 = vmatpush1.bf16.msra.mxu0 0
    %2588 = vmatprep.subr.bf16.mxu0 0
    %2589 = vmatpush1.bf16.msra.mxu0 0
    %2590 = vmatprep.subr.bf16.mxu0 0
    %2591 = vmatpush1.bf16.msra.mxu0 0
    %2592 = vmatprep.subr.bf16.mxu0 0
    %2593 = vmatpush1.bf16.msra.mxu0 0
    %2594 = vmatprep.mubr.bf16.mxu0 0
    %2595 = vmatmul.mubr.bf16.gmra.mrb[0].mxu0 %v861
    %v2596 = vpop.f32.mrb[0].mxu0
    %v2597 = vadd.f32 0.0, %v2596
    %v2598 = vpop.f32.mrb[0].mxu0
    %v2599 = vadd.f32 0.0, %v2598
    %v2600 = vpop.f32.mrb[0].mxu0
    %v2601 = vadd.f32 0.0, %v2600
    %v2602 = vpop.f32.mrb[0].mxu0
    %v2603 = vadd.f32 0.0, %v2602
    %2604 = vmatprep.mubr.bf16.mxu0 0
    %2605 = vmatmul.mubr.bf16.gmra.mrb[0].mxu0 %v862
    %v2606 = vpop.f32.mrb[0].mxu0
    %v2607 = vadd.f32 0.0, %v2606
    %v2608 = vpop.f32.mrb[0].mxu0
    %v2609 = vadd.f32 0.0, %v2608
    %v2610 = vpop.f32.mrb[0].mxu0
    %v2611 = vadd.f32 0.0, %v2610
    %v2612 = vpop.f32.mrb[0].mxu0
    %v2613 = vadd.f32 0.0, %v2612
    %2614 = vmatprep.mubr.bf16.mxu0 0
    %2615 = vmatmul.mubr.bf16.gmra.mrb[0].mxu0 %v1379
    %v2616 = vpop.f32.mrb[0].mxu0
    %v2617 = vadd.f32 0.0, %v2616
    %v2618 = vpop.f32.mrb[0].mxu0
    %v2619 = vadd.f32 0.0, %v2618
    %v2620 = vpop.f32.mrb[0].mxu0
    %v2621 = vadd.f32 0.0, %v2620
    %v2622 = vpop.f32.mrb[0].mxu0
    %v2623 = vadd.f32 0.0, %v2622
    %2624 = vmatprep.mubr.bf16.mxu0 0
    %2625 = vmatmul.mubr.bf16.gmra.mrb[0].mxu0 %v1380
    %v2626 = vpop.f32.mrb[0].mxu0
    %v2627 = vadd.f32 0.0, %v2626
    %v2628 = vpop.f32.mrb[0].mxu0
    %v2629 = vadd.f32 0.0, %v2628
    %v2630 = vpop.f32.mrb[0].mxu0
    %v2631 = vadd.f32 0.0, %v2630
    %v2632 = vpop.f32.mrb[0].mxu0
    %v2633 = vadd.f32 0.0, %v2632
    %2634 = vmatprep.mubr.bf16.mxu0 0
    %2635 = vmatmul.mubr.bf16.gmra.mrb[0].mxu0 %v1897
    %v2636 = vpop.f32.mrb[0].mxu0
    %v2637 = vadd.f32 0.0, %v2636
    %v2638 = vpop.f32.mrb[0].mxu0
    %v2639 = vadd.f32 0.0, %v2638
    %v2640 = vpop.f32.mrb[0].mxu0
    %v2641 = vadd.f32 0.0, %v2640
    %v2642 = vpop.f32.mrb[0].mxu0
    %v2643 = vadd.f32 0.0, %v2642
    %2644 = vmatprep.mubr.bf16.mxu0 0
    %2645 = vmatmul.mubr.bf16.gmra.mrb[0].mxu0 %v1898
    %v2646 = vpop.f32.mrb[0].mxu0
    %v2647 = vadd.f32 0.0, %v2646
    %v2648 = vpop.f32.mrb[0].mxu0
    %v2649 = vadd.f32 0.0, %v2648
    %v2650 = vpop.f32.mrb[0].mxu0
    %v2651 = vadd.f32 0.0, %v2650
    %v2652 = vpop.f32.mrb[0].mxu0
    %v2653 = vadd.f32 0.0, %v2652
    %2654 = vdwg.mxu0
    %v2655 = vld [vmem:[#allocation20] sm:$0xff]
    %v2656 = vld [vmem:[#allocation20 + $0x8] sm:$0xff]
    %v2657 = vld [vmem:[#allocation20 + $0x10] sm:$0xff]
    %v2658 = vld [vmem:[#allocation20 + $0x18] sm:$0xff]
    %v2659 = vld [vmem:[#allocation20 + $0x20] sm:$0xff]
    %v2660 = vld [vmem:[#allocation20 + $0x28] sm:$0xff]
    %v2661 = vld [vmem:[#allocation20 + $0x30] sm:$0xff]
    %v2662 = vld [vmem:[#allocation20 + $0x38] sm:$0xff]
    %v2663 = vld [vmem:[#allocation20 + $0x40] sm:$0xff]
    %v2664 = vld [vmem:[#allocation20 + $0x48] sm:$0xff]
    %v2665 = vld [vmem:[#allocation20 + $0x50] sm:$0xff]
    %v2666 = vld [vmem:[#allocation20 + $0x58] sm:$0xff]
    %v2667 = vld [vmem:[#allocation20 + $0x60] sm:$0xff]
    %v2668 = vld [vmem:[#allocation20 + $0x68] sm:$0xff]
    %v2669 = vld [vmem:[#allocation20 + $0x70] sm:$0xff]
    %v2670 = vld [vmem:[#allocation20 + $0x78] sm:$0xff]
    %v2671 = vld [vmem:[#allocation20 + $0x80] sm:$0xff]
    %v2672 = vld [vmem:[#allocation20 + $0x88] sm:$0xff]
    %v2673 = vld [vmem:[#allocation20 + $0x90] sm:$0xff]
    %v2674 = vld [vmem:[#allocation20 + $0x98] sm:$0xff]
    %v2675 = vld [vmem:[#allocation20 + $0xa0] sm:$0xff]
    %v2676 = vld [vmem:[#allocation20 + $0xa8] sm:$0xff]
    %v2677 = vld [vmem:[#allocation20 + $0xb0] sm:$0xff]
    %v2678 = vld [vmem:[#allocation20 + $0xb8] sm:$0xff]
    %v2679 = vld [vmem:[#allocation20 + $0xc0] sm:$0xff]
    %v2680 = vld [vmem:[#allocation20 + $0xc8] sm:$0xff]
    %v2681 = vld [vmem:[#allocation20 + $0xd0] sm:$0xff]
    %v2682 = vld [vmem:[#allocation20 + $0xd8] sm:$0xff]
    %v2683 = vld [vmem:[#allocation20 + $0xe0] sm:$0xff]
    %v2684 = vld [vmem:[#allocation20 + $0xe8] sm:$0xff]
    %v2685 = vld [vmem:[#allocation20 + $0xf0] sm:$0xff]
    %v2686 = vld [vmem:[#allocation20 + $0xf8] sm:$0xff]
    %v2687 = vld [vmem:[#allocation22] sm:$0xf]
    %v2688 = vld [vmem:[%s16] sm:$0x1]
    %v2721 = vunpack.c.l.b16 %v2655
    %v2722 = vunpack.c.h.b16 %v2655
    %v2723 = vunpack.c.l.b16 %v2656
    %v2724 = vunpack.c.h.b16 %v2656
    %v2725 = vunpack.c.l.b16 %v2657
    %v2726 = vunpack.c.h.b16 %v2657
    %v2727 = vunpack.c.l.b16 %v2658
    %v2728 = vunpack.c.h.b16 %v2658
    %v2729 = vunpack.c.l.b16 %v2659
    %v2730 = vunpack.c.h.b16 %v2659
    %v2731 = vunpack.c.l.b16 %v2660
    %v2732 = vunpack.c.h.b16 %v2660
    %v2733 = vunpack.c.l.b16 %v2661
    %v2734 = vunpack.c.h.b16 %v2661
    %v2735 = vunpack.c.l.b16 %v2662
    %v2736 = vunpack.c.h.b16 %v2662
    %v2737 = vunpack.c.l.b16 %v2663
    %v2738 = vunpack.c.h.b16 %v2663
    %v2739 = vunpack.c.l.b16 %v2664
    %v2740 = vunpack.c.h.b16 %v2664
    %v2741 = vunpack.c.l.b16 %v2665
    %v2742 = vunpack.c.h.b16 %v2665
    %v2743 = vunpack.c.l.b16 %v2666
    %v2744 = vunpack.c.h.b16 %v2666
    %v2745 = vunpack.c.l.b16 %v2667
    %v2746 = vunpack.c.h.b16 %v2667
    %v2747 = vunpack.c.l.b16 %v2668
    %v2748 = vunpack.c.h.b16 %v2668
    %v2749 = vunpack.c.l.b16 %v2669
    %v2750 = vunpack.c.h.b16 %v2669
    %v2751 = vunpack.c.l.b16 %v2670
    %v2752 = vunpack.c.h.b16 %v2670
    %v2753 = vunpack.c.l.b16 %v2671
    %v2754 = vunpack.c.h.b16 %v2671
    %v2755 = vunpack.c.l.b16 %v2672
    %v2756 = vunpack.c.h.b16 %v2672
    %v2757 = vunpack.c.l.b16 %v2673
    %v2758 = vunpack.c.h.b16 %v2673
    %v2759 = vunpack.c.l.b16 %v2674
    %v2760 = vunpack.c.h.b16 %v2674
    %v2761 = vunpack.c.l.b16 %v2675
    %v2762 = vunpack.c.h.b16 %v2675
    %v2763 = vunpack.c.l.b16 %v2676
    %v2764 = vunpack.c.h.b16 %v2676
    %v2765 = vunpack.c.l.b16 %v2677
    %v2766 = vunpack.c.h.b16 %v2677
    %v2767 = vunpack.c.l.b16 %v2678
    %v2768 = vunpack.c.h.b16 %v2678
    %v2769 = vunpack.c.l.b16 %v2679
    %v2770 = vunpack.c.h.b16 %v2679
    %v2771 = vunpack.c.l.b16 %v2680
    %v2772 = vunpack.c.h.b16 %v2680
    %v2773 = vunpack.c.l.b16 %v2681
    %v2774 = vunpack.c.h.b16 %v2681
    %v2775 = vunpack.c.l.b16 %v2682
    %v2776 = vunpack.c.h.b16 %v2682
    %v2777 = vunpack.c.l.b16 %v2683
    %v2778 = vunpack.c.h.b16 %v2683
    %v2779 = vunpack.c.l.b16 %v2684
    %v2780 = vunpack.c.h.b16 %v2684
    %v2781 = vunpack.c.l.b16 %v2685
    %v2782 = vunpack.c.h.b16 %v2685
    %v2783 = vunpack.c.l.b16 %v2686
    %v2784 = vunpack.c.h.b16 %v2686
    %v2785 = vpack.c.b16 %v2725, %v2721
    %v2786 = vpack.c.b16 %v2726, %v2722
    %v2787 = vpack.c.b16 %v2727, %v2723
    %v2788 = vpack.c.b16 %v2728, %v2724
    %v2789 = vpack.c.b16 %v2733, %v2729
    %v2790 = vpack.c.b16 %v2734, %v2730
    %v2791 = vpack.c.b16 %v2735, %v2731
    %v2792 = vpack.c.b16 %v2736, %v2732
    %v2793 = vpack.c.b16 %v2741, %v2737
    %v2794 = vpack.c.b16 %v2742, %v2738
    %v2795 = vpack.c.b16 %v2743, %v2739
    %v2796 = vpack.c.b16 %v2744, %v2740
    %v2797 = vpack.c.b16 %v2749, %v2745
    %v2798 = vpack.c.b16 %v2750, %v2746
    %v2799 = vpack.c.b16 %v2751, %v2747
    %v2800 = vpack.c.b16 %v2752, %v2748
    %v2801 = vpack.c.b16 %v2757, %v2753
    %v2802 = vpack.c.b16 %v2758, %v2754
    %v2803 = vpack.c.b16 %v2759, %v2755
    %v2804 = vpack.c.b16 %v2760, %v2756
    %v2805 = vpack.c.b16 %v2765, %v2761
    %v2806 = vpack.c.b16 %v2766, %v2762
    %v2807 = vpack.c.b16 %v2767, %v2763
    %v2808 = vpack.c.b16 %v2768, %v2764
    %v2809 = vpack.c.b16 %v2773, %v2769
    %v2810 = vpack.c.b16 %v2774, %v2770
    %v2811 = vpack.c.b16 %v2775, %v2771
    %v2812 = vpack.c.b16 %v2776, %v2772
    %v2813 = vpack.c.b16 %v2781, %v2777
    %v2814 = vpack.c.b16 %v2782, %v2778
    %v2815 = vpack.c.b16 %v2783, %v2779
    %v2816 = vpack.c.b16 %v2784, %v2780
    %2849 = vmatprep.subr.bf16.mxu0 %v2786
    %2850 = vmatpush1.bf16.msra.mxu0 %v2785
    %2851 = vmatprep.subr.bf16.mxu0 %v2790
    %2852 = vmatpush1.bf16.msra.mxu0 %v2789
    %2853 = vmatprep.subr.bf16.mxu0 %v2794
    %2854 = vmatpush1.bf16.msra.mxu0 %v2793
    %2855 = vmatprep.subr.bf16.mxu0 %v2798
    %2856 = vmatpush1.bf16.msra.mxu0 %v2797
    %2857 = vmatprep.subr.bf16.mxu0 %v2802
    %2858 = vmatpush1.bf16.msra.mxu0 %v2801
    %2859 = vmatprep.subr.bf16.mxu0 %v2806
    %2860 = vmatpush1.bf16.msra.mxu0 %v2805
    %2861 = vmatprep.subr.bf16.mxu0 %v2810
    %2862 = vmatpush1.bf16.msra.mxu0 %v2809
    %2863 = vmatprep.subr.bf16.mxu0 %v2814
    %2864 = vmatpush1.bf16.msra.mxu0 %v2813
    %2865 = vmatprep.subr.bf16.mxu0 0
    %2866 = vmatpush1.bf16.msra.mxu0 0
    %2867 = vmatprep.subr.bf16.mxu0 0
    %2868 = vmatpush1.bf16.msra.mxu0 0
    %2869 = vmatprep.subr.bf16.mxu0 0
    %2870 = vmatpush1.bf16.msra.mxu0 0
    %2871 = vmatprep.subr.bf16.mxu0 0
    %2872 = vmatpush1.bf16.msra.mxu0 0
    %2873 = vmatprep.subr.bf16.mxu0 0
    %2874 = vmatpush1.bf16.msra.mxu0 0
    %2875 = vmatprep.subr.bf16.mxu0 0
    %2876 = vmatpush1.bf16.msra.mxu0 0
    %2877 = vmatprep.subr.bf16.mxu0 0
    %2878 = vmatpush1.bf16.msra.mxu0 0
    %2879 = vmatprep.subr.bf16.mxu0 0
    %2880 = vmatpush1.bf16.msra.mxu0 0
    %2881 = vmatprep.mubr.bf16.mxu0 0
    %2882 = vmatmul.mubr.bf16.gmra.mrb[0].mxu0 0
    %v2883 = vpop.f32.mrb[0].mxu0
    %v2884 = vadd.f32 0.0, %v2883
    %v2885 = vpop.f32.mrb[0].mxu0
    %v2886 = vadd.f32 0.0, %v2885
    %v2887 = vpop.f32.mrb[0].mxu0
    %v2888 = vadd.f32 0.0, %v2887
    %v2889 = vpop.f32.mrb[0].mxu0
    %v2890 = vadd.f32 0.0, %v2889
    %2891 = vmatprep.mubr.bf16.mxu0 0
    %2892 = vmatmul.mubr.bf16.gmra.mrb[0].mxu0 0
    %v2893 = vpop.f32.mrb[0].mxu0
    %v2894 = vadd.f32 0.0, %v2893
    %v2895 = vpop.f32.mrb[0].mxu0
    %v2896 = vadd.f32 0.0, %v2895
    %v2897 = vpop.f32.mrb[0].mxu0
    %v2898 = vadd.f32 0.0, %v2897
    %v2899 = vpop.f32.mrb[0].mxu0
    %v2900 = vadd.f32 0.0, %v2899
    %2901 = vdwg.mxu0
    %2902 = vmatprep.subr.bf16.mxu0 %v2788
    %2903 = vmatpush1.bf16.msra.mxu0 %v2787
    %2904 = vmatprep.subr.bf16.mxu0 %v2792
    %2905 = vmatpush1.bf16.msra.mxu0 %v2791
    %2906 = vmatprep.subr.bf16.mxu0 %v2796
    %2907 = vmatpush1.bf16.msra.mxu0 %v2795
    %2908 = vmatprep.subr.bf16.mxu0 %v2800
    %2909 = vmatpush1.bf16.msra.mxu0 %v2799
    %2910 = vmatprep.subr.bf16.mxu0 %v2804
    %2911 = vmatpush1.bf16.msra.mxu0 %v2803
    %2912 = vmatprep.subr.bf16.mxu0 %v2808
    %2913 = vmatpush1.bf16.msra.mxu0 %v2807
    %2914 = vmatprep.subr.bf16.mxu0 %v2812
    %2915 = vmatpush1.bf16.msra.mxu0 %v2811
    %2916 = vmatprep.subr.bf16.mxu0 %v2816
    %2917 = vmatpush1.bf16.msra.mxu0 %v2815
    %2918 = vmatprep.subr.bf16.mxu0 0
    %2919 = vmatpush1.bf16.msra.mxu0 0
    %2920 = vmatprep.subr.bf16.mxu0 0
    %2921 = vmatpush1.bf16.msra.mxu0 0
    %2922 = vmatprep.subr.bf16.mxu0 0
    %2923 = vmatpush1.bf16.msra.mxu0 0
    %2924 = vmatprep.subr.bf16.mxu0 0
    %2925 = vmatpush1.bf16.msra.mxu0 0
    %2926 = vmatprep.subr.bf16.mxu0 0
    %2927 = vmatpush1.bf16.msra.mxu0 0
    %2928 = vmatprep.subr.bf16.mxu0 0
    %2929 = vmatpush1.bf16.msra.mxu0 0
    %2930 = vmatprep.subr.bf16.mxu0 0
    %2931 = vmatpush1.bf16.msra.mxu0 0
    %2932 = vmatprep.subr.bf16.mxu0 0
    %2933 = vmatpush1.bf16.msra.mxu0 0
    %2934 = vmatprep.mubr.bf16.mxu0 0
    %2935 = vmatmul.mubr.bf16.gmra.mrb[0].mxu0 0
    %v2936 = vpop.f32.mrb[0].mxu0
    %v2937 = vadd.f32 0.0, %v2936
    %v2938 = vpop.f32.mrb[0].mxu0
    %v2939 = vadd.f32 0.0, %v2938
    %v2940 = vpop.f32.mrb[0].mxu0
    %v2941 = vadd.f32 0.0, %v2940
    %v2942 = vpop.f32.mrb[0].mxu0
    %v2943 = vadd.f32 0.0, %v2942
    %2944 = vmatprep.mubr.bf16.mxu0 0
    %2945 = vmatmul.mubr.bf16.gmra.mrb[0].mxu0 0
    %v2946 = vpop.f32.mrb[0].mxu0
    %v2947 = vadd.f32 0.0, %v2946
    %v2948 = vpop.f32.mrb[0].mxu0
    %v2949 = vadd.f32 0.0, %v2948
    %v2950 = vpop.f32.mrb[0].mxu0
    %v2951 = vadd.f32 0.0, %v2950
    %v2952 = vpop.f32.mrb[0].mxu0
    %v2953 = vadd.f32 0.0, %v2952
    %2954 = vdwg.mxu0
    %v2955 = vadd.f32 %v2318, %v2884
    %v2956 = vadd.f32 %v2320, %v2886
    %v2957 = vadd.f32 %v2411, %v2937
    %v2958 = vadd.f32 %v2413, %v2939
    %v2959 = vadd.f32 %v2322, %v2888
    %v2960 = vadd.f32 %v2324, %v2890
    %v2961 = vadd.f32 %v2415, %v2941
    %v2962 = vadd.f32 %v2417, %v2943
    %v2963 = vadd.f32 %v2328, %v2894
    %v2964 = vadd.f32 %v2330, %v2896
    %v2965 = vadd.f32 %v2421, %v2947
    %v2966 = vadd.f32 %v2423, %v2949
    %v2967 = vadd.f32 %v2332, %v2898
    %v2968 = vadd.f32 %v2334, %v2900
    %v2969 = vadd.f32 %v2425, %v2951
    %v2970 = vadd.f32 %v2427, %v2953
    %v2972 = vlaneseq
    %v2973 = vshrl.u32 %v2972, 7
    %v2974 = vsub.s32 0, %v2973
    %v2975 = vrot.slane %v2687, %v2974
    %v2976 = vlaneseq
    %v2977 = vshrl.u32 %v2976, 7
    %v2978 = vsub.s32 1, %v2977
    %v2979 = vrot.slane %v2687, %v2978
    %v2980 = vlaneseq
    %v2981 = vshrl.u32 %v2980, 7
    %v2982 = vsub.s32 2, %v2981
    %v2983 = vrot.slane %v2687, %v2982
    %v2984 = vlaneseq
    %v2985 = vshrl.u32 %v2984, 7
    %v2986 = vsub.s32 3, %v2985
    %v2987 = vrot.slane %v2687, %v2986
    %v2992 = vadd.f32 %v2955, %v2975
    %v2993 = vadd.f32 %v2956, %v2979
    %v2994 = vadd.f32 %v2957, %v2983
    %v2995 = vadd.f32 %v2958, %v2987
    %v2996 = vadd.f32 %v2959, %v2975
    %v2997 = vadd.f32 %v2960, %v2979
    %v2998 = vadd.f32 %v2961, %v2983
    %v2999 = vadd.f32 %v2962, %v2987
    %v3000 = vadd.f32 %v2963, %v2975
    %v3001 = vadd.f32 %v2964, %v2979
    %v3002 = vadd.f32 %v2965, %v2983
    %v3003 = vadd.f32 %v2966, %v2987
    %v3004 = vadd.f32 %v2967, %v2975
    %v3005 = vadd.f32 %v2968, %v2979
    %v3006 = vadd.f32 %v2969, %v2983
    %v3007 = vadd.f32 %v2970, %v2987
    %v3008 = vxor.u32 %v2992, 2147483648
    %v3009 = vxor.u32 %v2996, 2147483648
    %v3010 = vxor.u32 %v3000, 2147483648
    %v3011 = vxor.u32 %v3004, 2147483648
    %v3012 = vmul.f32 %v3008, 1.442695
    %v3013 = vpow.pop %v3012
    %v3014 = vmul.f32 %v3009, 1.442695
    %v3015 = vpow.pop %v3014
    %v3016 = vmul.f32 %v3010, 1.442695
    %v3017 = vpow.pop %v3016
    %v3018 = vmul.f32 %v3011, 1.442695
    %v3019 = vpow.pop %v3018
    %v3020 = vadd.f32 %v3013, 1.0
    %v3021 = vadd.f32 %v3015, 1.0
    %v3022 = vadd.f32 %v3017, 1.0
    %v3023 = vadd.f32 %v3019, 1.0
    %v3024 = vrcp.pop %v3020
    %v3025 = vmul.f32 1.0, %v3024
    %v3026 = vrcp.pop %v3021
    %v3027 = vmul.f32 1.0, %v3026
    %v3028 = vrcp.pop %v3022
    %v3029 = vmul.f32 1.0, %v3028
    %v3030 = vrcp.pop %v3023
    %v3031 = vmul.f32 1.0, %v3030
    %v3032 = vxor.u32 %v2993, 2147483648
    %v3033 = vxor.u32 %v2997, 2147483648
    %v3034 = vxor.u32 %v3001, 2147483648
    %v3035 = vxor.u32 %v3005, 2147483648
    %v3036 = vmul.f32 %v3032, 1.442695
    %v3037 = vpow.pop %v3036
    %v3038 = vmul.f32 %v3033, 1.442695
    %v3039 = vpow.pop %v3038
    %v3040 = vmul.f32 %v3034, 1.442695
    %v3041 = vpow.pop %v3040
    %v3042 = vmul.f32 %v3035, 1.442695
    %v3043 = vpow.pop %v3042
    %v3044 = vadd.f32 %v3037, 1.0
    %v3045 = vadd.f32 %v3039, 1.0
    %v3046 = vadd.f32 %v3041, 1.0
    %v3047 = vadd.f32 %v3043, 1.0
    %v3048 = vrcp.pop %v3044
    %v3049 = vmul.f32 1.0, %v3048
    %v3050 = vrcp.pop %v3045
    %v3051 = vmul.f32 1.0, %v3050
    %v3052 = vrcp.pop %v3046
    %v3053 = vmul.f32 1.0, %v3052
    %v3054 = vrcp.pop %v3047
    %v3055 = vmul.f32 1.0, %v3054
    %v3056 = vtanh.pop %v2994
    %v3057 = vtanh.pop %v2998
    %v3058 = vtanh.pop %v3002
    %v3059 = vtanh.pop %v3006
    %v3060 = vxor.u32 %v2995, 2147483648
    %v3061 = vxor.u32 %v2999, 2147483648
    %v3062 = vxor.u32 %v3003, 2147483648
    %v3063 = vxor.u32 %v3007, 2147483648
    %v3064 = vmul.f32 %v3060, 1.442695
    %v3065 = vpow.pop %v3064
    %v3066 = vmul.f32 %v3061, 1.442695
    %v3067 = vpow.pop %v3066
    %v3068 = vmul.f32 %v3062, 1.442695
    %v3069 = vpow.pop %v3068
    %v3070 = vmul.f32 %v3063, 1.442695
    %v3071 = vpow.pop %v3070
    %v3072 = vadd.f32 %v3065, 1.0
    %v3073 = vadd.f32 %v3067, 1.0
    %v3074 = vadd.f32 %v3069, 1.0
    %v3075 = vadd.f32 %v3071, 1.0
    %v3076 = vrcp.pop %v3072
    %v3077 = vmul.f32 1.0, %v3076
    %v3078 = vrcp.pop %v3073
    %v3079 = vmul.f32 1.0, %v3078
    %v3080 = vrcp.pop %v3074
    %v3081 = vmul.f32 1.0, %v3080
    %v3082 = vrcp.pop %v3075
    %v3083 = vmul.f32 1.0, %v3082
    %v3084 = vmul.f32 %v3049, 0.0
    %v3085 = vmul.f32 %v3051, 0.0
    %v3086 = vmul.f32 %v3053, 0.0
    %v3087 = vmul.f32 %v3055, 0.0
    %v3088 = vmul.f32 %v3025, %v3056
    %v3089 = vmul.f32 %v3027, %v3057
    %v3090 = vmul.f32 %v3029, %v3058
    %v3091 = vmul.f32 %v3031, %v3059
    %v3092 = vadd.f32 %v3084, %v3088
    %v3093 = vadd.f32 %v3085, %v3089
    %v3094 = vadd.f32 %v3086, %v3090
    %v3095 = vadd.f32 %v3087, %v3091
    %v3096 = vtanh.pop %v3092
    %v3097 = vtanh.pop %v3093
    %v3098 = vtanh.pop %v3094
    %v3099 = vtanh.pop %v3095
    %v3100 = vmul.f32 %v3077, %v3096
    %v3101 = vmul.f32 %v3079, %v3097
    %v3102 = vmul.f32 %v3081, %v3098
    %v3103 = vmul.f32 %v3083, %v3099
    %v3105 = vlaneseq
    %v3106 = vshrl.u32 %v3105, 7
    %v3107 = vsub.s32 0, %v3106
    %v3108 = vrot.slane %v2688, %v3107
    %v3110 = vmul.f32 %v3100, %v3108
    %v3111 = vmul.f32 %v3101, %v3108
    %v3112 = vmul.f32 %v3102, %v3108
    %v3113 = vmul.f32 %v3103, %v3108
    %3114 = vadd.xlane.f32.xlu0 %v3110
    %v3115 = vpop.xlane.xlu0 %3114
    %3116 = vadd.xlane.f32.xlu0 %v3111
    %v3117 = vpop.xlane.xlu0 %3116
    %3118 = vadd.xlane.f32.xlu0 %v3112
    %v3119 = vpop.xlane.xlu0 %3118
    %3120 = vadd.xlane.f32.xlu0 %v3113
    %v3121 = vpop.xlane.xlu0 %3120
    %v3122 = vpack.c.bf16 %v3101, %v3100
    %v3123 = vpack.c.bf16 %v3103, %v3102
    %3124 = vmatprep.subr.bf16.mxu0 %v2786
    %3125 = vmatpush1.bf16.msra.mxu0 %v2785
    %3126 = vmatprep.subr.bf16.mxu0 %v2790
    %3127 = vmatpush1.bf16.msra.mxu0 %v2789
    %3128 = vmatprep.subr.bf16.mxu0 %v2794
    %3129 = vmatpush1.bf16.msra.mxu0 %v2793
    %3130 = vmatprep.subr.bf16.mxu0 %v2798
    %3131 = vmatpush1.bf16.msra.mxu0 %v2797
    %3132 = vmatprep.subr.bf16.mxu0 %v2802
    %3133 = vmatpush1.bf16.msra.mxu0 %v2801
    %3134 = vmatprep.subr.bf16.mxu0 %v2806
    %3135 = vmatpush1.bf16.msra.mxu0 %v2805
    %3136 = vmatprep.subr.bf16.mxu0 %v2810
    %3137 = vmatpush1.bf16.msra.mxu0 %v2809
    %3138 = vmatprep.subr.bf16.mxu0 %v2814
    %3139 = vmatpush1.bf16.msra.mxu0 %v2813
    %3140 = vmatprep.subr.bf16.mxu0 0
    %3141 = vmatpush1.bf16.msra.mxu0 0
    %3142 = vmatprep.subr.bf16.mxu0 0
    %3143 = vmatpush1.bf16.msra.mxu0 0
    %3144 = vmatprep.subr.bf16.mxu0 0
    %3145 = vmatpush1.bf16.msra.mxu0 0
    %3146 = vmatprep.subr.bf16.mxu0 0
    %3147 = vmatpush1.bf16.msra.mxu0 0
    %3148 = vmatprep.subr.bf16.mxu0 0
    %3149 = vmatpush1.bf16.msra.mxu0 0
    %3150 = vmatprep.subr.bf16.mxu0 0
    %3151 = vmatpush1.bf16.msra.mxu0 0
    %3152 = vmatprep.subr.bf16.mxu0 0
    %3153 = vmatpush1.bf16.msra.mxu0 0
    %3154 = vmatprep.subr.bf16.mxu0 0
    %3155 = vmatpush1.bf16.msra.mxu0 0
    %3156 = vmatprep.mubr.bf16.mxu0 0
    %3157 = vmatmul.mubr.bf16.gmra.mrb[0].mxu0 %v3122
    %v3158 = vpop.f32.mrb[0].mxu0
    %v3159 = vadd.f32 0.0, %v3158
    %v3160 = vpop.f32.mrb[0].mxu0
    %v3161 = vadd.f32 0.0, %v3160
    %v3162 = vpop.f32.mrb[0].mxu0
    %v3163 = vadd.f32 0.0, %v3162
    %v3164 = vpop.f32.mrb[0].mxu0
    %v3165 = vadd.f32 0.0, %v3164
    %3166 = vmatprep.mubr.bf16.mxu0 0
    %3167 = vmatmul.mubr.bf16.gmra.mrb[0].mxu0 %v3123
    %v3168 = vpop.f32.mrb[0].mxu0
    %v3169 = vadd.f32 0.0, %v3168
    %v3170 = vpop.f32.mrb[0].mxu0
    %v3171 = vadd.f32 0.0, %v3170
    %v3172 = vpop.f32.mrb[0].mxu0
    %v3173 = vadd.f32 0.0, %v3172
    %v3174 = vpop.f32.mrb[0].mxu0
    %v3175 = vadd.f32 0.0, %v3174
    %3176 = vdwg.mxu0
    %3177 = vmatprep.subr.bf16.mxu0 %v2788
    %3178 = vmatpush1.bf16.msra.mxu0 %v2787
    %3179 = vmatprep.subr.bf16.mxu0 %v2792
    %3180 = vmatpush1.bf16.msra.mxu0 %v2791
    %3181 = vmatprep.subr.bf16.mxu0 %v2796
    %3182 = vmatpush1.bf16.msra.mxu0 %v2795
    %3183 = vmatprep.subr.bf16.mxu0 %v2800
    %3184 = vmatpush1.bf16.msra.mxu0 %v2799
    %3185 = vmatprep.subr.bf16.mxu0 %v2804
    %3186 = vmatpush1.bf16.msra.mxu0 %v2803
    %3187 = vmatprep.subr.bf16.mxu0 %v2808
    %3188 = vmatpush1.bf16.msra.mxu0 %v2807
    %3189 = vmatprep.subr.bf16.mxu0 %v2812
    %3190 = vmatpush1.bf16.msra.mxu0 %v2811
    %3191 = vmatprep.subr.bf16.mxu0 %v2816
    %3192 = vmatpush1.bf16.msra.mxu0 %v2815
    %3193 = vmatprep.subr.bf16.mxu0 0
    %3194 = vmatpush1.bf16.msra.mxu0 0
    %3195 = vmatprep.subr.bf16.mxu0 0
    %3196 = vmatpush1.bf16.msra.mxu0 0
    %3197 = vmatprep.subr.bf16.mxu0 0
    %3198 = vmatpush1.bf16.msra.mxu0 0
    %3199 = vmatprep.subr.bf16.mxu0 0
    %3200 = vmatpush1.bf16.msra.mxu0 0
    %3201 = vmatprep.subr.bf16.mxu0 0
    %3202 = vmatpush1.bf16.msra.mxu0 0
    %3203 = vmatprep.subr.bf16.mxu0 0
    %3204 = vmatpush1.bf16.msra.mxu0 0
    %3205 = vmatprep.subr.bf16.mxu0 0
    %3206 = vmatpush1.bf16.msra.mxu0 0
    %3207 = vmatprep.subr.bf16.mxu0 0
    %3208 = vmatpush1.bf16.msra.mxu0 0
    %3209 = vmatprep.mubr.bf16.mxu0 0
    %3210 = vmatmul.mubr.bf16.gmra.mrb[0].mxu0 %v3122
    %v3211 = vpop.f32.mrb[0].mxu0
    %v3212 = vadd.f32 0.0, %v3211
    %v3213 = vpop.f32.mrb[0].mxu0
    %v3214 = vadd.f32 0.0, %v3213
    %v3215 = vpop.f32.mrb[0].mxu0
    %v3216 = vadd.f32 0.0, %v3215
    %v3217 = vpop.f32.mrb[0].mxu0
    %v3218 = vadd.f32 0.0, %v3217
    %3219 = vmatprep.mubr.bf16.mxu0 0
    %3220 = vmatmul.mubr.bf16.gmra.mrb[0].mxu0 %v3123
    %v3221 = vpop.f32.mrb[0].mxu0
    %v3222 = vadd.f32 0.0, %v3221
    %v3223 = vpop.f32.mrb[0].mxu0
    %v3224 = vadd.f32 0.0, %v3223
    %v3225 = vpop.f32.mrb[0].mxu0
    %v3226 = vadd.f32 0.0, %v3225
    %v3227 = vpop.f32.mrb[0].mxu0
    %v3228 = vadd.f32 0.0, %v3227
    %3229 = vdwg.mxu0
    %v3230 = vadd.f32 %v2338, %v3159
    %v3231 = vadd.f32 %v2340, %v3161
    %v3232 = vadd.f32 %v2431, %v3212
    %v3233 = vadd.f32 %v2433, %v3214
    %v3234 = vadd.f32 %v2342, %v3163
    %v3235 = vadd.f32 %v2344, %v3165
    %v3236 = vadd.f32 %v2435, %v3216
    %v3237 = vadd.f32 %v2437, %v3218
    %v3238 = vadd.f32 %v2348, %v3169
    %v3239 = vadd.f32 %v2350, %v3171
    %v3240 = vadd.f32 %v2441, %v3222
    %v3241 = vadd.f32 %v2443, %v3224
    %v3242 = vadd.f32 %v2352, %v3173
    %v3243 = vadd.f32 %v2354, %v3175
    %v3244 = vadd.f32 %v2445, %v3226
    %v3245 = vadd.f32 %v2447, %v3228
    %v3246 = vadd.f32 %v3230, %v2975
    %v3247 = vadd.f32 %v3231, %v2979
    %v3248 = vadd.f32 %v3232, %v2983
    %v3249 = vadd.f32 %v3233, %v2987
    %v3250 = vadd.f32 %v3234, %v2975
    %v3251 = vadd.f32 %v3235, %v2979
    %v3252 = vadd.f32 %v3236, %v2983
    %v3253 = vadd.f32 %v3237, %v2987
    %v3254 = vadd.f32 %v3238, %v2975
    %v3255 = vadd.f32 %v3239, %v2979
    %v3256 = vadd.f32 %v3240, %v2983
    %v3257 = vadd.f32 %v3241, %v2987
    %v3258 = vadd.f32 %v3242, %v2975
    %v3259 = vadd.f32 %v3243, %v2979
    %v3260 = vadd.f32 %v3244, %v2983
    %v3261 = vadd.f32 %v3245, %v2987
    %v3262 = vxor.u32 %v3246, 2147483648
    %v3263 = vxor.u32 %v3250, 2147483648
    %v3264 = vxor.u32 %v3254, 2147483648
    %v3265 = vxor.u32 %v3258, 2147483648
    %v3266 = vmul.f32 %v3262, 1.442695
    %v3267 = vpow.pop %v3266
    %v3268 = vmul.f32 %v3263, 1.442695
    %v3269 = vpow.pop %v3268
    %v3270 = vmul.f32 %v3264, 1.442695
    %v3271 = vpow.pop %v3270
    %v3272 = vmul.f32 %v3265, 1.442695
    %v3273 = vpow.pop %v3272
    %v3274 = vadd.f32 %v3267, 1.0
    %v3275 = vadd.f32 %v3269, 1.0
    %v3276 = vadd.f32 %v3271, 1.0
    %v3277 = vadd.f32 %v3273, 1.0
    %v3278 = vrcp.pop %v3274
    %v3279 = vmul.f32 1.0, %v3278
    %v3280 = vrcp.pop %v3275
    %v3281 = vmul.f32 1.0, %v3280
    %v3282 = vrcp.pop %v3276
    %v3283 = vmul.f32 1.0, %v3282
    %v3284 = vrcp.pop %v3277
    %v3285 = vmul.f32 1.0, %v3284
    %v3286 = vxor.u32 %v3247, 2147483648
    %v3287 = vxor.u32 %v3251, 2147483648
    %v3288 = vxor.u32 %v3255, 2147483648
    %v3289 = vxor.u32 %v3259, 2147483648
    %v3290 = vmul.f32 %v3286, 1.442695
    %v3291 = vpow.pop %v3290
    %v3292 = vmul.f32 %v3287, 1.442695
    %v3293 = vpow.pop %v3292
    %v3294 = vmul.f32 %v3288, 1.442695
    %v3295 = vpow.pop %v3294
    %v3296 = vmul.f32 %v3289, 1.442695
    %v3297 = vpow.pop %v3296
    %v3298 = vadd.f32 %v3291, 1.0
    %v3299 = vadd.f32 %v3293, 1.0
    %v3300 = vadd.f32 %v3295, 1.0
    %v3301 = vadd.f32 %v3297, 1.0
    %v3302 = vrcp.pop %v3298
    %v3303 = vmul.f32 1.0, %v3302
    %v3304 = vrcp.pop %v3299
    %v3305 = vmul.f32 1.0, %v3304
    %v3306 = vrcp.pop %v3300
    %v3307 = vmul.f32 1.0, %v3306
    %v3308 = vrcp.pop %v3301
    %v3309 = vmul.f32 1.0, %v3308
    %v3310 = vtanh.pop %v3248
    %v3311 = vtanh.pop %v3252
    %v3312 = vtanh.pop %v3256
    %v3313 = vtanh.pop %v3260
    %v3314 = vxor.u32 %v3249, 2147483648
    %v3315 = vxor.u32 %v3253, 2147483648
    %v3316 = vxor.u32 %v3257, 2147483648
    %v3317 = vxor.u32 %v3261, 2147483648
    %v3318 = vmul.f32 %v3314, 1.442695
    %v3319 = vpow.pop %v3318
    %v3320 = vmul.f32 %v3315, 1.442695
    %v3321 = vpow.pop %v3320
    %v3322 = vmul.f32 %v3316, 1.442695
    %v3323 = vpow.pop %v3322
    %v3324 = vmul.f32 %v3317, 1.442695
    %v3325 = vpow.pop %v3324
    %v3326 = vadd.f32 %v3319, 1.0
    %v3327 = vadd.f32 %v3321, 1.0
    %v3328 = vadd.f32 %v3323, 1.0
    %v3329 = vadd.f32 %v3325, 1.0
    %v3330 = vrcp.pop %v3326
    %v3331 = vmul.f32 1.0, %v3330
    %v3332 = vrcp.pop %v3327
    %v3333 = vmul.f32 1.0, %v3332
    %v3334 = vrcp.pop %v3328
    %v3335 = vmul.f32 1.0, %v3334
    %v3336 = vrcp.pop %v3329
    %v3337 = vmul.f32 1.0, %v3336
    %v3338 = vmul.f32 %v3303, %v3092
    %v3339 = vmul.f32 %v3305, %v3093
    %v3340 = vmul.f32 %v3307, %v3094
    %v3341 = vmul.f32 %v3309, %v3095
    %v3342 = vmul.f32 %v3279, %v3310
    %v3343 = vmul.f32 %v3281, %v3311
    %v3344 = vmul.f32 %v3283, %v3312
    %v3345 = vmul.f32 %v3285, %v3313
    %v3346 = vadd.f32 %v3338, %v3342
    %v3347 = vadd.f32 %v3339, %v3343
    %v3348 = vadd.f32 %v3340, %v3344
    %v3349 = vadd.f32 %v3341, %v3345
    %v3350 = vtanh.pop %v3346
    %v3351 = vtanh.pop %v3347
    %v3352 = vtanh.pop %v3348
    %v3353 = vtanh.pop %v3349
    %v3354 = vmul.f32 %v3331, %v3350
    %v3355 = vmul.f32 %v3333, %v3351
    %v3356 = vmul.f32 %v3335, %v3352
    %v3357 = vmul.f32 %v3337, %v3353
    %v3358 = vmul.f32 %v3354, %v3108
    %v3359 = vmul.f32 %v3355, %v3108
    %v3360 = vmul.f32 %v3356, %v3108
    %v3361 = vmul.f32 %v3357, %v3108
    %3362 = vadd.xlane.f32.xlu0 %v3358
    %v3363 = vpop.xlane.xlu0 %3362
    %3364 = vadd.xlane.f32.xlu0 %v3359
    %v3365 = vpop.xlane.xlu0 %3364
    %3366 = vadd.xlane.f32.xlu0 %v3360
    %v3367 = vpop.xlane.xlu0 %3366
    %3368 = vadd.xlane.f32.xlu0 %v3361
    %v3369 = vpop.xlane.xlu0 %3368
    %v3370 = vpack.c.bf16 %v3355, %v3354
    %v3371 = vpack.c.bf16 %v3357, %v3356
    %3372 = vmatprep.subr.bf16.mxu0 %v2786
    %3373 = vmatpush1.bf16.msra.mxu0 %v2785
    %3374 = vmatprep.subr.bf16.mxu0 %v2790
    %3375 = vmatpush1.bf16.msra.mxu0 %v2789
    %3376 = vmatprep.subr.bf16.mxu0 %v2794
    %3377 = vmatpush1.bf16.msra.mxu0 %v2793
    %3378 = vmatprep.subr.bf16.mxu0 %v2798
    %3379 = vmatpush1.bf16.msra.mxu0 %v2797
    %3380 = vmatprep.subr.bf16.mxu0 %v2802
    %3381 = vmatpush1.bf16.msra.mxu0 %v2801
    %3382 = vmatprep.subr.bf16.mxu0 %v2806
    %3383 = vmatpush1.bf16.msra.mxu0 %v2805
    %3384 = vmatprep.subr.bf16.mxu0 %v2810
    %3385 = vmatpush1.bf16.msra.mxu0 %v2809
    %3386 = vmatprep.subr.bf16.mxu0 %v2814
    %3387 = vmatpush1.bf16.msra.mxu0 %v2813
    %3388 = vmatprep.subr.bf16.mxu0 0
    %3389 = vmatpush1.bf16.msra.mxu0 0
    %3390 = vmatprep.subr.bf16.mxu0 0
    %3391 = vmatpush1.bf16.msra.mxu0 0
    %3392 = vmatprep.subr.bf16.mxu0 0
    %3393 = vmatpush1.bf16.msra.mxu0 0
    %3394 = vmatprep.subr.bf16.mxu0 0
    %3395 = vmatpush1.bf16.msra.mxu0 0
    %3396 = vmatprep.subr.bf16.mxu0 0
    %3397 = vmatpush1.bf16.msra.mxu0 0
    %3398 = vmatprep.subr.bf16.mxu0 0
    %3399 = vmatpush1.bf16.msra.mxu0 0
    %3400 = vmatprep.subr.bf16.mxu0 0
    %3401 = vmatpush1.bf16.msra.mxu0 0
    %3402 = vmatprep.subr.bf16.mxu0 0
    %3403 = vmatpush1.bf16.msra.mxu0 0
    %3404 = vmatprep.mubr.bf16.mxu0 0
    %3405 = vmatmul.mubr.bf16.gmra.mrb[0].mxu0 %v3370
    %v3406 = vpop.f32.mrb[0].mxu0
    %v3407 = vadd.f32 0.0, %v3406
    %v3408 = vpop.f32.mrb[0].mxu0
    %v3409 = vadd.f32 0.0, %v3408
    %v3410 = vpop.f32.mrb[0].mxu0
    %v3411 = vadd.f32 0.0, %v3410
    %v3412 = vpop.f32.mrb[0].mxu0
    %v3413 = vadd.f32 0.0, %v3412
    %3414 = vmatprep.mubr.bf16.mxu0 0
    %3415 = vmatmul.mubr.bf16.gmra.mrb[0].mxu0 %v3371
    %v3416 = vpop.f32.mrb[0].mxu0
    %v3417 = vadd.f32 0.0, %v3416
    %v3418 = vpop.f32.mrb[0].mxu0
    %v3419 = vadd.f32 0.0, %v3418
    %v3420 = vpop.f32.mrb[0].mxu0
    %v3421 = vadd.f32 0.0, %v3420
    %v3422 = vpop.f32.mrb[0].mxu0
    %v3423 = vadd.f32 0.0, %v3422
    %3424 = vdwg.mxu0
    %3425 = vmatprep.subr.bf16.mxu0 %v2788
    %3426 = vmatpush1.bf16.msra.mxu0 %v2787
    %3427 = vmatprep.subr.bf16.mxu0 %v2792
    %3428 = vmatpush1.bf16.msra.mxu0 %v2791
    %3429 = vmatprep.subr.bf16.mxu0 %v2796
    %3430 = vmatpush1.bf16.msra.mxu0 %v2795
    %3431 = vmatprep.subr.bf16.mxu0 %v2800
    %3432 = vmatpush1.bf16.msra.mxu0 %v2799
    %3433 = vmatprep.subr.bf16.mxu0 %v2804
    %3434 = vmatpush1.bf16.msra.mxu0 %v2803
    %3435 = vmatprep.subr.bf16.mxu0 %v2808
    %3436 = vmatpush1.bf16.msra.mxu0 %v2807
    %3437 = vmatprep.subr.bf16.mxu0 %v2812
    %3438 = vmatpush1.bf16.msra.mxu0 %v2811
    %3439 = vmatprep.subr.bf16.mxu0 %v2816
    %3440 = vmatpush1.bf16.msra.mxu0 %v2815
    %3441 = vmatprep.subr.bf16.mxu0 0
    %3442 = vmatpush1.bf16.msra.mxu0 0
    %3443 = vmatprep.subr.bf16.mxu0 0
    %3444 = vmatpush1.bf16.msra.mxu0 0
    %3445 = vmatprep.subr.bf16.mxu0 0
    %3446 = vmatpush1.bf16.msra.mxu0 0
    %3447 = vmatprep.subr.bf16.mxu0 0
    %3448 = vmatpush1.bf16.msra.mxu0 0
    %3449 = vmatprep.subr.bf16.mxu0 0
    %3450 = vmatpush1.bf16.msra.mxu0 0
    %3451 = vmatprep.subr.bf16.mxu0 0
    %3452 = vmatpush1.bf16.msra.mxu0 0
    %3453 = vmatprep.subr.bf16.mxu0 0
    %3454 = vmatpush1.bf16.msra.mxu0 0
    %3455 = vmatprep.subr.bf16.mxu0 0
    %3456 = vmatpush1.bf16.msra.mxu0 0
    %3457 = vmatprep.mubr.bf16.mxu0 0
    %3458 = vmatmul.mubr.bf16.gmra.mrb[0].mxu0 %v3370
    %v3459 = vpop.f32.mrb[0].mxu0
    %v3460 = vadd.f32 0.0, %v3459
    %v3461 = vpop.f32.mrb[0].mxu0
    %v3462 = vadd.f32 0.0, %v3461
    %v3463 = vpop.f32.mrb[0].mxu0
    %v3464 = vadd.f32 0.0, %v3463
    %v3465 = vpop.f32.mrb[0].mxu0
    %v3466 = vadd.f32 0.0, %v3465
    %3467 = vmatprep.mubr.bf16.mxu0 0
    %3468 = vmatmul.mubr.bf16.gmra.mrb[0].mxu0 %v3371
    %v3469 = vpop.f32.mrb[0].mxu0
    %v3470 = vadd.f32 0.0, %v3469
    %v3471 = vpop.f32.mrb[0].mxu0
    %v3472 = vadd.f32 0.0, %v3471
    %v3473 = vpop.f32.mrb[0].mxu0
    %v3474 = vadd.f32 0.0, %v3473
    %v3475 = vpop.f32.mrb[0].mxu0
    %v3476 = vadd.f32 0.0, %v3475
    %3477 = vdwg.mxu0
    %v3478 = vadd.f32 %v2358, %v3407
    %v3479 = vadd.f32 %v2360, %v3409
    %v3480 = vadd.f32 %v2451, %v3460
    %v3481 = vadd.f32 %v2453, %v3462
    %v3482 = vadd.f32 %v2362, %v3411
    %v3483 = vadd.f32 %v2364, %v3413
    %v3484 = vadd.f32 %v2455, %v3464
    %v3485 = vadd.f32 %v2457, %v3466
    %v3486 = vadd.f32 %v2368, %v3417
    %v3487 = vadd.f32 %v2370, %v3419
    %v3488 = vadd.f32 %v2461, %v3470
    %v3489 = vadd.f32 %v2463, %v3472
    %v3490 = vadd.f32 %v2372, %v3421
    %v3491 = vadd.f32 %v2374, %v3423
    %v3492 = vadd.f32 %v2465, %v3474
    %v3493 = vadd.f32 %v2467, %v3476
    %v3494 = vadd.f32 %v3478, %v2975
    %v3495 = vadd.f32 %v3479, %v2979
    %v3496 = vadd.f32 %v3480, %v2983
    %v3497 = vadd.f32 %v3481, %v2987
    %v3498 = vadd.f32 %v3482, %v2975
    %v3499 = vadd.f32 %v3483, %v2979
    %v3500 = vadd.f32 %v3484, %v2983
    %v3501 = vadd.f32 %v3485, %v2987
    %v3502 = vadd.f32 %v3486, %v2975
    %v3503 = vadd.f32 %v3487, %v2979
    %v3504 = vadd.f32 %v3488, %v2983
    %v3505 = vadd.f32 %v3489, %v2987
    %v3506 = vadd.f32 %v3490, %v2975
    %v3507 = vadd.f32 %v3491, %v2979
    %v3508 = vadd.f32 %v3492, %v2983
    %v3509 = vadd.f32 %v3493, %v2987
    %v3510 = vxor.u32 %v3494, 2147483648
    %v3511 = vxor.u32 %v3498, 2147483648
    %v3512 = vxor.u32 %v3502, 2147483648
    %v3513 = vxor.u32 %v3506, 2147483648
    %v3514 = vmul.f32 %v3510, 1.442695
    %v3515 = vpow.pop %v3514
    %v3516 = vmul.f32 %v3511, 1.442695
    %v3517 = vpow.pop %v3516
    %v3518 = vmul.f32 %v3512, 1.442695
    %v3519 = vpow.pop %v3518
    %v3520 = vmul.f32 %v3513, 1.442695
    %v3521 = vpow.pop %v3520
    %v3522 = vadd.f32 %v3515, 1.0
    %v3523 = vadd.f32 %v3517, 1.0
    %v3524 = vadd.f32 %v3519, 1.0
    %v3525 = vadd.f32 %v3521, 1.0
    %v3526 = vrcp.pop %v3522
    %v3527 = vmul.f32 1.0, %v3526
    %v3528 = vrcp.pop %v3523
    %v3529 = vmul.f32 1.0, %v3528
    %v3530 = vrcp.pop %v3524
    %v3531 = vmul.f32 1.0, %v3530
    %v3532 = vrcp.pop %v3525
    %v3533 = vmul.f32 1.0, %v3532
    %v3534 = vxor.u32 %v3495, 2147483648
    %v3535 = vxor.u32 %v3499, 2147483648
    %v3536 = vxor.u32 %v3503, 2147483648
    %v3537 = vxor.u32 %v3507, 2147483648
    %v3538 = vmul.f32 %v3534, 1.442695
    %v3539 = vpow.pop %v3538
    %v3540 = vmul.f32 %v3535, 1.442695
    %v3541 = vpow.pop %v3540
    %v3542 = vmul.f32 %v3536, 1.442695
    %v3543 = vpow.pop %v3542
    %v3544 = vmul.f32 %v3537, 1.442695
    %v3545 = vpow.pop %v3544
    %v3546 = vadd.f32 %v3539, 1.0
    %v3547 = vadd.f32 %v3541, 1.0
    %v3548 = vadd.f32 %v3543, 1.0
    %v3549 = vadd.f32 %v3545, 1.0
    %v3550 = vrcp.pop %v3546
    %v3551 = vmul.f32 1.0, %v3550
    %v3552 = vrcp.pop %v3547
    %v3553 = vmul.f32 1.0, %v3552
    %v3554 = vrcp.pop %v3548
    %v3555 = vmul.f32 1.0, %v3554
    %v3556 = vrcp.pop %v3549
    %v3557 = vmul.f32 1.0, %v3556
    %v3558 = vtanh.pop %v3496
    %v3559 = vtanh.pop %v3500
    %v3560 = vtanh.pop %v3504
    %v3561 = vtanh.pop %v3508
    %v3562 = vxor.u32 %v3497, 2147483648
    %v3563 = vxor.u32 %v3501, 2147483648
    %v3564 = vxor.u32 %v3505, 2147483648
    %v3565 = vxor.u32 %v3509, 2147483648
    %v3566 = vmul.f32 %v3562, 1.442695
    %v3567 = vpow.pop %v3566
    %v3568 = vmul.f32 %v3563, 1.442695
    %v3569 = vpow.pop %v3568
    %v3570 = vmul.f32 %v3564, 1.442695
    %v3571 = vpow.pop %v3570
    %v3572 = vmul.f32 %v3565, 1.442695
    %v3573 = vpow.pop %v3572
    %v3574 = vadd.f32 %v3567, 1.0
    %v3575 = vadd.f32 %v3569, 1.0
    %v3576 = vadd.f32 %v3571, 1.0
    %v3577 = vadd.f32 %v3573, 1.0
    %v3578 = vrcp.pop %v3574
    %v3579 = vmul.f32 1.0, %v3578
    %v3580 = vrcp.pop %v3575
    %v3581 = vmul.f32 1.0, %v3580
    %v3582 = vrcp.pop %v3576
    %v3583 = vmul.f32 1.0, %v3582
    %v3584 = vrcp.pop %v3577
    %v3585 = vmul.f32 1.0, %v3584
    %v3586 = vmul.f32 %v3551, %v3346
    %v3587 = vmul.f32 %v3553, %v3347
    %v3588 = vmul.f32 %v3555, %v3348
    %v3589 = vmul.f32 %v3557, %v3349
    %v3590 = vmul.f32 %v3527, %v3558
    %v3591 = vmul.f32 %v3529, %v3559
    %v3592 = vmul.f32 %v3531, %v3560
    %v3593 = vmul.f32 %v3533, %v3561
    %v3594 = vadd.f32 %v3586, %v3590
    %v3595 = vadd.f32 %v3587, %v3591
    %v3596 = vadd.f32 %v3588, %v3592
    %v3597 = vadd.f32 %v3589, %v3593
    %v3598 = vtanh.pop %v3594
    %v3599 = vtanh.pop %v3595
    %v3600 = vtanh.pop %v3596
    %v3601 = vtanh.pop %v3597
    %v3602 = vmul.f32 %v3579, %v3598
    %v3603 = vmul.f32 %v3581, %v3599
    %v3604 = vmul.f32 %v3583, %v3600
    %v3605 = vmul.f32 %v3585, %v3601
    %v3606 = vmul.f32 %v3602, %v3108
    %v3607 = vmul.f32 %v3603, %v3108
    %v3608 = vmul.f32 %v3604, %v3108
    %v3609 = vmul.f32 %v3605, %v3108
    %3610 = vadd.xlane.f32.xlu0 %v3606
    %v3611 = vpop.xlane.xlu0 %3610
    %3612 = vadd.xlane.f32.xlu0 %v3607
    %v3613 = vpop.xlane.xlu0 %3612
    %3614 = vadd.xlane.f32.xlu0 %v3608
    %v3615 = vpop.xlane.xlu0 %3614
    %3616 = vadd.xlane.f32.xlu0 %v3609
    %v3617 = vpop.xlane.xlu0 %3616
    %s3618 = scalar_lea.vmem [#allocation20], 256
    %v3619 = vld [vmem:[%s3618] sm:$0xff]
    %v3620 = vld [vmem:[%s3618 + $0x8] sm:$0xff]
    %v3621 = vld [vmem:[%s3618 + $0x10] sm:$0xff]
    %v3622 = vld [vmem:[%s3618 + $0x18] sm:$0xff]
    %v3623 = vld [vmem:[%s3618 + $0x20] sm:$0xff]
    %v3624 = vld [vmem:[%s3618 + $0x28] sm:$0xff]
    %v3625 = vld [vmem:[%s3618 + $0x30] sm:$0xff]
    %v3626 = vld [vmem:[%s3618 + $0x38] sm:$0xff]
    %v3627 = vld [vmem:[%s3618 + $0x40] sm:$0xff]
    %v3628 = vld [vmem:[%s3618 + $0x48] sm:$0xff]
    %v3629 = vld [vmem:[%s3618 + $0x50] sm:$0xff]
    %v3630 = vld [vmem:[%s3618 + $0x58] sm:$0xff]
    %v3631 = vld [vmem:[%s3618 + $0x60] sm:$0xff]
    %v3632 = vld [vmem:[%s3618 + $0x68] sm:$0xff]
    %v3633 = vld [vmem:[%s3618 + $0x70] sm:$0xff]
    %v3634 = vld [vmem:[%s3618 + $0x78] sm:$0xff]
    %v3635 = vld [vmem:[%s3618 + $0x80] sm:$0xff]
    %v3636 = vld [vmem:[%s3618 + $0x88] sm:$0xff]
    %v3637 = vld [vmem:[%s3618 + $0x90] sm:$0xff]
    %v3638 = vld [vmem:[%s3618 + $0x98] sm:$0xff]
    %v3639 = vld [vmem:[%s3618 + $0xa0] sm:$0xff]
    %v3640 = vld [vmem:[%s3618 + $0xa8] sm:$0xff]
    %v3641 = vld [vmem:[%s3618 + $0xb0] sm:$0xff]
    %v3642 = vld [vmem:[%s3618 + $0xb8] sm:$0xff]
    %v3643 = vld [vmem:[%s3618 + $0xc0] sm:$0xff]
    %v3644 = vld [vmem:[%s3618 + $0xc8] sm:$0xff]
    %v3645 = vld [vmem:[%s3618 + $0xd0] sm:$0xff]
    %v3646 = vld [vmem:[%s3618 + $0xd8] sm:$0xff]
    %v3647 = vld [vmem:[%s3618 + $0xe0] sm:$0xff]
    %v3648 = vld [vmem:[%s3618 + $0xe8] sm:$0xff]
    %v3649 = vld [vmem:[%s3618 + $0xf0] sm:$0xff]
    %v3650 = vld [vmem:[%s3618 + $0xf8] sm:$0xff]
    %s3651 = scalar_lea.vmem [#allocation22], 4
    %v3652 = vld [vmem:[%s3651] sm:$0xf]
    %s3653 = scalar_lea.vmem %s16, 1
    %v3654 = vld [vmem:[%s3653] sm:$0x1]
    %v3687 = vunpack.c.l.b16 %v3619
    %v3688 = vunpack.c.h.b16 %v3619
    %v3689 = vunpack.c.l.b16 %v3620
    %v3690 = vunpack.c.h.b16 %v3620
    %v3691 = vunpack.c.l.b16 %v3621
    %v3692 = vunpack.c.h.b16 %v3621
    %v3693 = vunpack.c.l.b16 %v3622
    %v3694 = vunpack.c.h.b16 %v3622
    %v3695 = vunpack.c.l.b16 %v3623
    %v3696 = vunpack.c.h.b16 %v3623
    %v3697 = vunpack.c.l.b16 %v3624
    %v3698 = vunpack.c.h.b16 %v3624
    %v3699 = vunpack.c.l.b16 %v3625
    %v3700 = vunpack.c.h.b16 %v3625
    %v3701 = vunpack.c.l.b16 %v3626
    %v3702 = vunpack.c.h.b16 %v3626
    %v3703 = vunpack.c.l.b16 %v3627
    %v3704 = vunpack.c.h.b16 %v3627
    %v3705 = vunpack.c.l.b16 %v3628
    %v3706 = vunpack.c.h.b16 %v3628
    %v3707 = vunpack.c.l.b16 %v3629
    %v3708 = vunpack.c.h.b16 %v3629
    %v3709 = vunpack.c.l.b16 %v3630
    %v3710 = vunpack.c.h.b16 %v3630
    %v3711 = vunpack.c.l.b16 %v3631
    %v3712 = vunpack.c.h.b16 %v3631
    %v3713 = vunpack.c.l.b16 %v3632
    %v3714 = vunpack.c.h.b16 %v3632
    %v3715 = vunpack.c.l.b16 %v3633
    %v3716 = vunpack.c.h.b16 %v3633
    %v3717 = vunpack.c.l.b16 %v3634
    %v3718 = vunpack.c.h.b16 %v3634
    %v3719 = vunpack.c.l.b16 %v3635
    %v3720 = vunpack.c.h.b16 %v3635
    %v3721 = vunpack.c.l.b16 %v3636
    %v3722 = vunpack.c.h.b16 %v3636
    %v3723 = vunpack.c.l.b16 %v3637
    %v3724 = vunpack.c.h.b16 %v3637
    %v3725 = vunpack.c.l.b16 %v3638
    %v3726 = vunpack.c.h.b16 %v3638
    %v3727 = vunpack.c.l.b16 %v3639
    %v3728 = vunpack.c.h.b16 %v3639
    %v3729 = vunpack.c.l.b16 %v3640
    %v3730 = vunpack.c.h.b16 %v3640
    %v3731 = vunpack.c.l.b16 %v3641
    %v3732 = vunpack.c.h.b16 %v3641
    %v3733 = vunpack.c.l.b16 %v3642
    %v3734 = vunpack.c.h.b16 %v3642
    %v3735 = vunpack.c.l.b16 %v3643
    %v3736 = vunpack.c.h.b16 %v3643
    %v3737 = vunpack.c.l.b16 %v3644
    %v3738 = vunpack.c.h.b16 %v3644
    %v3739 = vunpack.c.l.b16 %v3645
    %v3740 = vunpack.c.h.b16 %v3645
    %v3741 = vunpack.c.l.b16 %v3646
    %v3742 = vunpack.c.h.b16 %v3646
    %v3743 = vunpack.c.l.b16 %v3647
    %v3744 = vunpack.c.h.b16 %v3647
    %v3745 = vunpack.c.l.b16 %v3648
    %v3746 = vunpack.c.h.b16 %v3648
    %v3747 = vunpack.c.l.b16 %v3649
    %v3748 = vunpack.c.h.b16 %v3649
    %v3749 = vunpack.c.l.b16 %v3650
    %v3750 = vunpack.c.h.b16 %v3650
    %v3751 = vpack.c.b16 %v3691, %v3687
    %v3752 = vpack.c.b16 %v3692, %v3688
    %v3753 = vpack.c.b16 %v3693, %v3689
    %v3754 = vpack.c.b16 %v3694, %v3690
    %v3755 = vpack.c.b16 %v3699, %v3695
    %v3756 = vpack.c.b16 %v3700, %v3696
    %v3757 = vpack.c.b16 %v3701, %v3697
    %v3758 = vpack.c.b16 %v3702, %v3698
    %v3759 = vpack.c.b16 %v3707, %v3703
    %v3760 = vpack.c.b16 %v3708, %v3704
    %v3761 = vpack.c.b16 %v3709, %v3705
    %v3762 = vpack.c.b16 %v3710, %v3706
    %v3763 = vpack.c.b16 %v3715, %v3711
    %v3764 = vpack.c.b16 %v3716, %v3712
    %v3765 = vpack.c.b16 %v3717, %v3713
    %v3766 = vpack.c.b16 %v3718, %v3714
    %v3767 = vpack.c.b16 %v3723, %v3719
    %v3768 = vpack.c.b16 %v3724, %v3720
    %v3769 = vpack.c.b16 %v3725, %v3721
    %v3770 = vpack.c.b16 %v3726, %v3722
    %v3771 = vpack.c.b16 %v3731, %v3727
    %v3772 = vpack.c.b16 %v3732, %v3728
    %v3773 = vpack.c.b16 %v3733, %v3729
    %v3774 = vpack.c.b16 %v3734, %v3730
    %v3775 = vpack.c.b16 %v3739, %v3735
    %v3776 = vpack.c.b16 %v3740, %v3736
    %v3777 = vpack.c.b16 %v3741, %v3737
    %v3778 = vpack.c.b16 %v3742, %v3738
    %v3779 = vpack.c.b16 %v3747, %v3743
    %v3780 = vpack.c.b16 %v3748, %v3744
    %v3781 = vpack.c.b16 %v3749, %v3745
    %v3782 = vpack.c.b16 %v3750, %v3746
    %3815 = vmatprep.subr.bf16.mxu0 %v3752
    %3816 = vmatpush1.bf16.msra.mxu0 %v3751
    %3817 = vmatprep.subr.bf16.mxu0 %v3756
    %3818 = vmatpush1.bf16.msra.mxu0 %v3755
    %3819 = vmatprep.subr.bf16.mxu0 %v3760
    %3820 = vmatpush1.bf16.msra.mxu0 %v3759
    %3821 = vmatprep.subr.bf16.mxu0 %v3764
    %3822 = vmatpush1.bf16.msra.mxu0 %v3763
    %3823 = vmatprep.subr.bf16.mxu0 %v3768
    %3824 = vmatpush1.bf16.msra.mxu0 %v3767
    %3825 = vmatprep.subr.bf16.mxu0 %v3772
    %3826 = vmatpush1.bf16.msra.mxu0 %v3771
    %3827 = vmatprep.subr.bf16.mxu0 %v3776
    %3828 = vmatpush1.bf16.msra.mxu0 %v3775
    %3829 = vmatprep.subr.bf16.mxu0 %v3780
    %3830 = vmatpush1.bf16.msra.mxu0 %v3779
    %3831 = vmatprep.subr.bf16.mxu0 0
    %3832 = vmatpush1.bf16.msra.mxu0 0
    %3833 = vmatprep.subr.bf16.mxu0 0
    %3834 = vmatpush1.bf16.msra.mxu0 0
    %3835 = vmatprep.subr.bf16.mxu0 0
    %3836 = vmatpush1.bf16.msra.mxu0 0
    %3837 = vmatprep.subr.bf16.mxu0 0
    %3838 = vmatpush1.bf16.msra.mxu0 0
    %3839 = vmatprep.subr.bf16.mxu0 0
    %3840 = vmatpush1.bf16.msra.mxu0 0
    %3841 = vmatprep.subr.bf16.mxu0 0
    %3842 = vmatpush1.bf16.msra.mxu0 0
    %3843 = vmatprep.subr.bf16.mxu0 0
    %3844 = vmatpush1.bf16.msra.mxu0 0
    %3845 = vmatprep.subr.bf16.mxu0 0
    %3846 = vmatpush1.bf16.msra.mxu0 0
    %3847 = vmatprep.mubr.bf16.mxu0 0
    %3848 = vmatmul.mubr.bf16.gmra.mrb[0].mxu0 0
    %v3849 = vpop.f32.mrb[0].mxu0
    %v3850 = vadd.f32 0.0, %v3849
    %v3851 = vpop.f32.mrb[0].mxu0
    %v3852 = vadd.f32 0.0, %v3851
    %v3853 = vpop.f32.mrb[0].mxu0
    %v3854 = vadd.f32 0.0, %v3853
    %v3855 = vpop.f32.mrb[0].mxu0
    %v3856 = vadd.f32 0.0, %v3855
    %3857 = vmatprep.mubr.bf16.mxu0 0
    %3858 = vmatmul.mubr.bf16.gmra.mrb[0].mxu0 0
    %v3859 = vpop.f32.mrb[0].mxu0
    %v3860 = vadd.f32 0.0, %v3859
    %v3861 = vpop.f32.mrb[0].mxu0
    %v3862 = vadd.f32 0.0, %v3861
    %v3863 = vpop.f32.mrb[0].mxu0
    %v3864 = vadd.f32 0.0, %v3863
    %v3865 = vpop.f32.mrb[0].mxu0
    %v3866 = vadd.f32 0.0, %v3865
    %3867 = vdwg.mxu0
    %3868 = vmatprep.subr.bf16.mxu0 %v3754
    %3869 = vmatpush1.bf16.msra.mxu0 %v3753
    %3870 = vmatprep.subr.bf16.mxu0 %v3758
    %3871 = vmatpush1.bf16.msra.mxu0 %v3757
    %3872 = vmatprep.subr.bf16.mxu0 %v3762
    %3873 = vmatpush1.bf16.msra.mxu0 %v3761
    %3874 = vmatprep.subr.bf16.mxu0 %v3766
    %3875 = vmatpush1.bf16.msra.mxu0 %v3765
    %3876 = vmatprep.subr.bf16.mxu0 %v3770
    %3877 = vmatpush1.bf16.msra.mxu0 %v3769
    %3878 = vmatprep.subr.bf16.mxu0 %v3774
    %3879 = vmatpush1.bf16.msra.mxu0 %v3773
    %3880 = vmatprep.subr.bf16.mxu0 %v3778
    %3881 = vmatpush1.bf16.msra.mxu0 %v3777
    %3882 = vmatprep.subr.bf16.mxu0 %v3782
    %3883 = vmatpush1.bf16.msra.mxu0 %v3781
    %3884 = vmatprep.subr.bf16.mxu0 0
    %3885 = vmatpush1.bf16.msra.mxu0 0
    %3886 = vmatprep.subr.bf16.mxu0 0
    %3887 = vmatpush1.bf16.msra.mxu0 0
    %3888 = vmatprep.subr.bf16.mxu0 0
    %3889 = vmatpush1.bf16.msra.mxu0 0
    %3890 = vmatprep.subr.bf16.mxu0 0
    %3891 = vmatpush1.bf16.msra.mxu0 0
    %3892 = vmatprep.subr.bf16.mxu0 0
    %3893 = vmatpush1.bf16.msra.mxu0 0
    %3894 = vmatprep.subr.bf16.mxu0 0
    %3895 = vmatpush1.bf16.msra.mxu0 0
    %3896 = vmatprep.subr.bf16.mxu0 0
    %3897 = vmatpush1.bf16.msra.mxu0 0
    %3898 = vmatprep.subr.bf16.mxu0 0
    %3899 = vmatpush1.bf16.msra.mxu0 0
    %3900 = vmatprep.mubr.bf16.mxu0 0
    %3901 = vmatmul.mubr.bf16.gmra.mrb[0].mxu0 0
    %v3902 = vpop.f32.mrb[0].mxu0
    %v3903 = vadd.f32 0.0, %v3902
    %v3904 = vpop.f32.mrb[0].mxu0
    %v3905 = vadd.f32 0.0, %v3904
    %v3906 = vpop.f32.mrb[0].mxu0
    %v3907 = vadd.f32 0.0, %v3906
    %v3908 = vpop.f32.mrb[0].mxu0
    %v3909 = vadd.f32 0.0, %v3908
    %3910 = vmatprep.mubr.bf16.mxu0 0
    %3911 = vmatmul.mubr.bf16.gmra.mrb[0].mxu0 0
    %v3912 = vpop.f32.mrb[0].mxu0
    %v3913 = vadd.f32 0.0, %v3912
    %v3914 = vpop.f32.mrb[0].mxu0
    %v3915 = vadd.f32 0.0, %v3914
    %v3916 = vpop.f32.mrb[0].mxu0
    %v3917 = vadd.f32 0.0, %v3916
    %v3918 = vpop.f32.mrb[0].mxu0
    %v3919 = vadd.f32 0.0, %v3918
    %3920 = vdwg.mxu0
    %v3921 = vadd.f32 %v2544, %v3850
    %v3922 = vadd.f32 %v2546, %v3852
    %v3923 = vadd.f32 %v2637, %v3903
    %v3924 = vadd.f32 %v2639, %v3905
    %v3925 = vadd.f32 %v2548, %v3854
    %v3926 = vadd.f32 %v2550, %v3856
    %v3927 = vadd.f32 %v2641, %v3907
    %v3928 = vadd.f32 %v2643, %v3909
    %v3929 = vadd.f32 %v2554, %v3860
    %v3930 = vadd.f32 %v2556, %v3862
    %v3931 = vadd.f32 %v2647, %v3913
    %v3932 = vadd.f32 %v2649, %v3915
    %v3933 = vadd.f32 %v2558, %v3864
    %v3934 = vadd.f32 %v2560, %v3866
    %v3935 = vadd.f32 %v2651, %v3917
    %v3936 = vadd.f32 %v2653, %v3919
    %v3938 = vlaneseq
    %v3939 = vshrl.u32 %v3938, 7
    %v3940 = vsub.s32 0, %v3939
    %v3941 = vrot.slane %v3652, %v3940
    %v3942 = vlaneseq
    %v3943 = vshrl.u32 %v3942, 7
    %v3944 = vsub.s32 1, %v3943
    %v3945 = vrot.slane %v3652, %v3944
    %v3946 = vlaneseq
    %v3947 = vshrl.u32 %v3946, 7
    %v3948 = vsub.s32 2, %v3947
    %v3949 = vrot.slane %v3652, %v3948
    %v3950 = vlaneseq
    %v3951 = vshrl.u32 %v3950, 7
    %v3952 = vsub.s32 3, %v3951
    %v3953 = vrot.slane %v3652, %v3952
    %v3958 = vadd.f32 %v3921, %v3941
    %v3959 = vadd.f32 %v3922, %v3945
    %v3960 = vadd.f32 %v3923, %v3949
    %v3961 = vadd.f32 %v3924, %v3953
    %v3962 = vadd.f32 %v3925, %v3941
    %v3963 = vadd.f32 %v3926, %v3945
    %v3964 = vadd.f32 %v3927, %v3949
    %v3965 = vadd.f32 %v3928, %v3953
    %v3966 = vadd.f32 %v3929, %v3941
    %v3967 = vadd.f32 %v3930, %v3945
    %v3968 = vadd.f32 %v3931, %v3949
    %v3969 = vadd.f32 %v3932, %v3953
    %v3970 = vadd.f32 %v3933, %v3941
    %v3971 = vadd.f32 %v3934, %v3945
    %v3972 = vadd.f32 %v3935, %v3949
    %v3973 = vadd.f32 %v3936, %v3953
    %v3974 = vxor.u32 %v3958, 2147483648
    %v3975 = vxor.u32 %v3962, 2147483648
    %v3976 = vxor.u32 %v3966, 2147483648
    %v3977 = vxor.u32 %v3970, 2147483648
    %v3978 = vmul.f32 %v3974, 1.442695
    %v3979 = vpow.pop %v3978
    %v3980 = vmul.f32 %v3975, 1.442695
    %v3981 = vpow.pop %v3980
    %v3982 = vmul.f32 %v3976, 1.442695
    %v3983 = vpow.pop %v3982
    %v3984 = vmul.f32 %v3977, 1.442695
    %v3985 = vpow.pop %v3984
    %v3986 = vadd.f32 %v3979, 1.0
    %v3987 = vadd.f32 %v3981, 1.0
    %v3988 = vadd.f32 %v3983, 1.0
    %v3989 = vadd.f32 %v3985, 1.0
    %v3990 = vrcp.pop %v3986
    %v3991 = vmul.f32 1.0, %v3990
    %v3992 = vrcp.pop %v3987
    %v3993 = vmul.f32 1.0, %v3992
    %v3994 = vrcp.pop %v3988
    %v3995 = vmul.f32 1.0, %v3994
    %v3996 = vrcp.pop %v3989
    %v3997 = vmul.f32 1.0, %v3996
    %v3998 = vxor.u32 %v3959, 2147483648
    %v3999 = vxor.u32 %v3963, 2147483648
    %v4000 = vxor.u32 %v3967, 2147483648
    %v4001 = vxor.u32 %v3971, 2147483648
    %v4002 = vmul.f32 %v3998, 1.442695
    %v4003 = vpow.pop %v4002
    %v4004 = vmul.f32 %v3999, 1.442695
    %v4005 = vpow.pop %v4004
    %v4006 = vmul.f32 %v4000, 1.442695
    %v4007 = vpow.pop %v4006
    %v4008 = vmul.f32 %v4001, 1.442695
    %v4009 = vpow.pop %v4008
    %v4010 = vadd.f32 %v4003, 1.0
    %v4011 = vadd.f32 %v4005, 1.0
    %v4012 = vadd.f32 %v4007, 1.0
    %v4013 = vadd.f32 %v4009, 1.0
    %v4014 = vrcp.pop %v4010
    %v4015 = vmul.f32 1.0, %v4014
    %v4016 = vrcp.pop %v4011
    %v4017 = vmul.f32 1.0, %v4016
    %v4018 = vrcp.pop %v4012
    %v4019 = vmul.f32 1.0, %v4018
    %v4020 = vrcp.pop %v4013
    %v4021 = vmul.f32 1.0, %v4020
    %v4022 = vtanh.pop %v3960
    %v4023 = vtanh.pop %v3964
    %v4024 = vtanh.pop %v3968
    %v4025 = vtanh.pop %v3972
    %v4026 = vxor.u32 %v3961, 2147483648
    %v4027 = vxor.u32 %v3965, 2147483648
    %v4028 = vxor.u32 %v3969, 2147483648
    %v4029 = vxor.u32 %v3973, 2147483648
    %v4030 = vmul.f32 %v4026, 1.442695
    %v4031 = vpow.pop %v4030
    %v4032 = vmul.f32 %v4027, 1.442695
    %v4033 = vpow.pop %v4032
    %v4034 = vmul.f32 %v4028, 1.442695
    %v4035 = vpow.pop %v4034
    %v4036 = vmul.f32 %v4029, 1.442695
    %v4037 = vpow.pop %v4036
    %v4038 = vadd.f32 %v4031, 1.0
    %v4039 = vadd.f32 %v4033, 1.0
    %v4040 = vadd.f32 %v4035, 1.0
    %v4041 = vadd.f32 %v4037, 1.0
    %v4042 = vrcp.pop %v4038
    %v4043 = vmul.f32 1.0, %v4042
    %v4044 = vrcp.pop %v4039
    %v4045 = vmul.f32 1.0, %v4044
    %v4046 = vrcp.pop %v4040
    %v4047 = vmul.f32 1.0, %v4046
    %v4048 = vrcp.pop %v4041
    %v4049 = vmul.f32 1.0, %v4048
    %v4050 = vmul.f32 %v4015, 0.0
    %v4051 = vmul.f32 %v4017, 0.0
    %v4052 = vmul.f32 %v4019, 0.0
    %v4053 = vmul.f32 %v4021, 0.0
    %v4054 = vmul.f32 %v3991, %v4022
    %v4055 = vmul.f32 %v3993, %v4023
    %v4056 = vmul.f32 %v3995, %v4024
    %v4057 = vmul.f32 %v3997, %v4025
    %v4058 = vadd.f32 %v4050, %v4054
    %v4059 = vadd.f32 %v4051, %v4055
    %v4060 = vadd.f32 %v4052, %v4056
    %v4061 = vadd.f32 %v4053, %v4057
    %v4062 = vtanh.pop %v4058
    %v4063 = vtanh.pop %v4059
    %v4064 = vtanh.pop %v4060
    %v4065 = vtanh.pop %v4061
    %v4066 = vmul.f32 %v4043, %v4062
    %v4067 = vmul.f32 %v4045, %v4063
    %v4068 = vmul.f32 %v4047, %v4064
    %v4069 = vmul.f32 %v4049, %v4065
    %v4071 = vlaneseq
    %v4072 = vshrl.u32 %v4071, 7
    %v4073 = vsub.s32 0, %v4072
    %v4074 = vrot.slane %v3654, %v4073
    %v4076 = vmul.f32 %v4066, %v4074
    %v4077 = vmul.f32 %v4067, %v4074
    %v4078 = vmul.f32 %v4068, %v4074
    %v4079 = vmul.f32 %v4069, %v4074
    %4080 = vadd.xlane.f32.xlu0 %v4076
    %v4081 = vpop.xlane.xlu0 %4080
    %4082 = vadd.xlane.f32.xlu0 %v4077
    %v4083 = vpop.xlane.xlu0 %4082
    %4084 = vadd.xlane.f32.xlu0 %v4078
    %v4085 = vpop.xlane.xlu0 %4084
    %4086 = vadd.xlane.f32.xlu0 %v4079
    %v4087 = vpop.xlane.xlu0 %4086
    %v4088 = vpack.c.bf16 %v4067, %v4066
    %v4089 = vpack.c.bf16 %v4069, %v4068
    %4090 = vmatprep.subr.bf16.mxu0 %v3752
    %4091 = vmatpush1.bf16.msra.mxu0 %v3751
    %4092 = vmatprep.subr.bf16.mxu0 %v3756
    %4093 = vmatpush1.bf16.msra.mxu0 %v3755
    %4094 = vmatprep.subr.bf16.mxu0 %v3760
    %4095 = vmatpush1.bf16.msra.mxu0 %v3759
    %4096 = vmatprep.subr.bf16.mxu0 %v3764
    %4097 = vmatpush1.bf16.msra.mxu0 %v3763
    %4098 = vmatprep.subr.bf16.mxu0 %v3768
    %4099 = vmatpush1.bf16.msra.mxu0 %v3767
    %4100 = vmatprep.subr.bf16.mxu0 %v3772
    %4101 = vmatpush1.bf16.msra.mxu0 %v3771
    %4102 = vmatprep.subr.bf16.mxu0 %v3776
    %4103 = vmatpush1.bf16.msra.mxu0 %v3775
    %4104 = vmatprep.subr.bf16.mxu0 %v3780
    %4105 = vmatpush1.bf16.msra.mxu0 %v3779
    %4106 = vmatprep.subr.bf16.mxu0 0
    %4107 = vmatpush1.bf16.msra.mxu0 0
    %4108 = vmatprep.subr.bf16.mxu0 0
    %4109 = vmatpush1.bf16.msra.mxu0 0
    %4110 = vmatprep.subr.bf16.mxu0 0
    %4111 = vmatpush1.bf16.msra.mxu0 0
    %4112 = vmatprep.subr.bf16.mxu0 0
    %4113 = vmatpush1.bf16.msra.mxu0 0
    %4114 = vmatprep.subr.bf16.mxu0 0
    %4115 = vmatpush1.bf16.msra.mxu0 0
    %4116 = vmatprep.subr.bf16.mxu0 0
    %4117 = vmatpush1.bf16.msra.mxu0 0
    %4118 = vmatprep.subr.bf16.mxu0 0
    %4119 = vmatpush1.bf16.msra.mxu0 0
    %4120 = vmatprep.subr.bf16.mxu0 0
    %4121 = vmatpush1.bf16.msra.mxu0 0
    %4122 = vmatprep.mubr.bf16.mxu0 0
    %4123 = vmatmul.mubr.bf16.gmra.mrb[0].mxu0 %v4088
    %v4124 = vpop.f32.mrb[0].mxu0
    %v4125 = vadd.f32 0.0, %v4124
    %v4126 = vpop.f32.mrb[0].mxu0
    %v4127 = vadd.f32 0.0, %v4126
    %v4128 = vpop.f32.mrb[0].mxu0
    %v4129 = vadd.f32 0.0, %v4128
    %v4130 = vpop.f32.mrb[0].mxu0
    %v4131 = vadd.f32 0.0, %v4130
    %4132 = vmatprep.mubr.bf16.mxu0 0
    %4133 = vmatmul.mubr.bf16.gmra.mrb[0].mxu0 %v4089
    %v4134 = vpop.f32.mrb[0].mxu0
    %v4135 = vadd.f32 0.0, %v4134
    %v4136 = vpop.f32.mrb[0].mxu0
    %v4137 = vadd.f32 0.0, %v4136
    %v4138 = vpop.f32.mrb[0].mxu0
    %v4139 = vadd.f32 0.0, %v4138
    %v4140 = vpop.f32.mrb[0].mxu0
    %v4141 = vadd.f32 0.0, %v4140
    %4142 = vdwg.mxu0
    %4143 = vmatprep.subr.bf16.mxu0 %v3754
    %4144 = vmatpush1.bf16.msra.mxu0 %v3753
    %4145 = vmatprep.subr.bf16.mxu0 %v3758
    %4146 = vmatpush1.bf16.msra.mxu0 %v3757
    %4147 = vmatprep.subr.bf16.mxu0 %v3762
    %4148 = vmatpush1.bf16.msra.mxu0 %v3761
    %4149 = vmatprep.subr.bf16.mxu0 %v3766
    %4150 = vmatpush1.bf16.msra.mxu0 %v3765
    %4151 = vmatprep.subr.bf16.mxu0 %v3770
    %4152 = vmatpush1.bf16.msra.mxu0 %v3769
    %4153 = vmatprep.subr.bf16.mxu0 %v3774
    %4154 = vmatpush1.bf16.msra.mxu0 %v3773
    %4155 = vmatprep.subr.bf16.mxu0 %v3778
    %4156 = vmatpush1.bf16.msra.mxu0 %v3777
    %4157 = vmatprep.subr.bf16.mxu0 %v3782
    %4158 = vmatpush1.bf16.msra.mxu0 %v3781
    %4159 = vmatprep.subr.bf16.mxu0 0
    %4160 = vmatpush1.bf16.msra.mxu0 0
    %4161 = vmatprep.subr.bf16.mxu0 0
    %4162 = vmatpush1.bf16.msra.mxu0 0
    %4163 = vmatprep.subr.bf16.mxu0 0
    %4164 = vmatpush1.bf16.msra.mxu0 0
    %4165 = vmatprep.subr.bf16.mxu0 0
    %4166 = vmatpush1.bf16.msra.mxu0 0
    %4167 = vmatprep.subr.bf16.mxu0 0
    %4168 = vmatpush1.bf16.msra.mxu0 0
    %4169 = vmatprep.subr.bf16.mxu0 0
    %4170 = vmatpush1.bf16.msra.mxu0 0
    %4171 = vmatprep.subr.bf16.mxu0 0
    %4172 = vmatpush1.bf16.msra.mxu0 0
    %4173 = vmatprep.subr.bf16.mxu0 0
    %4174 = vmatpush1.bf16.msra.mxu0 0
    %4175 = vmatprep.mubr.bf16.mxu0 0
    %4176 = vmatmul.mubr.bf16.gmra.mrb[0].mxu0 %v4088
    %v4177 = vpop.f32.mrb[0].mxu0
    %v4178 = vadd.f32 0.0, %v4177
    %v4179 = vpop.f32.mrb[0].mxu0
    %v4180 = vadd.f32 0.0, %v4179
    %v4181 = vpop.f32.mrb[0].mxu0
    %v4182 = vadd.f32 0.0, %v4181
    %v4183 = vpop.f32.mrb[0].mxu0
    %v4184 = vadd.f32 0.0, %v4183
    %4185 = vmatprep.mubr.bf16.mxu0 0
    %4186 = vmatmul.mubr.bf16.gmra.mrb[0].mxu0 %v4089
    %v4187 = vpop.f32.mrb[0].mxu0
    %v4188 = vadd.f32 0.0, %v4187
    %v4189 = vpop.f32.mrb[0].mxu0
    %v4190 = vadd.f32 0.0, %v4189
    %v4191 = vpop.f32.mrb[0].mxu0
    %v4192 = vadd.f32 0.0, %v4191
    %v4193 = vpop.f32.mrb[0].mxu0
    %v4194 = vadd.f32 0.0, %v4193
    %4195 = vdwg.mxu0
    %v4196 = vadd.f32 %v2524, %v4125
    %v4197 = vadd.f32 %v2526, %v4127
    %v4198 = vadd.f32 %v2617, %v4178
    %v4199 = vadd.f32 %v2619, %v4180
    %v4200 = vadd.f32 %v2528, %v4129
    %v4201 = vadd.f32 %v2530, %v4131
    %v4202 = vadd.f32 %v2621, %v4182
    %v4203 = vadd.f32 %v2623, %v4184
    %v4204 = vadd.f32 %v2534, %v4135
    %v4205 = vadd.f32 %v2536, %v4137
    %v4206 = vadd.f32 %v2627, %v4188
    %v4207 = vadd.f32 %v2629, %v4190
    %v4208 = vadd.f32 %v2538, %v4139
    %v4209 = vadd.f32 %v2540, %v4141
    %v4210 = vadd.f32 %v2631, %v4192
    %v4211 = vadd.f32 %v2633, %v4194
    %v4212 = vadd.f32 %v4196, %v3941
    %v4213 = vadd.f32 %v4197, %v3945
    %v4214 = vadd.f32 %v4198, %v3949
    %v4215 = vadd.f32 %v4199, %v3953
    %v4216 = vadd.f32 %v4200, %v3941
    %v4217 = vadd.f32 %v4201, %v3945
    %v4218 = vadd.f32 %v4202, %v3949
    %v4219 = vadd.f32 %v4203, %v3953
    %v4220 = vadd.f32 %v4204, %v3941
    %v4221 = vadd.f32 %v4205, %v3945
    %v4222 = vadd.f32 %v4206, %v3949
    %v4223 = vadd.f32 %v4207, %v3953
    %v4224 = vadd.f32 %v4208, %v3941
    %v4225 = vadd.f32 %v4209, %v3945
    %v4226 = vadd.f32 %v4210, %v3949
    %v4227 = vadd.f32 %v4211, %v3953
    %v4228 = vxor.u32 %v4212, 2147483648
    %v4229 = vxor.u32 %v4216, 2147483648
    %v4230 = vxor.u32 %v4220, 2147483648
    %v4231 = vxor.u32 %v4224, 2147483648
    %v4232 = vmul.f32 %v4228, 1.442695
    %v4233 = vpow.pop %v4232
    %v4234 = vmul.f32 %v4229, 1.442695
    %v4235 = vpow.pop %v4234
    %v4236 = vmul.f32 %v4230, 1.442695
    %v4237 = vpow.pop %v4236
    %v4238 = vmul.f32 %v4231, 1.442695
    %v4239 = vpow.pop %v4238
    %v4240 = vadd.f32 %v4233, 1.0
    %v4241 = vadd.f32 %v4235, 1.0
    %v4242 = vadd.f32 %v4237, 1.0
    %v4243 = vadd.f32 %v4239, 1.0
    %v4244 = vrcp.pop %v4240
    %v4245 = vmul.f32 1.0, %v4244
    %v4246 = vrcp.pop %v4241
    %v4247 = vmul.f32 1.0, %v4246
    %v4248 = vrcp.pop %v4242
    %v4249 = vmul.f32 1.0, %v4248
    %v4250 = vrcp.pop %v4243
    %v4251 = vmul.f32 1.0, %v4250
    %v4252 = vxor.u32 %v4213, 2147483648
    %v4253 = vxor.u32 %v4217, 2147483648
    %v4254 = vxor.u32 %v4221, 2147483648
    %v4255 = vxor.u32 %v4225, 2147483648
    %v4256 = vmul.f32 %v4252, 1.442695
    %v4257 = vpow.pop %v4256
    %v4258 = vmul.f32 %v4253, 1.442695
    %v4259 = vpow.pop %v4258
    %v4260 = vmul.f32 %v4254, 1.442695
    %v4261 = vpow.pop %v4260
    %v4262 = vmul.f32 %v4255, 1.442695
    %v4263 = vpow.pop %v4262
    %v4264 = vadd.f32 %v4257, 1.0
    %v4265 = vadd.f32 %v4259, 1.0
    %v4266 = vadd.f32 %v4261, 1.0
    %v4267 = vadd.f32 %v4263, 1.0
    %v4268 = vrcp.pop %v4264
    %v4269 = vmul.f32 1.0, %v4268
    %v4270 = vrcp.pop %v4265
    %v4271 = vmul.f32 1.0, %v4270
    %v4272 = vrcp.pop %v4266
    %v4273 = vmul.f32 1.0, %v4272
    %v4274 = vrcp.pop %v4267
    %v4275 = vmul.f32 1.0, %v4274
    %v4276 = vtanh.pop %v4214
    %v4277 = vtanh.pop %v4218
    %v4278 = vtanh.pop %v4222
    %v4279 = vtanh.pop %v4226
    %v4280 = vxor.u32 %v4215, 2147483648
    %v4281 = vxor.u32 %v4219, 2147483648
    %v4282 = vxor.u32 %v4223, 2147483648
    %v4283 = vxor.u32 %v4227, 2147483648
    %v4284 = vmul.f32 %v4280, 1.442695
    %v4285 = vpow.pop %v4284
    %v4286 = vmul.f32 %v4281, 1.442695
    %v4287 = vpow.pop %v4286
    %v4288 = vmul.f32 %v4282, 1.442695
    %v4289 = vpow.pop %v4288
    %v4290 = vmul.f32 %v4283, 1.442695
    %v4291 = vpow.pop %v4290
    %v4292 = vadd.f32 %v4285, 1.0
    %v4293 = vadd.f32 %v4287, 1.0
    %v4294 = vadd.f32 %v4289, 1.0
    %v4295 = vadd.f32 %v4291, 1.0
    %v4296 = vrcp.pop %v4292
    %v4297 = vmul.f32 1.0, %v4296
    %v4298 = vrcp.pop %v4293
    %v4299 = vmul.f32 1.0, %v4298
    %v4300 = vrcp.pop %v4294
    %v4301 = vmul.f32 1.0, %v4300
    %v4302 = vrcp.pop %v4295
    %v4303 = vmul.f32 1.0, %v4302
    %v4304 = vmul.f32 %v4269, %v4058
    %v4305 = vmul.f32 %v4271, %v4059
    %v4306 = vmul.f32 %v4273, %v4060
    %v4307 = vmul.f32 %v4275, %v4061
    %v4308 = vmul.f32 %v4245, %v4276
    %v4309 = vmul.f32 %v4247, %v4277
    %v4310 = vmul.f32 %v4249, %v4278
    %v4311 = vmul.f32 %v4251, %v4279
    %v4312 = vadd.f32 %v4304, %v4308
    %v4313 = vadd.f32 %v4305, %v4309
    %v4314 = vadd.f32 %v4306, %v4310
    %v4315 = vadd.f32 %v4307, %v4311
    %v4316 = vtanh.pop %v4312
    %v4317 = vtanh.pop %v4313
    %v4318 = vtanh.pop %v4314
    %v4319 = vtanh.pop %v4315
    %v4320 = vmul.f32 %v4297, %v4316
    %v4321 = vmul.f32 %v4299, %v4317
    %v4322 = vmul.f32 %v4301, %v4318
    %v4323 = vmul.f32 %v4303, %v4319
    %v4324 = vmul.f32 %v4320, %v4074
    %v4325 = vmul.f32 %v4321, %v4074
    %v4326 = vmul.f32 %v4322, %v4074
    %v4327 = vmul.f32 %v4323, %v4074
    %4328 = vadd.xlane.f32.xlu0 %v4324
    %v4329 = vpop.xlane.xlu0 %4328
    %4330 = vadd.xlane.f32.xlu0 %v4325
    %v4331 = vpop.xlane.xlu0 %4330
    %4332 = vadd.xlane.f32.xlu0 %v4326
    %v4333 = vpop.xlane.xlu0 %4332
    %4334 = vadd.xlane.f32.xlu0 %v4327
    %v4335 = vpop.xlane.xlu0 %4334
    %v4336 = vpack.c.bf16 %v4321, %v4320
    %v4337 = vpack.c.bf16 %v4323, %v4322
    %4338 = vmatprep.subr.bf16.mxu0 %v3752
    %4339 = vmatpush1.bf16.msra.mxu0 %v3751
    %4340 = vmatprep.subr.bf16.mxu0 %v3756
    %4341 = vmatpush1.bf16.msra.mxu0 %v3755
    %4342 = vmatprep.subr.bf16.mxu0 %v3760
    %4343 = vmatpush1.bf16.msra.mxu0 %v3759
    %4344 = vmatprep.subr.bf16.mxu0 %v3764
    %4345 = vmatpush1.bf16.msra.mxu0 %v3763
    %4346 = vmatprep.subr.bf16.mxu0 %v3768
    %4347 = vmatpush1.bf16.msra.mxu0 %v3767
    %4348 = vmatprep.subr.bf16.mxu0 %v3772
    %4349 = vmatpush1.bf16.msra.mxu0 %v3771
    %4350 = vmatprep.subr.bf16.mxu0 %v3776
    %4351 = vmatpush1.bf16.msra.mxu0 %v3775
    %4352 = vmatprep.subr.bf16.mxu0 %v3780
    %4353 = vmatpush1.bf16.msra.mxu0 %v3779
    %4354 = vmatprep.subr.bf16.mxu0 0
    %4355 = vmatpush1.bf16.msra.mxu0 0
    %4356 = vmatprep.subr.bf16.mxu0 0
    %4357 = vmatpush1.bf16.msra.mxu0 0
    %4358 = vmatprep.subr.bf16.mxu0 0
    %4359 = vmatpush1.bf16.msra.mxu0 0
    %4360 = vmatprep.subr.bf16.mxu0 0
    %4361 = vmatpush1.bf16.msra.mxu0 0
    %4362 = vmatprep.subr.bf16.mxu0 0
    %4363 = vmatpush1.bf16.msra.mxu0 0
    %4364 = vmatprep.subr.bf16.mxu0 0
    %4365 = vmatpush1.bf16.msra.mxu0 0
    %4366 = vmatprep.subr.bf16.mxu0 0
    %4367 = vmatpush1.bf16.msra.mxu0 0
    %4368 = vmatprep.subr.bf16.mxu0 0
    %4369 = vmatpush1.bf16.msra.mxu0 0
    %4370 = vmatprep.mubr.bf16.mxu0 0
    %4371 = vmatmul.mubr.bf16.gmra.mrb[0].mxu0 %v4336
    %v4372 = vpop.f32.mrb[0].mxu0
    %v4373 = vadd.f32 0.0, %v4372
    %v4374 = vpop.f32.mrb[0].mxu0
    %v4375 = vadd.f32 0.0, %v4374
    %v4376 = vpop.f32.mrb[0].mxu0
    %v4377 = vadd.f32 0.0, %v4376
    %v4378 = vpop.f32.mrb[0].mxu0
    %v4379 = vadd.f32 0.0, %v4378
    %4380 = vmatprep.mubr.bf16.mxu0 0
    %4381 = vmatmul.mubr.bf16.gmra.mrb[0].mxu0 %v4337
    %v4382 = vpop.f32.mrb[0].mxu0
    %v4383 = vadd.f32 0.0, %v4382
    %v4384 = vpop.f32.mrb[0].mxu0
    %v4385 = vadd.f32 0.0, %v4384
    %v4386 = vpop.f32.mrb[0].mxu0
    %v4387 = vadd.f32 0.0, %v4386
    %v4388 = vpop.f32.mrb[0].mxu0
    %v4389 = vadd.f32 0.0, %v4388
    %4390 = vdwg.mxu0
    %4391 = vmatprep.subr.bf16.mxu0 %v3754
    %4392 = vmatpush1.bf16.msra.mxu0 %v3753
    %4393 = vmatprep.subr.bf16.mxu0 %v3758
    %4394 = vmatpush1.bf16.msra.mxu0 %v3757
    %4395 = vmatprep.subr.bf16.mxu0 %v3762
    %4396 = vmatpush1.bf16.msra.mxu0 %v3761
    %4397 = vmatprep.subr.bf16.mxu0 %v3766
    %4398 = vmatpush1.bf16.msra.mxu0 %v3765
    %4399 = vmatprep.subr.bf16.mxu0 %v3770
    %4400 = vmatpush1.bf16.msra.mxu0 %v3769
    %4401 = vmatprep.subr.bf16.mxu0 %v3774
    %4402 = vmatpush1.bf16.msra.mxu0 %v3773
    %4403 = vmatprep.subr.bf16.mxu0 %v3778
    %4404 = vmatpush1.bf16.msra.mxu0 %v3777
    %4405 = vmatprep.subr.bf16.mxu0 %v3782
    %4406 = vmatpush1.bf16.msra.mxu0 %v3781
    %4407 = vmatprep.subr.bf16.mxu0 0
    %4408 = vmatpush1.bf16.msra.mxu0 0
    %4409 = vmatprep.subr.bf16.mxu0 0
    %4410 = vmatpush1.bf16.msra.mxu0 0
    %4411 = vmatprep.subr.bf16.mxu0 0
    %4412 = vmatpush1.bf16.msra.mxu0 0
    %4413 = vmatprep.subr.bf16.mxu0 0
    %4414 = vmatpush1.bf16.msra.mxu0 0
    %4415 = vmatprep.subr.bf16.mxu0 0
    %4416 = vmatpush1.bf16.msra.mxu0 0
    %4417 = vmatprep.subr.bf16.mxu0 0
    %4418 = vmatpush1.bf16.msra.mxu0 0
    %4419 = vmatprep.subr.bf16.mxu0 0
    %4420 = vmatpush1.bf16.msra.mxu0 0
    %4421 = vmatprep.subr.bf16.mxu0 0
    %4422 = vmatpush1.bf16.msra.mxu0 0
    %4423 = vmatprep.mubr.bf16.mxu0 0
    %4424 = vmatmul.mubr.bf16.gmra.mrb[0].mxu0 %v4336
    %v4425 = vpop.f32.mrb[0].mxu0
    %v4426 = vadd.f32 0.0, %v4425
    %v4427 = vpop.f32.mrb[0].mxu0
    %v4428 = vadd.f32 0.0, %v4427
    %v4429 = vpop.f32.mrb[0].mxu0
    %v4430 = vadd.f32 0.0, %v4429
    %v4431 = vpop.f32.mrb[0].mxu0
    %v4432 = vadd.f32 0.0, %v4431
    %4433 = vmatprep.mubr.bf16.mxu0 0
    %4434 = vmatmul.mubr.bf16.gmra.mrb[0].mxu0 %v4337
    %v4435 = vpop.f32.mrb[0].mxu0
    %v4436 = vadd.f32 0.0, %v4435
    %v4437 = vpop.f32.mrb[0].mxu0
    %v4438 = vadd.f32 0.0, %v4437
    %v4439 = vpop.f32.mrb[0].mxu0
    %v4440 = vadd.f32 0.0, %v4439
    %v4441 = vpop.f32.mrb[0].mxu0
    %v4442 = vadd.f32 0.0, %v4441
    %4443 = vdwg.mxu0
    %v4444 = vadd.f32 %v2504, %v4373
    %v4445 = vadd.f32 %v2506, %v4375
    %v4446 = vadd.f32 %v2597, %v4426
    %v4447 = vadd.f32 %v2599, %v4428
    %v4448 = vadd.f32 %v2508, %v4377
    %v4449 = vadd.f32 %v2510, %v4379
    %v4450 = vadd.f32 %v2601, %v4430
    %v4451 = vadd.f32 %v2603, %v4432
    %v4452 = vadd.f32 %v2514, %v4383
    %v4453 = vadd.f32 %v2516, %v4385
    %v4454 = vadd.f32 %v2607, %v4436
    %v4455 = vadd.f32 %v2609, %v4438
    %v4456 = vadd.f32 %v2518, %v4387
    %v4457 = vadd.f32 %v2520, %v4389
    %v4458 = vadd.f32 %v2611, %v4440
    %v4459 = vadd.f32 %v2613, %v4442
    %v4460 = vadd.f32 %v4444, %v3941
    %v4461 = vadd.f32 %v4445, %v3945
    %v4462 = vadd.f32 %v4446, %v3949
    %v4463 = vadd.f32 %v4447, %v3953
    %v4464 = vadd.f32 %v4448, %v3941
    %v4465 = vadd.f32 %v4449, %v3945
    %v4466 = vadd.f32 %v4450, %v3949
    %v4467 = vadd.f32 %v4451, %v3953
    %v4468 = vadd.f32 %v4452, %v3941
    %v4469 = vadd.f32 %v4453, %v3945
    %v4470 = vadd.f32 %v4454, %v3949
    %v4471 = vadd.f32 %v4455, %v3953
    %v4472 = vadd.f32 %v4456, %v3941
    %v4473 = vadd.f32 %v4457, %v3945
    %v4474 = vadd.f32 %v4458, %v3949
    %v4475 = vadd.f32 %v4459, %v3953
    %v4476 = vxor.u32 %v4460, 2147483648
    %v4477 = vxor.u32 %v4464, 2147483648
    %v4478 = vxor.u32 %v4468, 2147483648
    %v4479 = vxor.u32 %v4472, 2147483648
    %v4480 = vmul.f32 %v4476, 1.442695
    %v4481 = vpow.pop %v4480
    %v4482 = vmul.f32 %v4477, 1.442695
    %v4483 = vpow.pop %v4482
    %v4484 = vmul.f32 %v4478, 1.442695
    %v4485 = vpow.pop %v4484
    %v4486 = vmul.f32 %v4479, 1.442695
    %v4487 = vpow.pop %v4486
    %v4488 = vadd.f32 %v4481, 1.0
    %v4489 = vadd.f32 %v4483, 1.0
    %v4490 = vadd.f32 %v4485, 1.0
    %v4491 = vadd.f32 %v4487, 1.0
    %v4492 = vrcp.pop %v4488
    %v4493 = vmul.f32 1.0, %v4492
    %v4494 = vrcp.pop %v4489
    %v4495 = vmul.f32 1.0, %v4494
    %v4496 = vrcp.pop %v4490
    %v4497 = vmul.f32 1.0, %v4496
    %v4498 = vrcp.pop %v4491
    %v4499 = vmul.f32 1.0, %v4498
    %v4500 = vxor.u32 %v4461, 2147483648
    %v4501 = vxor.u32 %v4465, 2147483648
    %v4502 = vxor.u32 %v4469, 2147483648
    %v4503 = vxor.u32 %v4473, 2147483648
    %v4504 = vmul.f32 %v4500, 1.442695
    %v4505 = vpow.pop %v4504
    %v4506 = vmul.f32 %v4501, 1.442695
    %v4507 = vpow.pop %v4506
    %v4508 = vmul.f32 %v4502, 1.442695
    %v4509 = vpow.pop %v4508
    %v4510 = vmul.f32 %v4503, 1.442695
    %v4511 = vpow.pop %v4510
    %v4512 = vadd.f32 %v4505, 1.0
    %v4513 = vadd.f32 %v4507, 1.0
    %v4514 = vadd.f32 %v4509, 1.0
    %v4515 = vadd.f32 %v4511, 1.0
    %v4516 = vrcp.pop %v4512
    %v4517 = vmul.f32 1.0, %v4516
    %v4518 = vrcp.pop %v4513
    %v4519 = vmul.f32 1.0, %v4518
    %v4520 = vrcp.pop %v4514
    %v4521 = vmul.f32 1.0, %v4520
    %v4522 = vrcp.pop %v4515
    %v4523 = vmul.f32 1.0, %v4522
    %v4524 = vtanh.pop %v4462
    %v4525 = vtanh.pop %v4466
    %v4526 = vtanh.pop %v4470
    %v4527 = vtanh.pop %v4474
    %v4528 = vxor.u32 %v4463, 2147483648
    %v4529 = vxor.u32 %v4467, 2147483648
    %v4530 = vxor.u32 %v4471, 2147483648
    %v4531 = vxor.u32 %v4475, 2147483648
    %v4532 = vmul.f32 %v4528, 1.442695
    %v4533 = vpow.pop %v4532
    %v4534 = vmul.f32 %v4529, 1.442695
    %v4535 = vpow.pop %v4534
    %v4536 = vmul.f32 %v4530, 1.442695
    %v4537 = vpow.pop %v4536
    %v4538 = vmul.f32 %v4531, 1.442695
    %v4539 = vpow.pop %v4538
    %v4540 = vadd.f32 %v4533, 1.0
    %v4541 = vadd.f32 %v4535, 1.0
    %v4542 = vadd.f32 %v4537, 1.0
    %v4543 = vadd.f32 %v4539, 1.0
    %v4544 = vrcp.pop %v4540
    %v4545 = vmul.f32 1.0, %v4544
    %v4546 = vrcp.pop %v4541
    %v4547 = vmul.f32 1.0, %v4546
    %v4548 = vrcp.pop %v4542
    %v4549 = vmul.f32 1.0, %v4548
    %v4550 = vrcp.pop %v4543
    %v4551 = vmul.f32 1.0, %v4550
    %v4552 = vmul.f32 %v4517, %v4312
    %v4553 = vmul.f32 %v4519, %v4313
    %v4554 = vmul.f32 %v4521, %v4314
    %v4555 = vmul.f32 %v4523, %v4315
    %v4556 = vmul.f32 %v4493, %v4524
    %v4557 = vmul.f32 %v4495, %v4525
    %v4558 = vmul.f32 %v4497, %v4526
    %v4559 = vmul.f32 %v4499, %v4527
    %v4560 = vadd.f32 %v4552, %v4556
    %v4561 = vadd.f32 %v4553, %v4557
    %v4562 = vadd.f32 %v4554, %v4558
    %v4563 = vadd.f32 %v4555, %v4559
    %v4564 = vtanh.pop %v4560
    %v4565 = vtanh.pop %v4561
    %v4566 = vtanh.pop %v4562
    %v4567 = vtanh.pop %v4563
    %v4568 = vmul.f32 %v4545, %v4564
    %v4569 = vmul.f32 %v4547, %v4565
    %v4570 = vmul.f32 %v4549, %v4566
    %v4571 = vmul.f32 %v4551, %v4567
    %v4572 = vmul.f32 %v4568, %v4074
    %v4573 = vmul.f32 %v4569, %v4074
    %v4574 = vmul.f32 %v4570, %v4074
    %v4575 = vmul.f32 %v4571, %v4074
    %4576 = vadd.xlane.f32.xlu0 %v4572
    %v4577 = vpop.xlane.xlu0 %4576
    %4578 = vadd.xlane.f32.xlu0 %v4573
    %v4579 = vpop.xlane.xlu0 %4578
    %4580 = vadd.xlane.f32.xlu0 %v4574
    %v4581 = vpop.xlane.xlu0 %4580
    %4582 = vadd.xlane.f32.xlu0 %v4575
    %v4583 = vpop.xlane.xlu0 %4582
    %v4584 = vld [vmem:[#allocation2] sm:$0x1]
    %v4585 = vadd.f32 %v3115, %v4577
    %v4586 = vadd.f32 %v3117, %v4579
    %v4587 = vadd.f32 %v3119, %v4581
    %v4588 = vadd.f32 %v3121, %v4583
    %v4590 = vlaneseq
    %v4591 = vshrl.u32 %v4590, 7
    %v4592 = vsub.s32 0, %v4591
    %v4593 = vrot.slane %v4584, %v4592
    %v4595 = vadd.f32 %v4585, %v4593
    %v4596 = vadd.f32 %v4586, %v4593
    %v4597 = vadd.f32 %v4587, %v4593
    %v4598 = vadd.f32 %v4588, %v4593
    %v4599 = vadd.f32 %v3363, %v4329
    %v4600 = vadd.f32 %v3365, %v4331
    %v4601 = vadd.f32 %v3367, %v4333
    %v4602 = vadd.f32 %v3369, %v4335
    %v4603 = vadd.f32 %v4599, %v4593
    %v4604 = vadd.f32 %v4600, %v4593
    %v4605 = vadd.f32 %v4601, %v4593
    %v4606 = vadd.f32 %v4602, %v4593
    %v4607 = vadd.f32 %v3611, %v4081
    %v4608 = vadd.f32 %v3613, %v4083
    %v4609 = vadd.f32 %v3615, %v4085
    %v4610 = vadd.f32 %v3617, %v4087
    %v4611 = vadd.f32 %v4607, %v4593
    %v4612 = vadd.f32 %v4608, %v4593
    %v4613 = vadd.f32 %v4609, %v4593
    %v4614 = vadd.f32 %v4610, %v4593
    %v4615 = vmax.f32 %v4595, %v4603
    %v4616 = vmax.f32 %v4596, %v4604
    %v4617 = vmax.f32 %v4597, %v4605
    %v4618 = vmax.f32 %v4598, %v4606
    %v4619 = vmax.f32 %v4615, %v4611
    %v4620 = vmax.f32 %v4616, %v4612
    %v4621 = vmax.f32 %v4617, %v4613
    %v4622 = vmax.f32 %v4618, %v4614
    %v4623 = vsub.f32 %v4595, %v4619
    %v4624 = vsub.f32 %v4596, %v4620
    %v4625 = vsub.f32 %v4597, %v4621
    %v4626 = vsub.f32 %v4598, %v4622
    %v4627 = vmul.f32 %v4623, 1.442695
    %v4628 = vpow.pop %v4627
    %v4629 = vmul.f32 %v4624, 1.442695
    %v4630 = vpow.pop %v4629
    %v4631 = vmul.f32 %v4625, 1.442695
    %v4632 = vpow.pop %v4631
    %v4633 = vmul.f32 %v4626, 1.442695
    %v4634 = vpow.pop %v4633
    %v4635 = vsub.f32 %v4603, %v4619
    %v4636 = vsub.f32 %v4604, %v4620
    %v4637 = vsub.f32 %v4605, %v4621
    %v4638 = vsub.f32 %v4606, %v4622
    %v4639 = vmul.f32 %v4635, 1.442695
    %v4640 = vpow.pop %v4639
    %v4641 = vmul.f32 %v4636, 1.442695
    %v4642 = vpow.pop %v4641
    %v4643 = vmul.f32 %v4637, 1.442695
    %v4644 = vpow.pop %v4643
    %v4645 = vmul.f32 %v4638, 1.442695
    %v4646 = vpow.pop %v4645
    %v4647 = vsub.f32 %v4611, %v4619
    %v4648 = vsub.f32 %v4612, %v4620
    %v4649 = vsub.f32 %v4613, %v4621
    %v4650 = vsub.f32 %v4614, %v4622
    %v4651 = vmul.f32 %v4647, 1.442695
    %v4652 = vpow.pop %v4651
    %v4653 = vmul.f32 %v4648, 1.442695
    %v4654 = vpow.pop %v4653
    %v4655 = vmul.f32 %v4649, 1.442695
    %v4656 = vpow.pop %v4655
    %v4657 = vmul.f32 %v4650, 1.442695
    %v4658 = vpow.pop %v4657
    %v4659 = vadd.f32 %v4628, %v4640
    %v4660 = vadd.f32 %v4630, %v4642
    %v4661 = vadd.f32 %v4632, %v4644
    %v4662 = vadd.f32 %v4634, %v4646
    %v4663 = vadd.f32 %v4659, %v4652
    %v4664 = vadd.f32 %v4660, %v4654
    %v4665 = vadd.f32 %v4661, %v4656
    %v4666 = vadd.f32 %v4662, %v4658
    %v4667 = vunpack.c.l.bf16 %v861
    %v4668 = vunpack.c.h.bf16 %v861
    %v4669 = vunpack.c.l.bf16 %v862
    %v4670 = vunpack.c.h.bf16 %v862
    %4672 = vset.pattern.permute.xlu0 0
    %4673 = vperm.xlu0 %4672, %v4628
    %v4674 = vpop.permute.xlu0 %4673
    %4677 = vset.pattern.permute.xlu0 0
    %4678 = vperm.xlu0 %4677, %v4630
    %v4679 = vpop.permute.xlu0 %4678
    %4682 = vset.pattern.permute.xlu0 0
    %4683 = vperm.xlu0 %4682, %v4632
    %v4684 = vpop.permute.xlu0 %4683
    %4687 = vset.pattern.permute.xlu0 0
    %4688 = vperm.xlu0 %4687, %v4634
    %v4689 = vpop.permute.xlu0 %4688
    %v4691 = vmul.f32 %v4674, %v4667
    %v4692 = vmul.f32 %v4679, %v4668
    %v4693 = vmul.f32 %v4684, %v4669
    %v4694 = vmul.f32 %v4689, %v4670
    %v4695 = vunpack.c.l.bf16 %v1379
    %v4696 = vunpack.c.h.bf16 %v1379
    %v4697 = vunpack.c.l.bf16 %v1380
    %v4698 = vunpack.c.h.bf16 %v1380
    %4700 = vset.pattern.permute.xlu0 0
    %4701 = vperm.xlu0 %4700, %v4640
    %v4702 = vpop.permute.xlu0 %4701
    %4705 = vset.pattern.permute.xlu0 0
    %4706 = vperm.xlu0 %4705, %v4642
    %v4707 = vpop.permute.xlu0 %4706
    %4710 = vset.pattern.permute.xlu0 0
    %4711 = vperm.xlu0 %4710, %v4644
    %v4712 = vpop.permute.xlu0 %4711
    %4715 = vset.pattern.permute.xlu0 0
    %4716 = vperm.xlu0 %4715, %v4646
    %v4717 = vpop.permute.xlu0 %4716
    %v4719 = vmul.f32 %v4702, %v4695
    %v4720 = vmul.f32 %v4707, %v4696
    %v4721 = vmul.f32 %v4712, %v4697
    %v4722 = vmul.f32 %v4717, %v4698
    %v4723 = vadd.f32 %v4691, %v4719
    %v4724 = vadd.f32 %v4692, %v4720
    %v4725 = vadd.f32 %v4693, %v4721
    %v4726 = vadd.f32 %v4694, %v4722
    %v4727 = vunpack.c.l.bf16 %v1897
    %v4728 = vunpack.c.h.bf16 %v1897
    %v4729 = vunpack.c.l.bf16 %v1898
    %v4730 = vunpack.c.h.bf16 %v1898
    %4732 = vset.pattern.permute.xlu0 0
    %4733 = vperm.xlu0 %4732, %v4652
    %v4734 = vpop.permute.xlu0 %4733
    %4737 = vset.pattern.permute.xlu0 0
    %4738 = vperm.xlu0 %4737, %v4654
    %v4739 = vpop.permute.xlu0 %4738
    %4742 = vset.pattern.permute.xlu0 0
    %4743 = vperm.xlu0 %4742, %v4656
    %v4744 = vpop.permute.xlu0 %4743
    %4747 = vset.pattern.permute.xlu0 0
    %4748 = vperm.xlu0 %4747, %v4658
    %v4749 = vpop.permute.xlu0 %4748
    %v4751 = vmul.f32 %v4734, %v4727
    %v4752 = vmul.f32 %v4739, %v4728
    %v4753 = vmul.f32 %v4744, %v4729
    %v4754 = vmul.f32 %v4749, %v4730
    %v4755 = vadd.f32 %v4723, %v4751
    %v4756 = vadd.f32 %v4724, %v4752
    %v4757 = vadd.f32 %v4725, %v4753
    %v4758 = vadd.f32 %v4726, %v4754
    %4760 = vset.pattern.permute.xlu0 0
    %4761 = vperm.xlu0 %4760, %v4663
    %v4762 = vpop.permute.xlu0 %4761
    %4765 = vset.pattern.permute.xlu0 0
    %4766 = vperm.xlu0 %4765, %v4664
    %v4767 = vpop.permute.xlu0 %4766
    %4770 = vset.pattern.permute.xlu0 0
    %4771 = vperm.xlu0 %4770, %v4665
    %v4772 = vpop.permute.xlu0 %4771
    %4775 = vset.pattern.permute.xlu0 0
    %4776 = vperm.xlu0 %4775, %v4666
    %v4777 = vpop.permute.xlu0 %4776
    %v4779 = vrcp.pop %v4762
    %v4780 = vmul.f32 %v4755, %v4779
    %v4781 = vrcp.pop %v4767
    %v4782 = vmul.f32 %v4756, %v4781
    %v4783 = vrcp.pop %v4772
    %v4784 = vmul.f32 %v4757, %v4783
    %v4785 = vrcp.pop %v4777
    %v4786 = vmul.f32 %v4758, %v4785
    %v4787 = vpack.c.bf16 %v4782, %v4780
    %v4788 = vpack.c.bf16 %v4786, %v4784
    %v4789 = vld [vmem:[%s18] sm:$0xf]
    %v4790 = vld [vmem:[%s18 + $0x4] sm:$0xf]
    %v4791 = vld [vmem:[%s18 + $0x8] sm:$0xf]
    %v4792 = vld [vmem:[%s18 + $0xc] sm:$0xf]
    %v4793 = vld [vmem:[%s18 + $0x10] sm:$0xf]
    %v4794 = vld [vmem:[%s18 + $0x14] sm:$0xf]
    %v4795 = vld [vmem:[%s18 + $0x18] sm:$0xf]
    %v4796 = vld [vmem:[%s18 + $0x1c] sm:$0xf]
    %v4797 = vld [vmem:[%s18 + $0x20] sm:$0xf]
    %v4798 = vld [vmem:[%s18 + $0x24] sm:$0xf]
    %v4799 = vld [vmem:[%s18 + $0x28] sm:$0xf]
    %v4800 = vld [vmem:[%s18 + $0x2c] sm:$0xf]
    %v4801 = vld [vmem:[%s18 + $0x30] sm:$0xf]
    %v4802 = vld [vmem:[%s18 + $0x34] sm:$0xf]
    %v4803 = vld [vmem:[%s18 + $0x38] sm:$0xf]
    %v4804 = vld [vmem:[%s18 + $0x3c] sm:$0xf]
    %v4805 = vld [vmem:[%s19] sm:$0x1]
    %v4807 = vlaneseq
    %v4808 = vshrl.u32 %v4807, 7
    %v4809 = vsub.s32 0, %v4808
    %v4810 = vrot.slane %v4805, %v4809
    %v4828 = vunpack.c.l.b16 %v4789
    %v4829 = vunpack.c.l.b16 %v4790
    %v4830 = vunpack.c.l.b16 %v4791
    %v4831 = vunpack.c.l.b16 %v4792
    %v4832 = vunpack.c.l.b16 %v4793
    %v4833 = vunpack.c.l.b16 %v4794
    %v4834 = vunpack.c.l.b16 %v4795
    %v4835 = vunpack.c.l.b16 %v4796
    %v4836 = vunpack.c.l.b16 %v4797
    %v4837 = vunpack.c.l.b16 %v4798
    %v4838 = vunpack.c.l.b16 %v4799
    %v4839 = vunpack.c.l.b16 %v4800
    %v4840 = vunpack.c.l.b16 %v4801
    %v4841 = vunpack.c.l.b16 %v4802
    %v4842 = vunpack.c.l.b16 %v4803
    %v4843 = vunpack.c.l.b16 %v4804
    %v4844 = vpack.c.b16 %v4829, %v4828
    %v4845 = vpack.c.b16 %v4831, %v4830
    %v4846 = vpack.c.b16 %v4833, %v4832
    %v4847 = vpack.c.b16 %v4835, %v4834
    %v4848 = vpack.c.b16 %v4837, %v4836
    %v4849 = vpack.c.b16 %v4839, %v4838
    %v4850 = vpack.c.b16 %v4841, %v4840
    %v4851 = vpack.c.b16 %v4843, %v4842
    %4860 = vmatprep.subr.bf16.mxu0 0
    %4861 = vmatpush1.bf16.msra.mxu0 %v4844
    %4862 = vmatprep.subr.bf16.mxu0 0
    %4863 = vmatpush1.bf16.msra.mxu0 %v4845
    %4864 = vmatprep.subr.bf16.mxu0 0
    %4865 = vmatpush1.bf16.msra.mxu0 %v4846
    %4866 = vmatprep.subr.bf16.mxu0 0
    %4867 = vmatpush1.bf16.msra.mxu0 %v4847
    %4868 = vmatprep.subr.bf16.mxu0 0
    %4869 = vmatpush1.bf16.msra.mxu0 %v4848
    %4870 = vmatprep.subr.bf16.mxu0 0
    %4871 = vmatpush1.bf16.msra.mxu0 %v4849
    %4872 = vmatprep.subr.bf16.mxu0 0
    %4873 = vmatpush1.bf16.msra.mxu0 %v4850
    %4874 = vmatprep.subr.bf16.mxu0 0
    %4875 = vmatpush1.bf16.msra.mxu0 %v4851
    %4876 = vmatprep.subr.bf16.mxu0 0
    %4877 = vmatpush1.bf16.msra.mxu0 0
    %4878 = vmatprep.subr.bf16.mxu0 0
    %4879 = vmatpush1.bf16.msra.mxu0 0
    %4880 = vmatprep.subr.bf16.mxu0 0
    %4881 = vmatpush1.bf16.msra.mxu0 0
    %4882 = vmatprep.subr.bf16.mxu0 0
    %4883 = vmatpush1.bf16.msra.mxu0 0
    %4884 = vmatprep.subr.bf16.mxu0 0
    %4885 = vmatpush1.bf16.msra.mxu0 0
    %4886 = vmatprep.subr.bf16.mxu0 0
    %4887 = vmatpush1.bf16.msra.mxu0 0
    %4888 = vmatprep.subr.bf16.mxu0 0
    %4889 = vmatpush1.bf16.msra.mxu0 0
    %4890 = vmatprep.subr.bf16.mxu0 0
    %4891 = vmatpush1.bf16.msra.mxu0 0
    %4892 = vmatprep.mubr.bf16.mxu0 0
    %4893 = vmatmul.mubr.bf16.gmra.mrb[0].mxu0 %v4787
    %v4894 = vpop.f32.mrb[0].mxu0
    %v4895 = vadd.f32 %v4810, %v4894
    %v4896 = vpop.f32.mrb[0].mxu0
    %v4897 = vpop.f32.mrb[0].mxu0
    %v4898 = vadd.f32 %v4810, %v4897
    %v4899 = vpop.f32.mrb[0].mxu0
    %4900 = vmatprep.mubr.bf16.mxu0 0
    %4901 = vmatmul.mubr.bf16.gmra.mrb[0].mxu0 %v4788
    %v4902 = vpop.f32.mrb[0].mxu0
    %v4903 = vadd.f32 %v4810, %v4902
    %v4904 = vpop.f32.mrb[0].mxu0
    %v4905 = vpop.f32.mrb[0].mxu0
    %v4906 = vadd.f32 %v4810, %v4905
    %v4907 = vpop.f32.mrb[0].mxu0
    %4908 = vdwg.mxu0
    %v4909 = vadd.f32 %v4895, %v4903
    %v4910 = vadd.f32 %v4898, %v4906
    %v4911 = vpack.c.bf16 %v4910, %v4909
    %v4912 = vld [vmem:[#allocation23] sm:$0xf]
    %v4913 = vld [vmem:[#allocation23 + $0x4] sm:$0xf]
    %v4914 = vld [vmem:[#allocation23 + $0x8] sm:$0xf]
    %v4915 = vld [vmem:[#allocation23 + $0xc] sm:$0xf]
    %v4916 = vld [vmem:[#allocation23 + $0x10] sm:$0xf]
    %v4917 = vld [vmem:[#allocation23 + $0x14] sm:$0xf]
    %v4918 = vld [vmem:[#allocation23 + $0x18] sm:$0xf]
    %v4919 = vld [vmem:[#allocation23 + $0x1c] sm:$0xf]
    %v4920 = vld [vmem:[#allocation23 + $0x20] sm:$0xf]
    %v4921 = vld [vmem:[#allocation23 + $0x24] sm:$0xf]
    %v4922 = vld [vmem:[#allocation23 + $0x28] sm:$0xf]
    %v4923 = vld [vmem:[#allocation23 + $0x2c] sm:$0xf]
    %v4924 = vld [vmem:[#allocation23 + $0x30] sm:$0xf]
    %v4925 = vld [vmem:[#allocation23 + $0x34] sm:$0xf]
    %v4926 = vld [vmem:[#allocation23 + $0x38] sm:$0xf]
    %v4927 = vld [vmem:[#allocation23 + $0x3c] sm:$0xf]
    %v4928 = vld [vmem:[%s21] sm:$0x1]
    %v4930 = vlaneseq
    %v4931 = vshrl.u32 %v4930, 7
    %v4932 = vsub.s32 0, %v4931
    %v4933 = vrot.slane %v4928, %v4932
    %v4951 = vunpack.c.l.b16 %v4912
    %v4952 = vunpack.c.l.b16 %v4913
    %v4953 = vunpack.c.l.b16 %v4914
    %v4954 = vunpack.c.l.b16 %v4915
    %v4955 = vunpack.c.l.b16 %v4916
    %v4956 = vunpack.c.l.b16 %v4917
    %v4957 = vunpack.c.l.b16 %v4918
    %v4958 = vunpack.c.l.b16 %v4919
    %v4959 = vunpack.c.l.b16 %v4920
    %v4960 = vunpack.c.l.b16 %v4921
    %v4961 = vunpack.c.l.b16 %v4922
    %v4962 = vunpack.c.l.b16 %v4923
    %v4963 = vunpack.c.l.b16 %v4924
    %v4964 = vunpack.c.l.b16 %v4925
    %v4965 = vunpack.c.l.b16 %v4926
    %v4966 = vunpack.c.l.b16 %v4927
    %v4967 = vpack.c.b16 %v4952, %v4951
    %v4968 = vpack.c.b16 %v4954, %v4953
    %v4969 = vpack.c.b16 %v4956, %v4955
    %v4970 = vpack.c.b16 %v4958, %v4957
    %v4971 = vpack.c.b16 %v4960, %v4959
    %v4972 = vpack.c.b16 %v4962, %v4961
    %v4973 = vpack.c.b16 %v4964, %v4963
    %v4974 = vpack.c.b16 %v4966, %v4965
    %4983 = vmatprep.subr.bf16.mxu0 0
    %4984 = vmatpush1.bf16.msra.mxu0 %v4967
    %4985 = vmatprep.subr.bf16.mxu0 0
    %4986 = vmatpush1.bf16.msra.mxu0 %v4968
    %4987 = vmatprep.subr.bf16.mxu0 0
    %4988 = vmatpush1.bf16.msra.mxu0 %v4969
    %4989 = vmatprep.subr.bf16.mxu0 0
    %4990 = vmatpush1.bf16.msra.mxu0 %v4970
    %4991 = vmatprep.subr.bf16.mxu0 0
    %4992 = vmatpush1.bf16.msra.mxu0 %v4971
    %4993 = vmatprep.subr.bf16.mxu0 0
    %4994 = vmatpush1.bf16.msra.mxu0 %v4972
    %4995 = vmatprep.subr.bf16.mxu0 0
    %4996 = vmatpush1.bf16.msra.mxu0 %v4973
    %4997 = vmatprep.subr.bf16.mxu0 0
    %4998 = vmatpush1.bf16.msra.mxu0 %v4974
    %4999 = vmatprep.subr.bf16.mxu0 0
    %5000 = vmatpush1.bf16.msra.mxu0 0
    %5001 = vmatprep.subr.bf16.mxu0 0
    %5002 = vmatpush1.bf16.msra.mxu0 0
    %5003 = vmatprep.subr.bf16.mxu0 0
    %5004 = vmatpush1.bf16.msra.mxu0 0
    %5005 = vmatprep.subr.bf16.mxu0 0
    %5006 = vmatpush1.bf16.msra.mxu0 0
    %5007 = vmatprep.subr.bf16.mxu0 0
    %5008 = vmatpush1.bf16.msra.mxu0 0
    %5009 = vmatprep.subr.bf16.mxu0 0
    %5010 = vmatpush1.bf16.msra.mxu0 0
    %5011 = vmatprep.subr.bf16.mxu0 0
    %5012 = vmatpush1.bf16.msra.mxu0 0
    %5013 = vmatprep.subr.bf16.mxu0 0
    %5014 = vmatpush1.bf16.msra.mxu0 0
    %5015 = vmatprep.mubr.bf16.mxu0 0
    %5016 = vmatmul.mubr.bf16.gmra.mrb[0].mxu0 %v4911
    %v5017 = vpop.f32.mrb[0].mxu0
    %v5018 = vadd.f32 %v4933, %v5017
    %v5019 = vpop.f32.mrb[0].mxu0
    %v5020 = vpop.f32.mrb[0].mxu0
    %v5021 = vadd.f32 %v4933, %v5020
    %v5022 = vpop.f32.mrb[0].mxu0
    %5023 = vdwg.mxu0
    %v5024 = vld [vmem:[%s22] sm:$0x1]
    %v5026 = vlaneseq
    %v5027 = vshrl.u32 %v5026, 7
    %v5028 = vsub.s32 0, %v5027
    %v5029 = vrot.slane %v5024, %v5028
    %v5031 = vmul.f32 %v5018, %v5029
    %v5032 = vmul.f32 %v5021, %v5029
    %v5033 = vld [vmem:[%s23] sm:$0x1]
    %v5035 = vlaneseq
    %v5036 = vshrl.u32 %v5035, 7
    %v5037 = vsub.s32 0, %v5036
    %v5038 = vrot.slane %v5033, %v5037
    %v5040 = vadd.f32 %v5031, %v5038
    %v5041 = vadd.f32 %v5032, %v5038
    %v5042 = vmax.f32 %v5040, 0.0
    %v5043 = vmax.f32 %v5041, 0.0
    %v5044 = vpack.c.bf16 %v5043, %v5042
    %v5045 = vld [vmem:[#allocation25] sm:$0xf]
    %v5046 = vld [vmem:[#allocation25 + $0x4] sm:$0xf]
    %v5047 = vld [vmem:[#allocation25 + $0x8] sm:$0xf]
    %v5048 = vld [vmem:[#allocation25 + $0xc] sm:$0xf]
    %v5049 = vld [vmem:[#allocation25 + $0x10] sm:$0xf]
    %v5050 = vld [vmem:[#allocation25 + $0x14] sm:$0xf]
    %v5051 = vld [vmem:[#allocation25 + $0x18] sm:$0xf]
    %v5052 = vld [vmem:[#allocation25 + $0x1c] sm:$0xf]
    %v5053 = vld [vmem:[#allocation25 + $0x20] sm:$0xf]
    %v5054 = vld [vmem:[#allocation25 + $0x24] sm:$0xf]
    %v5055 = vld [vmem:[#allocation25 + $0x28] sm:$0xf]
    %v5056 = vld [vmem:[#allocation25 + $0x2c] sm:$0xf]
    %v5057 = vld [vmem:[#allocation25 + $0x30] sm:$0xf]
    %v5058 = vld [vmem:[#allocation25 + $0x34] sm:$0xf]
    %v5059 = vld [vmem:[#allocation25 + $0x38] sm:$0xf]
    %v5060 = vld [vmem:[#allocation25 + $0x3c] sm:$0xf]
    %v5061 = vld [vmem:[%s25] sm:$0x1]
    %v5063 = vlaneseq
    %v5064 = vshrl.u32 %v5063, 7
    %v5065 = vsub.s32 0, %v5064
    %v5066 = vrot.slane %v5061, %v5065
    %v5084 = vunpack.c.l.b16 %v5045
    %v5085 = vunpack.c.l.b16 %v5046
    %v5086 = vunpack.c.l.b16 %v5047
    %v5087 = vunpack.c.l.b16 %v5048
    %v5088 = vunpack.c.l.b16 %v5049
    %v5089 = vunpack.c.l.b16 %v5050
    %v5090 = vunpack.c.l.b16 %v5051
    %v5091 = vunpack.c.l.b16 %v5052
    %v5092 = vunpack.c.l.b16 %v5053
    %v5093 = vunpack.c.l.b16 %v5054
    %v5094 = vunpack.c.l.b16 %v5055
    %v5095 = vunpack.c.l.b16 %v5056
    %v5096 = vunpack.c.l.b16 %v5057
    %v5097 = vunpack.c.l.b16 %v5058
    %v5098 = vunpack.c.l.b16 %v5059
    %v5099 = vunpack.c.l.b16 %v5060
    %v5100 = vpack.c.b16 %v5085, %v5084
    %v5101 = vpack.c.b16 %v5087, %v5086
    %v5102 = vpack.c.b16 %v5089, %v5088
    %v5103 = vpack.c.b16 %v5091, %v5090
    %v5104 = vpack.c.b16 %v5093, %v5092
    %v5105 = vpack.c.b16 %v5095, %v5094
    %v5106 = vpack.c.b16 %v5097, %v5096
    %v5107 = vpack.c.b16 %v5099, %v5098
    %5116 = vmatprep.subr.bf16.mxu0 0
    %5117 = vmatpush1.bf16.msra.mxu0 %v5100
    %5118 = vmatprep.subr.bf16.mxu0 0
    %5119 = vmatpush1.bf16.msra.mxu0 %v5101
    %5120 = vmatprep.subr.bf16.mxu0 0
    %5121 = vmatpush1.bf16.msra.mxu0 %v5102
    %5122 = vmatprep.subr.bf16.mxu0 0
    %5123 = vmatpush1.bf16.msra.mxu0 %v5103
    %5124 = vmatprep.subr.bf16.mxu0 0
    %5125 = vmatpush1.bf16.msra.mxu0 %v5104
    %5126 = vmatprep.subr.bf16.mxu0 0
    %5127 = vmatpush1.bf16.msra.mxu0 %v5105
    %5128 = vmatprep.subr.bf16.mxu0 0
    %5129 = vmatpush1.bf16.msra.mxu0 %v5106
    %5130 = vmatprep.subr.bf16.mxu0 0
    %5131 = vmatpush1.bf16.msra.mxu0 %v5107
    %5132 = vmatprep.subr.bf16.mxu0 0
    %5133 = vmatpush1.bf16.msra.mxu0 0
    %5134 = vmatprep.subr.bf16.mxu0 0
    %5135 = vmatpush1.bf16.msra.mxu0 0
    %5136 = vmatprep.subr.bf16.mxu0 0
    %5137 = vmatpush1.bf16.msra.mxu0 0
    %5138 = vmatprep.subr.bf16.mxu0 0
    %5139 = vmatpush1.bf16.msra.mxu0 0
    %5140 = vmatprep.subr.bf16.mxu0 0
    %5141 = vmatpush1.bf16.msra.mxu0 0
    %5142 = vmatprep.subr.bf16.mxu0 0
    %5143 = vmatpush1.bf16.msra.mxu0 0
    %5144 = vmatprep.subr.bf16.mxu0 0
    %5145 = vmatpush1.bf16.msra.mxu0 0
    %5146 = vmatprep.subr.bf16.mxu0 0
    %5147 = vmatpush1.bf16.msra.mxu0 0
    %5148 = vmatprep.mubr.bf16.mxu0 0
    %5149 = vmatmul.mubr.bf16.gmra.mrb[0].mxu0 %v5044
    %v5150 = vpop.f32.mrb[0].mxu0
    %v5151 = vadd.f32 %v5066, %v5150
    %v5152 = vpop.f32.mrb[0].mxu0
    %v5153 = vpop.f32.mrb[0].mxu0
    %v5154 = vadd.f32 %v5066, %v5153
    %v5155 = vpop.f32.mrb[0].mxu0
    %5156 = vdwg.mxu0
    %5157 = vst [vmem:[#allocation26] sm:$0xff] %v5151
    %5158 = vst [vmem:[#allocation26 + $0x8] sm:$0xff] %v5154
    // Predicated region
    $region162: #{tpu_custom_call.1} parent=1 // pred_check
      _
    $region163: #{tpu_custom_call.1} parent=1 // pred_check_branch
      %5160 = sbr.rel (0) target = $region165
    $region164: #{tpu_custom_call.1} parent=1 // pred_region
      %s5162 = ssub.s32 256, 256
      %5163 = vsyncadd [#allocation5], %s5162
      %s5164 = sshll.u32 [#allocation26], 4
      %s5165 = int_to_ptr.vmem [resolvable:$true] %s5164
      %5170 = dma.vmem_to_hbm [thread:$0]  %s5165, 256, %s26, [#allocation5], 128, 128, 8
    $region165: #{tpu_custom_call.1} parent=1 // pred_fallthru
      _
    // Predicated region
    $region166: #{tpu_custom_call.1} parent=1 // pred_check
      _
    $region167: #{tpu_custom_call.1} parent=1 // pred_check_branch
      %5172 = sbr.rel (0) target = $region169
    $region168: #{tpu_custom_call.1} parent=1 // pred_region
      %5173 = dma.done [#allocation5], 256
    $region169: #{tpu_custom_call.1} parent=1 // pred_fallthru
      _
    %5174 = vsyncpa [#allocation4], 1
    %5175 = vsyncpa [#allocation9], 1
    %5176 = vsyncpa [#allocation12], 1
    %5177 = vsyncpa [#allocation15], 1
    %5178 = vsyncpa [#allocation18], 1
    %5179 = vsyncpa [#allocation21], 1
    %5180 = vsyncpa [#allocation24], 1
    %5181 = vsyncpa [#allocation5], 1
    %5182 = vsyncpa [#allocation6], 1

</llo_original>
